<compile_context>
chip_gen: v7x
topology: tpu7x:2x2x1
jax: 0.10.0
libtpu: 0.0.40
codegen_flags: <defaults>
</compile_context>

<pallas_src>
import math

import jax
import jax.numpy as jnp
from jax import lax
from jax.experimental import pallas as pl
from jax.experimental.pallas import tpu as pltpu

# ----------------------------- configuration ------------------------------
IN_CHANNELS = 4
H_IMG = 16
W_IMG = 16
PATCH = 4
BATCH = 2
EMB = 128            # embedding_dim
HEADS = 4
HEAD_DIM = EMB // HEADS
FF = 256
LAYERS = 4           # num_layers
DIM_OUT = 256
REG_HID = 256
LEAKY_SLOPE = 0.01
LN_EPS = 1e-5

S_TOK = (H_IMG // PATCH) * (W_IMG // PATCH)   # 16 tokens
CPP = IN_CHANNELS * PATCH * PATCH             # 64 = im2col patch width


# ----------------------------- in-kernel helpers ----------------------------
def _layernorm(x, g, b):
    mean = jnp.mean(x, axis=-1, keepdims=True)
    var = jnp.mean((x - mean) ** 2, axis=-1, keepdims=True)
    return (x - mean) * lax.rsqrt(var + LN_EPS) * g + b


def _leaky_relu(y):
    return jnp.where(y > 0, y, LEAKY_SLOPE * y)


def _mm(x, w, b=None):
    """bf16 x bf16 -> f32 matmul (MXU native); bias added in f32."""
    y = jnp.dot(x.astype(jnp.bfloat16), w.astype(jnp.bfloat16),
                preferred_element_type=jnp.float32)
    return y if b is None else y + b


# ------------------------------ fused kernel --------------------------------
def _vit_fused_kernel(
    # inputs
    patches_ref, pos_ref, embed_w_ref, embed_b_ref,
    in_w_ref, in_b_ref, out_w_ref, out_b_ref, ln1_g_ref, ln1_b_ref,
    ff1_w_ref, ff1_b_ref, ff2_w_ref, ff2_b_ref, ln2_g_ref, ln2_b_ref,
    rw0_hbm, rw1_hbm, rw2_hbm, rb0_ref, rb1_ref, rb2_ref,
    # outputs
    areabin_ref, softmax_ref,
    # scratch
    flat_ref, rw0_v, rw1_v, rw2_v, dma_sems,
):
    l = pl.program_id(0)
    n_layers = pl.num_programs(0)
    s = pos_ref.shape[0]
    n = patches_ref.shape[0] // s
    scale = 1.0 / math.sqrt(HEAD_DIM)

    # ---- step 0: start regressor-weight prefetch; patch embed + positional ----
    @pl.when(l == 0)
    def _():
        # Regressor weights are only needed at the last grid step -> async copies
        # issued now and hidden behind the whole encoder stack.
        pltpu.make_async_copy(rw0_hbm, rw0_v, dma_sems.at[0]).start()
        pltpu.make_async_copy(rw1_hbm, rw1_v, dma_sems.at[1]).start()
        pltpu.make_async_copy(rw2_hbm, rw2_v, dma_sems.at[2]).start()

        tok = _mm(patches_ref[...], embed_w_ref[...], embed_b_ref[...])   # (n*s, E)
        tok = tok.reshape(n, s, EMB) + pos_ref[...][None, :, :]
        # Row order is batch-major (n, s); all per-token ops are order-agnostic
        # and attention is per-batch, so this matches the (S, N, E) view.
        flat_ref[...] = tok.reshape(n * s, EMB)

    # ---- encoder layer `l` (post-norm, ReLU FFN, dropout = identity) ----
    flat = flat_ref[...]                                        # (n*s, E) f32
    qkv = _mm(flat, in_w_ref[0], in_b_ref[0])                   # (n*s, 3E) f32
    q = qkv[:, 0 * EMB:1 * EMB] * scale
    k = qkv[:, 1 * EMB:2 * EMB]
    v = qkv[:, 2 * EMB:3 * EMB]
    out_w = out_w_ref[0]                                        # (E, E) bf16

    # Per-head attention; head recombination is folded into the out projection
    # (no lane-axis concatenate of the (n*s, 32) head outputs).
    attn = jnp.zeros((n * s, EMB), jnp.float32)
    for h in range(HEADS):                                      # static unroll
        lo = h * HEAD_DIM
        qh = q[:, lo:lo + HEAD_DIM].reshape(n, s, HEAD_DIM).astype(jnp.bfloat16)
        kh = k[:, lo:lo + HEAD_DIM].reshape(n, s, HEAD_DIM).astype(jnp.bfloat16)
        vh = v[:, lo:lo + HEAD_DIM].reshape(n, s, HEAD_DIM).astype(jnp.bfloat16)
        sc = jnp.einsum("bqd,bkd->bqk", qh, kh,
                        preferred_element_type=jnp.float32)     # (n, s, s) f32
        sc = sc - jnp.max(sc, axis=-1, keepdims=True)
        p = jnp.exp(sc)
        p = p / jnp.sum(p, axis=-1, keepdims=True)               # exact softmax
        oh = jnp.einsum("bqk,bkd->bqd", p.astype(jnp.bfloat16), vh,
                        preferred_element_type=jnp.float32)      # (n, s, Dh)
        attn = attn + _mm(oh.reshape(n * s, HEAD_DIM), out_w[lo:lo + HEAD_DIM, :])
    attn = attn + out_b_ref[0]

    x1 = _layernorm(flat + attn, ln1_g_ref[0], ln1_b_ref[0])
    ff = jnp.maximum(_mm(x1, ff1_w_ref[0], ff1_b_ref[0]), 0.0)
    ff = _mm(ff, ff2_w_ref[0], ff2_b_ref[0])
    x2 = _layernorm(x1 + ff, ln2_g_ref[0], ln2_b_ref[0])
    flat_ref[...] = x2

    # ---- last step: regressor heads + output normalisations ----
    @pl.when(l == n_layers - 1)
    def _():
        pltpu.make_async_copy(rw0_hbm, rw0_v, dma_sems.at[0]).wait()
        pltpu.make_async_copy(rw1_hbm, rw1_v, dma_sems.at[1]).wait()
        pltpu.make_async_copy(rw2_hbm, rw2_v, dma_sems.at[2]).wait()

        tgt = x2.reshape(n, s, EMB)
        first_emb = tgt[:, 0, :]      # == tgt[0] of the (S, N, E) view
        second_emb = tgt[:, 1, :]     # == tgt[1]

        def regressor(emb, idx):
            y = _leaky_relu(_mm(emb, rw0_v[idx], rb0_ref[idx]))
            y = _leaky_relu(_mm(y, rw1_v[idx], rb1_ref[idx]))
            return _mm(y, rw2_v[idx], rb2_ref[idx])

        # regressor0 -> relu + eps -> normalize over dim=1 (norm == 'linear')
        r0 = jnp.maximum(regressor(first_emb, 0), 0.0) + 0.1
        areabin_ref[...] = r0 / jnp.sum(r0, axis=-1, keepdims=True)

        # regressor1 -> softmax over dim=1
        r1 = regressor(second_emb, 1)
        e1 = jnp.exp(r1 - jnp.max(r1, axis=-1, keepdims=True))
        softmax_ref[...] = e1 / jnp.sum(e1, axis=-1, keepdims=True)


# ------------------------------ parameters ---------------------------------
def init_params(key):
    def nrm(k, shape, scale=0.05, dtype=jnp.float32):
        return (scale * jax.random.normal(k, shape)).astype(dtype)

    keys = jax.random.split(key, 16)
    ki = iter(keys)
    bf = jnp.bfloat16
    p = {}
    p["embed_w"] = nrm(next(ki), (CPP, EMB), dtype=bf)
    p["embed_b"] = jnp.zeros((1, EMB), jnp.float32)
    p["pos"] = nrm(next(ki), (500, EMB))

    # transformer layer parameters stacked along a leading layer axis
    p["in_w"] = nrm(next(ki), (LAYERS, EMB, 3 * EMB), dtype=bf)
    p["in_b"] = jnp.zeros((LAYERS, 1, 3 * EMB), jnp.float32)
    p["out_w"] = nrm(next(ki), (LAYERS, EMB, EMB), dtype=bf)
    p["out_b"] = jnp.zeros((LAYERS, 1, EMB), jnp.float32)
    p["ln1_g"] = jnp.ones((LAYERS, 1, EMB), jnp.float32)
    p["ln1_b"] = jnp.zeros((LAYERS, 1, EMB), jnp.float32)
    p["ff1_w"] = nrm(next(ki), (LAYERS, EMB, FF), dtype=bf)
    p["ff1_b"] = jnp.zeros((LAYERS, 1, FF), jnp.float32)
    p["ff2_w"] = nrm(next(ki), (LAYERS, FF, EMB), dtype=bf)
    p["ff2_b"] = jnp.zeros((LAYERS, 1, EMB), jnp.float32)
    p["ln2_g"] = jnp.ones((LAYERS, 1, EMB), jnp.float32)
    p["ln2_b"] = jnp.zeros((LAYERS, 1, EMB), jnp.float32)

    # regressor0 / regressor1 weights stacked along a leading index {0, 1}
    p["reg_w0"] = nrm(next(ki), (2, EMB, REG_HID), dtype=bf)
    p["reg_b0"] = jnp.zeros((2, 1, REG_HID), jnp.float32)
    p["reg_w1"] = nrm(next(ki), (2, REG_HID, REG_HID), dtype=bf)
    p["reg_b1"] = jnp.zeros((2, 1, REG_HID), jnp.float32)
    p["reg_w2"] = nrm(next(ki), (2, REG_HID, DIM_OUT), dtype=bf)
    p["reg_b2"] = jnp.zeros((2, 1, DIM_OUT), jnp.float32)
    return p


# ------------------------------ forward pass --------------------------------
def vit_forward(x, params):
    # x: (N, C, H, W) -- NCHW like PyTorch.
    n, c, h, w = x.shape
    ph, pw = h // PATCH, w // PATCH
    s = ph * pw
    ns = n * s
    cpp = c * PATCH * PATCH

    # Patch conv (kernel == stride, no padding) as one-time im2col glue.
    patches = x.reshape(n, c, ph, PATCH, pw, PATCH)
    patches = patches.transpose(0, 2, 4, 1, 3, 5).reshape(ns, cpp)

    args = (
        patches, params["pos"][:s],
        params["embed_w"], params["embed_b"],
        params["in_w"], params["in_b"], params["out_w"], params["out_b"],
        params["ln1_g"], params["ln1_b"],
        params["ff1_w"], params["ff1_b"], params["ff2_w"], params["ff2_b"],
        params["ln2_g"], params["ln2_b"],
        params["reg_w0"], params["reg_w1"], params["reg_w2"],
        params["reg_b0"], params["reg_b1"], params["reg_b2"],
    )

    def const(shape):                     # same block every grid step
        return pl.BlockSpec(shape, lambda l, _n=len(shape): (0,) * _n)

    def per_layer(shape):                 # per-layer weight slab
        return pl.BlockSpec((1,) + shape,
                            lambda l, _n=len(shape): (l,) + (0,) * _n)

    grid_spec = pltpu.PrefetchScalarGridSpec(
        num_scalar_prefetch=0,
        grid=(LAYERS,),
        in_specs=[
            const((ns, cpp)),                    # patches
            const((s, EMB)),                     # pos
            const((cpp, EMB)),                   # embed_w
            const((1, EMB)),                     # embed_b
            per_layer((EMB, 3 * EMB)),           # in_w
            per_layer((1, 3 * EMB)),             # in_b
            per_layer((EMB, EMB)),               # out_w
            per_layer((1, EMB)),                 # out_b
            per_layer((1, EMB)),                 # ln1_g
            per_layer((1, EMB)),                 # ln1_b
            per_layer((EMB, FF)),                # ff1_w
            per_layer((1, FF)),                  # ff1_b
            per_layer((FF, EMB)),                # ff2_w
            per_layer((1, EMB)),                 # ff2_b
            per_layer((1, EMB)),                 # ln2_g
            per_layer((1, EMB)),                 # ln2_b
            pl.BlockSpec(memory_space=pl.ANY),   # reg_w0 (HBM; manual DMA)
            pl.BlockSpec(memory_space=pl.ANY),   # reg_w1
            pl.BlockSpec(memory_space=pl.ANY),   # reg_w2
            const((2, 1, REG_HID)),              # reg_b0
            const((2, 1, REG_HID)),              # reg_b1
            const((2, 1, DIM_OUT)),              # reg_b2
        ],
        out_specs=(
            pl.BlockSpec((n, DIM_OUT), lambda l: (0, 0)),
            pl.BlockSpec((n, DIM_OUT), lambda l: (0, 0)),
        ),
        scratch_shapes=[
            pltpu.VMEM((ns, EMB), jnp.float32),          # persistent activation
            pltpu.VMEM((2, EMB, REG_HID), jnp.bfloat16),  # regressor L0 weights
            pltpu.VMEM((2, REG_HID, REG_HID), jnp.bfloat16),
            pltpu.VMEM((2, REG_HID, DIM_OUT), jnp.bfloat16),
            pltpu.SemaphoreType.DMA((3,)),
        ],
    )

    # Advisory cost hint (kernel is small and latency-bound).
    per_layer_flops = (2 * ns * EMB * 3 * EMB          # qkv proj
                       + 2 * 2 * n * HEADS * s * s * HEAD_DIM  # scores + AV
                       + 2 * ns * EMB * EMB            # out proj
                       + 2 * ns * EMB * FF + 2 * ns * FF * EMB)  # FFN
    reg_flops = 2 * 2 * n * (EMB * REG_HID + REG_HID * REG_HID + REG_HID * DIM_OUT)
    flops = LAYERS * per_layer_flops + 2 * ns * cpp * EMB + reg_flops
    transcendentals = LAYERS * (n * HEADS * s * s + 2 * ns) + 2 * n * DIM_OUT
    bytes_accessed = (sum(int(a.size) * a.dtype.itemsize for a in args)
                      + 2 * n * DIM_OUT * 4)
    cost = pl.CostEstimate(flops=int(flops),
                           transcendentals=int(transcendentals),
                           bytes_accessed=int(bytes_accessed))

    areabin, softmax_p = pl.pallas_call(
        _vit_fused_kernel,
        out_shape=(
            jax.ShapeDtypeStruct((n, DIM_OUT), jnp.float32),
            jax.ShapeDtypeStruct((n, DIM_OUT), jnp.float32),
        ),
        grid_spec=grid_spec,
        compiler_params=pltpu.CompilerParams(dimension_semantics=("arbitrary",)),
        cost_estimate=cost,
    )(*args)
    return areabin, softmax_p


# --------------------------------- main --------------------------------------
if __name__ == "__main__":
    key = jax.random.PRNGKey(0)
    kx, kp = jax.random.split(key)
    x = jax.random.normal(kx, (BATCH, IN_CHANNELS, H_IMG, W_IMG), dtype=jnp.float32)
    params = init_params(kp)

    fwd = jax.jit(vit_forward)
    areabin, softmax_p = fwd(x, params)
    jax.block_until_ready((areabin, softmax_p))

    assert areabin.shape == (BATCH, DIM_OUT)
    assert softmax_p.shape == (BATCH, DIM_OUT)
    assert bool(jnp.all(jnp.isfinite(areabin))) and bool(jnp.all(jnp.isfinite(softmax_p)))
    # rows of both outputs must sum to 1
    assert bool(jnp.allclose(jnp.sum(areabin, axis=1), 1.0, atol=1e-4))
    assert bool(jnp.allclose(jnp.sum(softmax_p, axis=1), 1.0, atol=1e-4))
    print("KERNEL_OK")
</pallas_src>

<mosaic_0001>
module attributes {stable_mosaic.version = 11 : i64} {
  func.func @_vit_fused_kernel(%arg0: i32, %arg1: memref<32x64xf32, #tpu.memory_space<vmem>>, %arg2: memref<16x128xf32, #tpu.memory_space<vmem>>, %arg3: memref<64x128xbf16, #tpu.memory_space<vmem>>, %arg4: memref<1x128xf32, #tpu.memory_space<vmem>>, %arg5: memref<1x128x384xbf16, #tpu.memory_space<vmem>>, %arg6: memref<1x1x384xf32, #tpu.memory_space<vmem>>, %arg7: memref<1x128x128xbf16, #tpu.memory_space<vmem>>, %arg8: memref<1x1x128xf32, #tpu.memory_space<vmem>>, %arg9: memref<1x1x128xf32, #tpu.memory_space<vmem>>, %arg10: memref<1x1x128xf32, #tpu.memory_space<vmem>>, %arg11: memref<1x128x256xbf16, #tpu.memory_space<vmem>>, %arg12: memref<1x1x256xf32, #tpu.memory_space<vmem>>, %arg13: memref<1x256x128xbf16, #tpu.memory_space<vmem>>, %arg14: memref<1x1x128xf32, #tpu.memory_space<vmem>>, %arg15: memref<1x1x128xf32, #tpu.memory_space<vmem>>, %arg16: memref<1x1x128xf32, #tpu.memory_space<vmem>>, %arg17: memref<2x128x256xbf16, #tpu.memory_space<any>>, %arg18: memref<2x256x256xbf16, #tpu.memory_space<any>>, %arg19: memref<2x256x256xbf16, #tpu.memory_space<any>>, %arg20: memref<2x1x256xf32, #tpu.memory_space<vmem>>, %arg21: memref<2x1x256xf32, #tpu.memory_space<vmem>>, %arg22: memref<2x1x256xf32, #tpu.memory_space<vmem>>, %arg23: memref<2x256xf32, #tpu.memory_space<vmem>>, %arg24: memref<2x256xf32, #tpu.memory_space<vmem>>, %arg25: memref<32x128xf32, #tpu.memory_space<vmem>>, %arg26: memref<2x128x256xbf16, #tpu.memory_space<vmem>>, %arg27: memref<2x256x256xbf16, #tpu.memory_space<vmem>>, %arg28: memref<2x256x256xbf16, #tpu.memory_space<vmem>>, %arg29: memref<3x!tpu.dma_semaphore, #tpu.memory_space<semaphore_mem>>) attributes {dimension_semantics = [#tpu.dimension_semantics<arbitrary>], iteration_bounds = array<i64: 4>, scalar_prefetch = 0 : i64, scratch_operands = 5 : i64, tpu.core_type = #tpu.core_type<tc>, window_params = [{pipeline_mode = #tpu.pipeline_mode<synchronous>, transform_indices = @transform_0, window_bounds = array<i64: 32, 64>}, {pipeline_mode = #tpu.pipeline_mode<synchronous>, transform_indices = @transform_1, window_bounds = array<i64: 16, 128>}, {pipeline_mode = #tpu.pipeline_mode<synchronous>, transform_indices = @transform_2, window_bounds = array<i64: 64, 128>}, {pipeline_mode = #tpu.pipeline_mode<synchronous>, transform_indices = @transform_3, window_bounds = array<i64: 1, 128>}, {transform_indices = @transform_4, window_bounds = array<i64: 1, 128, 384>}, {transform_indices = @transform_5, window_bounds = array<i64: 1, 1, 384>}, {transform_indices = @transform_6, window_bounds = array<i64: 1, 128, 128>}, {transform_indices = @transform_7, window_bounds = array<i64: 1, 1, 128>}, {transform_indices = @transform_8, window_bounds = array<i64: 1, 1, 128>}, {transform_indices = @transform_9, window_bounds = array<i64: 1, 1, 128>}, {transform_indices = @transform_10, window_bounds = array<i64: 1, 128, 256>}, {transform_indices = @transform_11, window_bounds = array<i64: 1, 1, 256>}, {transform_indices = @transform_12, window_bounds = array<i64: 1, 256, 128>}, {transform_indices = @transform_13, window_bounds = array<i64: 1, 1, 128>}, {transform_indices = @transform_14, window_bounds = array<i64: 1, 1, 128>}, {transform_indices = @transform_15, window_bounds = array<i64: 1, 1, 128>}, {}, {}, {}, {pipeline_mode = #tpu.pipeline_mode<synchronous>, transform_indices = @transform_19, window_bounds = array<i64: 2, 1, 256>}, {pipeline_mode = #tpu.pipeline_mode<synchronous>, transform_indices = @transform_20, window_bounds = array<i64: 2, 1, 256>}, {pipeline_mode = #tpu.pipeline_mode<synchronous>, transform_indices = @transform_21, window_bounds = array<i64: 2, 1, 256>}, {pipeline_mode = #tpu.pipeline_mode<synchronous>, transform_indices = @transform_22, window_bounds = array<i64: 2, 256>}, {pipeline_mode = #tpu.pipeline_mode<synchronous>, transform_indices = @transform_23, window_bounds = array<i64: 2, 256>}]} {
    %c0_i32 = arith.constant 0 : i32
    %0 = arith.cmpi eq, %arg0, %c0_i32 : i32
    %1 = arith.extui %0 : i1 to i32
    %c0_i32_0 = arith.constant 0 : i32
    %2 = arith.cmpi ne, %1, %c0_i32_0 : i32
    scf.if %2 {
      %c0_i32_76 = arith.constant 0 : i32
      %204 = tpu.memref_slice %arg29[%c0_i32_76] : memref<3x!tpu.dma_semaphore, #tpu.memory_space<semaphore_mem>> -> memref<1x!tpu.dma_semaphore, #tpu.memory_space<semaphore_mem>>
      %205 = tpu.memref_squeeze %204 : memref<1x!tpu.dma_semaphore, #tpu.memory_space<semaphore_mem>> -> memref<!tpu.dma_semaphore, #tpu.memory_space<semaphore_mem>>
      tpu.enqueue_dma source(%arg17 : memref<2x128x256xbf16, #tpu.memory_space<any>>) target(%arg26 : memref<2x128x256xbf16, #tpu.memory_space<vmem>>) target_semaphore(%205 : memref<!tpu.dma_semaphore, #tpu.memory_space<semaphore_mem>>)
      %c1_i32 = arith.constant 1 : i32
      %206 = tpu.memref_slice %arg29[%c1_i32] : memref<3x!tpu.dma_semaphore, #tpu.memory_space<semaphore_mem>> -> memref<1x!tpu.dma_semaphore, #tpu.memory_space<semaphore_mem>>
      %207 = tpu.memref_squeeze %206 : memref<1x!tpu.dma_semaphore, #tpu.memory_space<semaphore_mem>> -> memref<!tpu.dma_semaphore, #tpu.memory_space<semaphore_mem>>
      tpu.enqueue_dma source(%arg18 : memref<2x256x256xbf16, #tpu.memory_space<any>>) target(%arg27 : memref<2x256x256xbf16, #tpu.memory_space<vmem>>) target_semaphore(%207 : memref<!tpu.dma_semaphore, #tpu.memory_space<semaphore_mem>>)
      %c2_i32 = arith.constant 2 : i32
      %208 = tpu.memref_slice %arg29[%c2_i32] : memref<3x!tpu.dma_semaphore, #tpu.memory_space<semaphore_mem>> -> memref<1x!tpu.dma_semaphore, #tpu.memory_space<semaphore_mem>>
      %209 = tpu.memref_squeeze %208 : memref<1x!tpu.dma_semaphore, #tpu.memory_space<semaphore_mem>> -> memref<!tpu.dma_semaphore, #tpu.memory_space<semaphore_mem>>
      tpu.enqueue_dma source(%arg19 : memref<2x256x256xbf16, #tpu.memory_space<any>>) target(%arg28 : memref<2x256x256xbf16, #tpu.memory_space<vmem>>) target_semaphore(%209 : memref<!tpu.dma_semaphore, #tpu.memory_space<semaphore_mem>>)
      %c0_77 = arith.constant 0 : index
      %c0_78 = arith.constant 0 : index
      %210 = vector.load %arg1[%c0_77, %c0_78] : memref<32x64xf32, #tpu.memory_space<vmem>>, vector<32x64xf32>
      %c0_79 = arith.constant 0 : index
      %c0_80 = arith.constant 0 : index
      %211 = vector.load %arg3[%c0_79, %c0_80] : memref<64x128xbf16, #tpu.memory_space<vmem>>, vector<64x128xbf16>
      %c0_81 = arith.constant 0 : index
      %c0_82 = arith.constant 0 : index
      %212 = vector.load %arg4[%c0_81, %c0_82] : memref<1x128xf32, #tpu.memory_space<vmem>>, vector<1x128xf32>
      %213 = arith.truncf %210 : vector<32x64xf32> to vector<32x64xbf16>
      %cst_83 = arith.constant dense<0.000000e+00> : vector<32x128xf32>
      %214 = tpu.matmul %213, %211, %cst_83 {dimension_numbers = #tpu.dot_dimension_numbers<[1], [0], [0], [1], [0, 0, 1, 1], [], []>} : vector<32x64xbf16>, vector<64x128xbf16>, vector<32x128xf32> -> vector<32x128xf32>
      %215 = vector.broadcast %212 : vector<1x128xf32> to vector<32x128xf32>
      %216 = arith.addf %214, %215 : vector<32x128xf32>
      %217 = vector.shape_cast %216 : vector<32x128xf32> to vector<2x16x128xf32>
      %c0_84 = arith.constant 0 : index
      %c0_85 = arith.constant 0 : index
      %218 = vector.load %arg2[%c0_84, %c0_85] : memref<16x128xf32, #tpu.memory_space<vmem>>, vector<16x128xf32>
      %219 = vector.shape_cast %218 : vector<16x128xf32> to vector<1x16x128xf32>
      %220 = vector.broadcast %219 : vector<1x16x128xf32> to vector<2x16x128xf32>
      %221 = arith.addf %217, %220 : vector<2x16x128xf32>
      %222 = vector.shape_cast %221 : vector<2x16x128xf32> to vector<32x128xf32>
      %c0_86 = arith.constant 0 : index
      %c0_87 = arith.constant 0 : index
      %223 = vector.load %arg25[%c0_86, %c0_87] : memref<32x128xf32, #tpu.memory_space<vmem>>, vector<32x128xf32>
      tpu.vector_store %arg25[%c0_86, %c0_87], %222 {strides = array<i32>} : memref<32x128xf32, #tpu.memory_space<vmem>>, vector<32x128xf32>,
    } else {
    }
    %c0 = arith.constant 0 : index
    %c0_1 = arith.constant 0 : index
    %3 = vector.load %arg25[%c0, %c0_1] : memref<32x128xf32, #tpu.memory_space<vmem>>, vector<32x128xf32>
    %c0_2 = arith.constant 0 : index
    %c0_3 = arith.constant 0 : index
    %c0_4 = arith.constant 0 : index
    %4 = vector.load %arg5[%c0_2, %c0_3, %c0_4] : memref<1x128x384xbf16, #tpu.memory_space<vmem>>, vector<1x128x384xbf16>
    %5 = vector.shape_cast %4 : vector<1x128x384xbf16> to vector<128x384xbf16>
    %c0_5 = arith.constant 0 : index
    %c0_6 = arith.constant 0 : index
    %c0_7 = arith.constant 0 : index
    %6 = vector.load %arg6[%c0_5, %c0_6, %c0_7] : memref<1x1x384xf32, #tpu.memory_space<vmem>>, vector<1x1x384xf32>
    %7 = vector.shape_cast %6 : vector<1x1x384xf32> to vector<1x384xf32>
    %8 = arith.truncf %3 : vector<32x128xf32> to vector<32x128xbf16>
    %cst = arith.constant dense<0.000000e+00> : vector<32x384xf32>
    %9 = tpu.matmul %8, %5, %cst {dimension_numbers = #tpu.dot_dimension_numbers<[1], [0], [0], [1], [0, 0, 1, 1], [], []>} : vector<32x128xbf16>, vector<128x384xbf16>, vector<32x384xf32> -> vector<32x384xf32>
    %10 = vector.broadcast %7 : vector<1x384xf32> to vector<32x384xf32>
    %11 = arith.addf %9, %10 : vector<32x384xf32>
    %12 = vector.extract_strided_slice %11 {offsets = [0, 0], sizes = [32, 128], strides = [1, 1]} : vector<32x384xf32> to vector<32x128xf32>
    %cst_8 = arith.constant 0.176776692 : f32
    %13 = vector.broadcast %cst_8 : f32 to vector<32x128xf32>
    %14 = arith.mulf %12, %13 : vector<32x128xf32>
    %15 = vector.extract_strided_slice %11 {offsets = [0, 128], sizes = [32, 128], strides = [1, 1]} : vector<32x384xf32> to vector<32x128xf32>
    %16 = vector.extract_strided_slice %11 {offsets = [0, 256], sizes = [32, 128], strides = [1, 1]} : vector<32x384xf32> to vector<32x128xf32>
    %c0_9 = arith.constant 0 : index
    %c0_10 = arith.constant 0 : index
    %c0_11 = arith.constant 0 : index
    %17 = vector.load %arg7[%c0_9, %c0_10, %c0_11] : memref<1x128x128xbf16, #tpu.memory_space<vmem>>, vector<1x128x128xbf16>
    %18 = vector.shape_cast %17 : vector<1x128x128xbf16> to vector<128x128xbf16>
    %cst_12 = arith.constant 0.000000e+00 : f32
    %19 = vector.broadcast %cst_12 : f32 to vector<32x128xf32>
    %20 = vector.extract_strided_slice %14 {offsets = [0, 0], sizes = [32, 32], strides = [1, 1]} : vector<32x128xf32> to vector<32x32xf32>
    %21 = vector.shape_cast %20 : vector<32x32xf32> to vector<2x16x32xf32>
    %22 = arith.truncf %21 : vector<2x16x32xf32> to vector<2x16x32xbf16>
    %23 = vector.extract_strided_slice %15 {offsets = [0, 0], sizes = [32, 32], strides = [1, 1]} : vector<32x128xf32> to vector<32x32xf32>
    %24 = vector.shape_cast %23 : vector<32x32xf32> to vector<2x16x32xf32>
    %25 = arith.truncf %24 : vector<2x16x32xf32> to vector<2x16x32xbf16>
    %26 = vector.extract_strided_slice %16 {offsets = [0, 0], sizes = [32, 32], strides = [1, 1]} : vector<32x128xf32> to vector<32x32xf32>
    %27 = vector.shape_cast %26 : vector<32x32xf32> to vector<2x16x32xf32>
    %28 = arith.truncf %27 : vector<2x16x32xf32> to vector<2x16x32xbf16>
    "tpu.trace_start"() <{level = 10 : i32, message = "bqd,bkd->bqk"}> : () -> ()
    %cst_13 = arith.constant dense<0.000000e+00> : vector<2x16x16xf32>
    %29 = tpu.matmul %22, %25, %cst_13 {dimension_numbers = #tpu.dot_dimension_numbers<[2], [2], [1], [1], [0, 0, 0, 1, 1, 1], [0], [0]>} : vector<2x16x32xbf16>, vector<2x16x32xbf16>, vector<2x16x16xf32> -> vector<2x16x16xf32>
    "tpu.trace_stop"() : () -> ()
    %cst_14 = arith.constant dense<0xFF800000> : vector<2x16xf32>
    %30 = vector.multi_reduction <maximumf>, %29, %cst_14 [2] : vector<2x16x16xf32> to vector<2x16xf32>
    %31 = vector.shape_cast %30 : vector<2x16xf32> to vector<2x16x1xf32>
    %32 = vector.broadcast %31 : vector<2x16x1xf32> to vector<2x16x16xf32>
    %33 = arith.subf %29, %32 : vector<2x16x16xf32>
    %34 = math.exp %33 : vector<2x16x16xf32>
    %cst_15 = arith.constant dense<0.000000e+00> : vector<2x16xf32>
    %35 = vector.multi_reduction <add>, %34, %cst_15 [2] : vector<2x16x16xf32> to vector<2x16xf32>
    %36 = vector.shape_cast %35 : vector<2x16xf32> to vector<2x16x1xf32>
    %37 = vector.broadcast %36 : vector<2x16x1xf32> to vector<2x16x16xf32>
    %38 = arith.divf %34, %37 : vector<2x16x16xf32>
    %39 = arith.truncf %38 : vector<2x16x16xf32> to vector<2x16x16xbf16>
    "tpu.trace_start"() <{level = 10 : i32, message = "bqk,bkd->bqd"}> : () -> ()
    %cst_16 = arith.constant dense<0.000000e+00> : vector<2x16x32xf32>
    %40 = tpu.matmul %39, %28, %cst_16 {dimension_numbers = #tpu.dot_dimension_numbers<[2], [1], [1], [2], [0, 0, 0, 1, 1, 2], [0], [0]>} : vector<2x16x16xbf16>, vector<2x16x32xbf16>, vector<2x16x32xf32> -> vector<2x16x32xf32>
    "tpu.trace_stop"() : () -> ()
    %41 = vector.shape_cast %40 : vector<2x16x32xf32> to vector<32x32xf32>
    %42 = vector.extract_strided_slice %18 {offsets = [0, 0], sizes = [32, 128], strides = [1, 1]} : vector<128x128xbf16> to vector<32x128xbf16>
    %43 = arith.truncf %41 : vector<32x32xf32> to vector<32x32xbf16>
    %cst_17 = arith.constant dense<0.000000e+00> : vector<32x128xf32>
    %44 = tpu.matmul %43, %42, %cst_17 {dimension_numbers = #tpu.dot_dimension_numbers<[1], [0], [0], [1], [0, 0, 1, 1], [], []>} : vector<32x32xbf16>, vector<32x128xbf16>, vector<32x128xf32> -> vector<32x128xf32>
    %45 = arith.addf %19, %44 : vector<32x128xf32>
    %46 = vector.extract_strided_slice %14 {offsets = [0, 32], sizes = [32, 32], strides = [1, 1]} : vector<32x128xf32> to vector<32x32xf32>
    %47 = vector.shape_cast %46 : vector<32x32xf32> to vector<2x16x32xf32>
    %48 = arith.truncf %47 : vector<2x16x32xf32> to vector<2x16x32xbf16>
    %49 = vector.extract_strided_slice %15 {offsets = [0, 32], sizes = [32, 32], strides = [1, 1]} : vector<32x128xf32> to vector<32x32xf32>
    %50 = vector.shape_cast %49 : vector<32x32xf32> to vector<2x16x32xf32>
    %51 = arith.truncf %50 : vector<2x16x32xf32> to vector<2x16x32xbf16>
    %52 = vector.extract_strided_slice %16 {offsets = [0, 32], sizes = [32, 32], strides = [1, 1]} : vector<32x128xf32> to vector<32x32xf32>
    %53 = vector.shape_cast %52 : vector<32x32xf32> to vector<2x16x32xf32>
    %54 = arith.truncf %53 : vector<2x16x32xf32> to vector<2x16x32xbf16>
    "tpu.trace_start"() <{level = 10 : i32, message = "bqd,bkd->bqk"}> : () -> ()
    %cst_18 = arith.constant dense<0.000000e+00> : vector<2x16x16xf32>
    %55 = tpu.matmul %48, %51, %cst_18 {dimension_numbers = #tpu.dot_dimension_numbers<[2], [2], [1], [1], [0, 0, 0, 1, 1, 1], [0], [0]>} : vector<2x16x32xbf16>, vector<2x16x32xbf16>, vector<2x16x16xf32> -> vector<2x16x16xf32>
    "tpu.trace_stop"() : () -> ()
    %cst_19 = arith.constant dense<0xFF800000> : vector<2x16xf32>
    %56 = vector.multi_reduction <maximumf>, %55, %cst_19 [2] : vector<2x16x16xf32> to vector<2x16xf32>
    %57 = vector.shape_cast %56 : vector<2x16xf32> to vector<2x16x1xf32>
    %58 = vector.broadcast %57 : vector<2x16x1xf32> to vector<2x16x16xf32>
    %59 = arith.subf %55, %58 : vector<2x16x16xf32>
    %60 = math.exp %59 : vector<2x16x16xf32>
    %cst_20 = arith.constant dense<0.000000e+00> : vector<2x16xf32>
    %61 = vector.multi_reduction <add>, %60, %cst_20 [2] : vector<2x16x16xf32> to vector<2x16xf32>
    %62 = vector.shape_cast %61 : vector<2x16xf32> to vector<2x16x1xf32>
    %63 = vector.broadcast %62 : vector<2x16x1xf32> to vector<2x16x16xf32>
    %64 = arith.divf %60, %63 : vector<2x16x16xf32>
    %65 = arith.truncf %64 : vector<2x16x16xf32> to vector<2x16x16xbf16>
    "tpu.trace_start"() <{level = 10 : i32, message = "bqk,bkd->bqd"}> : () -> ()
    %cst_21 = arith.constant dense<0.000000e+00> : vector<2x16x32xf32>
    %66 = tpu.matmul %65, %54, %cst_21 {dimension_numbers = #tpu.dot_dimension_numbers<[2], [1], [1], [2], [0, 0, 0, 1, 1, 2], [0], [0]>} : vector<2x16x16xbf16>, vector<2x16x32xbf16>, vector<2x16x32xf32> -> vector<2x16x32xf32>
    "tpu.trace_stop"() : () -> ()
    %67 = vector.shape_cast %66 : vector<2x16x32xf32> to vector<32x32xf32>
    %68 = vector.extract_strided_slice %18 {offsets = [32, 0], sizes = [32, 128], strides = [1, 1]} : vector<128x128xbf16> to vector<32x128xbf16>
    %69 = arith.truncf %67 : vector<32x32xf32> to vector<32x32xbf16>
    %cst_22 = arith.constant dense<0.000000e+00> : vector<32x128xf32>
    %70 = tpu.matmul %69, %68, %cst_22 {dimension_numbers = #tpu.dot_dimension_numbers<[1], [0], [0], [1], [0, 0, 1, 1], [], []>} : vector<32x32xbf16>, vector<32x128xbf16>, vector<32x128xf32> -> vector<32x128xf32>
    %71 = arith.addf %45, %70 : vector<32x128xf32>
    %72 = vector.extract_strided_slice %14 {offsets = [0, 64], sizes = [32, 32], strides = [1, 1]} : vector<32x128xf32> to vector<32x32xf32>
    %73 = vector.shape_cast %72 : vector<32x32xf32> to vector<2x16x32xf32>
    %74 = arith.truncf %73 : vector<2x16x32xf32> to vector<2x16x32xbf16>
    %75 = vector.extract_strided_slice %15 {offsets = [0, 64], sizes = [32, 32], strides = [1, 1]} : vector<32x128xf32> to vector<32x32xf32>
    %76 = vector.shape_cast %75 : vector<32x32xf32> to vector<2x16x32xf32>
    %77 = arith.truncf %76 : vector<2x16x32xf32> to vector<2x16x32xbf16>
    %78 = vector.extract_strided_slice %16 {offsets = [0, 64], sizes = [32, 32], strides = [1, 1]} : vector<32x128xf32> to vector<32x32xf32>
    %79 = vector.shape_cast %78 : vector<32x32xf32> to vector<2x16x32xf32>
    %80 = arith.truncf %79 : vector<2x16x32xf32> to vector<2x16x32xbf16>
    "tpu.trace_start"() <{level = 10 : i32, message = "bqd,bkd->bqk"}> : () -> ()
    %cst_23 = arith.constant dense<0.000000e+00> : vector<2x16x16xf32>
    %81 = tpu.matmul %74, %77, %cst_23 {dimension_numbers = #tpu.dot_dimension_numbers<[2], [2], [1], [1], [0, 0, 0, 1, 1, 1], [0], [0]>} : vector<2x16x32xbf16>, vector<2x16x32xbf16>, vector<2x16x16xf32> -> vector<2x16x16xf32>
    "tpu.trace_stop"() : () -> ()
    %cst_24 = arith.constant dense<0xFF800000> : vector<2x16xf32>
    %82 = vector.multi_reduction <maximumf>, %81, %cst_24 [2] : vector<2x16x16xf32> to vector<2x16xf32>
    %83 = vector.shape_cast %82 : vector<2x16xf32> to vector<2x16x1xf32>
    %84 = vector.broadcast %83 : vector<2x16x1xf32> to vector<2x16x16xf32>
    %85 = arith.subf %81, %84 : vector<2x16x16xf32>
    %86 = math.exp %85 : vector<2x16x16xf32>
    %cst_25 = arith.constant dense<0.000000e+00> : vector<2x16xf32>
    %87 = vector.multi_reduction <add>, %86, %cst_25 [2] : vector<2x16x16xf32> to vector<2x16xf32>
    %88 = vector.shape_cast %87 : vector<2x16xf32> to vector<2x16x1xf32>
    %89 = vector.broadcast %88 : vector<2x16x1xf32> to vector<2x16x16xf32>
    %90 = arith.divf %86, %89 : vector<2x16x16xf32>
    %91 = arith.truncf %90 : vector<2x16x16xf32> to vector<2x16x16xbf16>
    "tpu.trace_start"() <{level = 10 : i32, message = "bqk,bkd->bqd"}> : () -> ()
    %cst_26 = arith.constant dense<0.000000e+00> : vector<2x16x32xf32>
    %92 = tpu.matmul %91, %80, %cst_26 {dimension_numbers = #tpu.dot_dimension_numbers<[2], [1], [1], [2], [0, 0, 0, 1, 1, 2], [0], [0]>} : vector<2x16x16xbf16>, vector<2x16x32xbf16>, vector<2x16x32xf32> -> vector<2x16x32xf32>
    "tpu.trace_stop"() : () -> ()
    %93 = vector.shape_cast %92 : vector<2x16x32xf32> to vector<32x32xf32>
    %94 = vector.extract_strided_slice %18 {offsets = [64, 0], sizes = [32, 128], strides = [1, 1]} : vector<128x128xbf16> to vector<32x128xbf16>
    %95 = arith.truncf %93 : vector<32x32xf32> to vector<32x32xbf16>
    %cst_27 = arith.constant dense<0.000000e+00> : vector<32x128xf32>
    %96 = tpu.matmul %95, %94, %cst_27 {dimension_numbers = #tpu.dot_dimension_numbers<[1], [0], [0], [1], [0, 0, 1, 1], [], []>} : vector<32x32xbf16>, vector<32x128xbf16>, vector<32x128xf32> -> vector<32x128xf32>
    %97 = arith.addf %71, %96 : vector<32x128xf32>
    %98 = vector.extract_strided_slice %14 {offsets = [0, 96], sizes = [32, 32], strides = [1, 1]} : vector<32x128xf32> to vector<32x32xf32>
    %99 = vector.shape_cast %98 : vector<32x32xf32> to vector<2x16x32xf32>
    %100 = arith.truncf %99 : vector<2x16x32xf32> to vector<2x16x32xbf16>
    %101 = vector.extract_strided_slice %15 {offsets = [0, 96], sizes = [32, 32], strides = [1, 1]} : vector<32x128xf32> to vector<32x32xf32>
    %102 = vector.shape_cast %101 : vector<32x32xf32> to vector<2x16x32xf32>
    %103 = arith.truncf %102 : vector<2x16x32xf32> to vector<2x16x32xbf16>
    %104 = vector.extract_strided_slice %16 {offsets = [0, 96], sizes = [32, 32], strides = [1, 1]} : vector<32x128xf32> to vector<32x32xf32>
    %105 = vector.shape_cast %104 : vector<32x32xf32> to vector<2x16x32xf32>
    %106 = arith.truncf %105 : vector<2x16x32xf32> to vector<2x16x32xbf16>
    "tpu.trace_start"() <{level = 10 : i32, message = "bqd,bkd->bqk"}> : () -> ()
    %cst_28 = arith.constant dense<0.000000e+00> : vector<2x16x16xf32>
    %107 = tpu.matmul %100, %103, %cst_28 {dimension_numbers = #tpu.dot_dimension_numbers<[2], [2], [1], [1], [0, 0, 0, 1, 1, 1], [0], [0]>} : vector<2x16x32xbf16>, vector<2x16x32xbf16>, vector<2x16x16xf32> -> vector<2x16x16xf32>
    "tpu.trace_stop"() : () -> ()
    %cst_29 = arith.constant dense<0xFF800000> : vector<2x16xf32>
    %108 = vector.multi_reduction <maximumf>, %107, %cst_29 [2] : vector<2x16x16xf32> to vector<2x16xf32>
    %109 = vector.shape_cast %108 : vector<2x16xf32> to vector<2x16x1xf32>
    %110 = vector.broadcast %109 : vector<2x16x1xf32> to vector<2x16x16xf32>
    %111 = arith.subf %107, %110 : vector<2x16x16xf32>
    %112 = math.exp %111 : vector<2x16x16xf32>
    %cst_30 = arith.constant dense<0.000000e+00> : vector<2x16xf32>
    %113 = vector.multi_reduction <add>, %112, %cst_30 [2] : vector<2x16x16xf32> to vector<2x16xf32>
    %114 = vector.shape_cast %113 : vector<2x16xf32> to vector<2x16x1xf32>
    %115 = vector.broadcast %114 : vector<2x16x1xf32> to vector<2x16x16xf32>
    %116 = arith.divf %112, %115 : vector<2x16x16xf32>
    %117 = arith.truncf %116 : vector<2x16x16xf32> to vector<2x16x16xbf16>
    "tpu.trace_start"() <{level = 10 : i32, message = "bqk,bkd->bqd"}> : () -> ()
    %cst_31 = arith.constant dense<0.000000e+00> : vector<2x16x32xf32>
    %118 = tpu.matmul %117, %106, %cst_31 {dimension_numbers = #tpu.dot_dimension_numbers<[2], [1], [1], [2], [0, 0, 0, 1, 1, 2], [0], [0]>} : vector<2x16x16xbf16>, vector<2x16x32xbf16>, vector<2x16x32xf32> -> vector<2x16x32xf32>
    "tpu.trace_stop"() : () -> ()
    %119 = vector.shape_cast %118 : vector<2x16x32xf32> to vector<32x32xf32>
    %120 = vector.extract_strided_slice %18 {offsets = [96, 0], sizes = [32, 128], strides = [1, 1]} : vector<128x128xbf16> to vector<32x128xbf16>
    %121 = arith.truncf %119 : vector<32x32xf32> to vector<32x32xbf16>
    %cst_32 = arith.constant dense<0.000000e+00> : vector<32x128xf32>
    %122 = tpu.matmul %121, %120, %cst_32 {dimension_numbers = #tpu.dot_dimension_numbers<[1], [0], [0], [1], [0, 0, 1, 1], [], []>} : vector<32x32xbf16>, vector<32x128xbf16>, vector<32x128xf32> -> vector<32x128xf32>
    %123 = arith.addf %97, %122 : vector<32x128xf32>
    %c0_33 = arith.constant 0 : index
    %c0_34 = arith.constant 0 : index
    %c0_35 = arith.constant 0 : index
    %124 = vector.load %arg8[%c0_33, %c0_34, %c0_35] : memref<1x1x128xf32, #tpu.memory_space<vmem>>, vector<1x1x128xf32>
    %125 = vector.shape_cast %124 : vector<1x1x128xf32> to vector<1x128xf32>
    %126 = vector.broadcast %125 : vector<1x128xf32> to vector<32x128xf32>
    %127 = arith.addf %123, %126 : vector<32x128xf32>
    %128 = arith.addf %3, %127 : vector<32x128xf32>
    %c0_36 = arith.constant 0 : index
    %c0_37 = arith.constant 0 : index
    %c0_38 = arith.constant 0 : index
    %129 = vector.load %arg9[%c0_36, %c0_37, %c0_38] : memref<1x1x128xf32, #tpu.memory_space<vmem>>, vector<1x1x128xf32>
    %130 = vector.shape_cast %129 : vector<1x1x128xf32> to vector<1x128xf32>
    %c0_39 = arith.constant 0 : index
    %c0_40 = arith.constant 0 : index
    %c0_41 = arith.constant 0 : index
    %131 = vector.load %arg10[%c0_39, %c0_40, %c0_41] : memref<1x1x128xf32, #tpu.memory_space<vmem>>, vector<1x1x128xf32>
    %132 = vector.shape_cast %131 : vector<1x1x128xf32> to vector<1x128xf32>
    %cst_42 = arith.constant dense<0.000000e+00> : vector<32xf32>
    %133 = vector.multi_reduction <add>, %128, %cst_42 [1] : vector<32x128xf32> to vector<32xf32>
    %134 = vector.shape_cast %133 : vector<32xf32> to vector<32x1xf32>
    %cst_43 = arith.constant 1.280000e+02 : f32
    %135 = vector.broadcast %cst_43 : f32 to vector<32x1xf32>
    %136 = arith.divf %134, %135 : vector<32x1xf32>
    %137 = vector.broadcast %136 : vector<32x1xf32> to vector<32x128xf32>
    %138 = arith.subf %128, %137 : vector<32x128xf32>
    %139 = arith.mulf %138, %138 : vector<32x128xf32>
    %cst_44 = arith.constant dense<0.000000e+00> : vector<32xf32>
    %140 = vector.multi_reduction <add>, %139, %cst_44 [1] : vector<32x128xf32> to vector<32xf32>
    %141 = vector.shape_cast %140 : vector<32xf32> to vector<32x1xf32>
    %cst_45 = arith.constant 1.280000e+02 : f32
    %142 = vector.broadcast %cst_45 : f32 to vector<32x1xf32>
    %143 = arith.divf %141, %142 : vector<32x1xf32>
    %144 = vector.broadcast %136 : vector<32x1xf32> to vector<32x128xf32>
    %145 = arith.subf %128, %144 : vector<32x128xf32>
    %cst_46 = arith.constant 9.99999974E-6 : f32
    %146 = vector.broadcast %cst_46 : f32 to vector<32x1xf32>
    %147 = arith.addf %143, %146 : vector<32x1xf32>
    %148 = math.rsqrt %147 : vector<32x1xf32>
    %149 = vector.broadcast %148 : vector<32x1xf32> to vector<32x128xf32>
    %150 = arith.mulf %145, %149 : vector<32x128xf32>
    %151 = vector.broadcast %130 : vector<1x128xf32> to vector<32x128xf32>
    %152 = arith.mulf %150, %151 : vector<32x128xf32>
    %153 = vector.broadcast %132 : vector<1x128xf32> to vector<32x128xf32>
    %154 = arith.addf %152, %153 : vector<32x128xf32>
    %c0_47 = arith.constant 0 : index
    %c0_48 = arith.constant 0 : index
    %c0_49 = arith.constant 0 : index
    %155 = vector.load %arg11[%c0_47, %c0_48, %c0_49] : memref<1x128x256xbf16, #tpu.memory_space<vmem>>, vector<1x128x256xbf16>
    %156 = vector.shape_cast %155 : vector<1x128x256xbf16> to vector<128x256xbf16>
    %c0_50 = arith.constant 0 : index
    %c0_51 = arith.constant 0 : index
    %c0_52 = arith.constant 0 : index
    %157 = vector.load %arg12[%c0_50, %c0_51, %c0_52] : memref<1x1x256xf32, #tpu.memory_space<vmem>>, vector<1x1x256xf32>
    %158 = vector.shape_cast %157 : vector<1x1x256xf32> to vector<1x256xf32>
    %159 = arith.truncf %154 : vector<32x128xf32> to vector<32x128xbf16>
    %cst_53 = arith.constant dense<0.000000e+00> : vector<32x256xf32>
    %160 = tpu.matmul %159, %156, %cst_53 {dimension_numbers = #tpu.dot_dimension_numbers<[1], [0], [0], [1], [0, 0, 1, 1], [], []>} : vector<32x128xbf16>, vector<128x256xbf16>, vector<32x256xf32> -> vector<32x256xf32>
    %161 = vector.broadcast %158 : vector<1x256xf32> to vector<32x256xf32>
    %162 = arith.addf %160, %161 : vector<32x256xf32>
    %cst_54 = arith.constant 0.000000e+00 : f32
    %163 = vector.broadcast %cst_54 : f32 to vector<32x256xf32>
    %164 = arith.maximumf %162, %163 : vector<32x256xf32>
    %c0_55 = arith.constant 0 : index
    %c0_56 = arith.constant 0 : index
    %c0_57 = arith.constant 0 : index
    %165 = vector.load %arg13[%c0_55, %c0_56, %c0_57] : memref<1x256x128xbf16, #tpu.memory_space<vmem>>, vector<1x256x128xbf16>
    %166 = vector.shape_cast %165 : vector<1x256x128xbf16> to vector<256x128xbf16>
    %c0_58 = arith.constant 0 : index
    %c0_59 = arith.constant 0 : index
    %c0_60 = arith.constant 0 : index
    %167 = vector.load %arg14[%c0_58, %c0_59, %c0_60] : memref<1x1x128xf32, #tpu.memory_space<vmem>>, vector<1x1x128xf32>
    %168 = vector.shape_cast %167 : vector<1x1x128xf32> to vector<1x128xf32>
    %169 = arith.truncf %164 : vector<32x256xf32> to vector<32x256xbf16>
    %cst_61 = arith.constant dense<0.000000e+00> : vector<32x128xf32>
    %170 = tpu.matmul %169, %166, %cst_61 {dimension_numbers = #tpu.dot_dimension_numbers<[1], [0], [0], [1], [0, 0, 1, 1], [], []>} : vector<32x256xbf16>, vector<256x128xbf16>, vector<32x128xf32> -> vector<32x128xf32>
    %171 = vector.broadcast %168 : vector<1x128xf32> to vector<32x128xf32>
    %172 = arith.addf %170, %171 : vector<32x128xf32>
    %173 = arith.addf %154, %172 : vector<32x128xf32>
    %c0_62 = arith.constant 0 : index
    %c0_63 = arith.constant 0 : index
    %c0_64 = arith.constant 0 : index
    %174 = vector.load %arg15[%c0_62, %c0_63, %c0_64] : memref<1x1x128xf32, #tpu.memory_space<vmem>>, vector<1x1x128xf32>
    %175 = vector.shape_cast %174 : vector<1x1x128xf32> to vector<1x128xf32>
    %c0_65 = arith.constant 0 : index
    %c0_66 = arith.constant 0 : index
    %c0_67 = arith.constant 0 : index
    %176 = vector.load %arg16[%c0_65, %c0_66, %c0_67] : memref<1x1x128xf32, #tpu.memory_space<vmem>>, vector<1x1x128xf32>
    %177 = vector.shape_cast %176 : vector<1x1x128xf32> to vector<1x128xf32>
    %cst_68 = arith.constant dense<0.000000e+00> : vector<32xf32>
    %178 = vector.multi_reduction <add>, %173, %cst_68 [1] : vector<32x128xf32> to vector<32xf32>
    %179 = vector.shape_cast %178 : vector<32xf32> to vector<32x1xf32>
    %cst_69 = arith.constant 1.280000e+02 : f32
    %180 = vector.broadcast %cst_69 : f32 to vector<32x1xf32>
    %181 = arith.divf %179, %180 : vector<32x1xf32>
    %182 = vector.broadcast %181 : vector<32x1xf32> to vector<32x128xf32>
    %183 = arith.subf %173, %182 : vector<32x128xf32>
    %184 = arith.mulf %183, %183 : vector<32x128xf32>
    %cst_70 = arith.constant dense<0.000000e+00> : vector<32xf32>
    %185 = vector.multi_reduction <add>, %184, %cst_70 [1] : vector<32x128xf32> to vector<32xf32>
    %186 = vector.shape_cast %185 : vector<32xf32> to vector<32x1xf32>
    %cst_71 = arith.constant 1.280000e+02 : f32
    %187 = vector.broadcast %cst_71 : f32 to vector<32x1xf32>
    %188 = arith.divf %186, %187 : vector<32x1xf32>
    %189 = vector.broadcast %181 : vector<32x1xf32> to vector<32x128xf32>
    %190 = arith.subf %173, %189 : vector<32x128xf32>
    %cst_72 = arith.constant 9.99999974E-6 : f32
    %191 = vector.broadcast %cst_72 : f32 to vector<32x1xf32>
    %192 = arith.addf %188, %191 : vector<32x1xf32>
    %193 = math.rsqrt %192 : vector<32x1xf32>
    %194 = vector.broadcast %193 : vector<32x1xf32> to vector<32x128xf32>
    %195 = arith.mulf %190, %194 : vector<32x128xf32>
    %196 = vector.broadcast %175 : vector<1x128xf32> to vector<32x128xf32>
    %197 = arith.mulf %195, %196 : vector<32x128xf32>
    %198 = vector.broadcast %177 : vector<1x128xf32> to vector<32x128xf32>
    %199 = arith.addf %197, %198 : vector<32x128xf32>
    %c0_73 = arith.constant 0 : index
    %c0_74 = arith.constant 0 : index
    %200 = vector.load %arg25[%c0_73, %c0_74] : memref<32x128xf32, #tpu.memory_space<vmem>>, vector<32x128xf32>
    tpu.vector_store %arg25[%c0_73, %c0_74], %199 {strides = array<i32>} : memref<32x128xf32, #tpu.memory_space<vmem>>, vector<32x128xf32>,
    %c3_i32 = arith.constant 3 : i32
    %201 = arith.cmpi eq, %arg0, %c3_i32 : i32
    %202 = arith.extui %201 : i1 to i32
    %c0_i32_75 = arith.constant 0 : i32
    %203 = arith.cmpi ne, %202, %c0_i32_75 : i32
    scf.if %203 {
      %c0_i32_76 = arith.constant 0 : i32
      %204 = tpu.memref_slice %arg29[%c0_i32_76] : memref<3x!tpu.dma_semaphore, #tpu.memory_space<semaphore_mem>> -> memref<1x!tpu.dma_semaphore, #tpu.memory_space<semaphore_mem>>
      %205 = tpu.memref_squeeze %204 : memref<1x!tpu.dma_semaphore, #tpu.memory_space<semaphore_mem>> -> memref<!tpu.dma_semaphore, #tpu.memory_space<semaphore_mem>>
      tpu.wait_dma2 semaphore(%205 : memref<!tpu.dma_semaphore, #tpu.memory_space<semaphore_mem>>) src(%arg17 : memref<2x128x256xbf16, #tpu.memory_space<any>>) dst(%arg26 : memref<2x128x256xbf16, #tpu.memory_space<vmem>>)
      %c1_i32 = arith.constant 1 : i32
      %206 = tpu.memref_slice %arg29[%c1_i32] : memref<3x!tpu.dma_semaphore, #tpu.memory_space<semaphore_mem>> -> memref<1x!tpu.dma_semaphore, #tpu.memory_space<semaphore_mem>>
      %207 = tpu.memref_squeeze %206 : memref<1x!tpu.dma_semaphore, #tpu.memory_space<semaphore_mem>> -> memref<!tpu.dma_semaphore, #tpu.memory_space<semaphore_mem>>
      tpu.wait_dma2 semaphore(%207 : memref<!tpu.dma_semaphore, #tpu.memory_space<semaphore_mem>>) src(%arg18 : memref<2x256x256xbf16, #tpu.memory_space<any>>) dst(%arg27 : memref<2x256x256xbf16, #tpu.memory_space<vmem>>)
      %c2_i32 = arith.constant 2 : i32
      %208 = tpu.memref_slice %arg29[%c2_i32] : memref<3x!tpu.dma_semaphore, #tpu.memory_space<semaphore_mem>> -> memref<1x!tpu.dma_semaphore, #tpu.memory_space<semaphore_mem>>
      %209 = tpu.memref_squeeze %208 : memref<1x!tpu.dma_semaphore, #tpu.memory_space<semaphore_mem>> -> memref<!tpu.dma_semaphore, #tpu.memory_space<semaphore_mem>>
      tpu.wait_dma2 semaphore(%209 : memref<!tpu.dma_semaphore, #tpu.memory_space<semaphore_mem>>) src(%arg19 : memref<2x256x256xbf16, #tpu.memory_space<any>>) dst(%arg28 : memref<2x256x256xbf16, #tpu.memory_space<vmem>>)
      %210 = vector.shape_cast %199 : vector<32x128xf32> to vector<2x16x128xf32>
      %211 = vector.extract_strided_slice %210 {offsets = [0, 0, 0], sizes = [2, 1, 128], strides = [1, 1, 1]} : vector<2x16x128xf32> to vector<2x1x128xf32>
      %212 = vector.shape_cast %211 : vector<2x1x128xf32> to vector<2x128xf32>
      %213 = vector.extract_strided_slice %210 {offsets = [0, 1, 0], sizes = [2, 1, 128], strides = [1, 1, 1]} : vector<2x16x128xf32> to vector<2x1x128xf32>
      %214 = vector.shape_cast %213 : vector<2x1x128xf32> to vector<2x128xf32>
      %c0_77 = arith.constant 0 : index
      %c0_78 = arith.constant 0 : index
      %c0_79 = arith.constant 0 : index
      %215 = vector.load %arg26[%c0_77, %c0_78, %c0_79] : memref<2x128x256xbf16, #tpu.memory_space<vmem>>, vector<1x128x256xbf16>
      %216 = vector.shape_cast %215 : vector<1x128x256xbf16> to vector<128x256xbf16>
      %c0_80 = arith.constant 0 : index
      %c0_81 = arith.constant 0 : index
      %c0_82 = arith.constant 0 : index
      %217 = vector.load %arg20[%c0_80, %c0_81, %c0_82] : memref<2x1x256xf32, #tpu.memory_space<vmem>>, vector<1x1x256xf32>
      %218 = vector.shape_cast %217 : vector<1x1x256xf32> to vector<1x256xf32>
      %219 = arith.truncf %212 : vector<2x128xf32> to vector<2x128xbf16>
      %cst_83 = arith.constant dense<0.000000e+00> : vector<2x256xf32>
      %220 = tpu.matmul %219, %216, %cst_83 {dimension_numbers = #tpu.dot_dimension_numbers<[1], [0], [0], [1], [0, 0, 1, 1], [], []>} : vector<2x128xbf16>, vector<128x256xbf16>, vector<2x256xf32> -> vector<2x256xf32>
      %221 = vector.broadcast %218 : vector<1x256xf32> to vector<2x256xf32>
      %222 = arith.addf %220, %221 : vector<2x256xf32>
      %cst_84 = arith.constant 0.000000e+00 : f32
      %223 = vector.broadcast %cst_84 : f32 to vector<2x256xf32>
      %224 = arith.cmpf ogt, %222, %223 : vector<2x256xf32>
      %cst_85 = arith.constant 0.00999999977 : f32
      %225 = vector.broadcast %cst_85 : f32 to vector<2x256xf32>
      %226 = arith.mulf %225, %222 : vector<2x256xf32>
      %227 = arith.select %224, %222, %226 : vector<2x256xi1>, vector<2x256xf32>
      %c0_86 = arith.constant 0 : index
      %c0_87 = arith.constant 0 : index
      %c0_88 = arith.constant 0 : index
      %228 = vector.load %arg27[%c0_86, %c0_87, %c0_88] : memref<2x256x256xbf16, #tpu.memory_space<vmem>>, vector<1x256x256xbf16>
      %229 = vector.shape_cast %228 : vector<1x256x256xbf16> to vector<256x256xbf16>
      %c0_89 = arith.constant 0 : index
      %c0_90 = arith.constant 0 : index
      %c0_91 = arith.constant 0 : index
      %230 = vector.load %arg21[%c0_89, %c0_90, %c0_91] : memref<2x1x256xf32, #tpu.memory_space<vmem>>, vector<1x1x256xf32>
      %231 = vector.shape_cast %230 : vector<1x1x256xf32> to vector<1x256xf32>
      %232 = arith.truncf %227 : vector<2x256xf32> to vector<2x256xbf16>
      %cst_92 = arith.constant dense<0.000000e+00> : vector<2x256xf32>
      %233 = tpu.matmul %232, %229, %cst_92 {dimension_numbers = #tpu.dot_dimension_numbers<[1], [0], [0], [1], [0, 0, 1, 1], [], []>} : vector<2x256xbf16>, vector<256x256xbf16>, vector<2x256xf32> -> vector<2x256xf32>
      %234 = vector.broadcast %231 : vector<1x256xf32> to vector<2x256xf32>
      %235 = arith.addf %233, %234 : vector<2x256xf32>
      %cst_93 = arith.constant 0.000000e+00 : f32
      %236 = vector.broadcast %cst_93 : f32 to vector<2x256xf32>
      %237 = arith.cmpf ogt, %235, %236 : vector<2x256xf32>
      %cst_94 = arith.constant 0.00999999977 : f32
      %238 = vector.broadcast %cst_94 : f32 to vector<2x256xf32>
      %239 = arith.mulf %238, %235 : vector<2x256xf32>
      %240 = arith.select %237, %235, %239 : vector<2x256xi1>, vector<2x256xf32>
      %c0_95 = arith.constant 0 : index
      %c0_96 = arith.constant 0 : index
      %c0_97 = arith.constant 0 : index
      %241 = vector.load %arg28[%c0_95, %c0_96, %c0_97] : memref<2x256x256xbf16, #tpu.memory_space<vmem>>, vector<1x256x256xbf16>
      %242 = vector.shape_cast %241 : vector<1x256x256xbf16> to vector<256x256xbf16>
      %c0_98 = arith.constant 0 : index
      %c0_99 = arith.constant 0 : index
      %c0_100 = arith.constant 0 : index
      %243 = vector.load %arg22[%c0_98, %c0_99, %c0_100] : memref<2x1x256xf32, #tpu.memory_space<vmem>>, vector<1x1x256xf32>
      %244 = vector.shape_cast %243 : vector<1x1x256xf32> to vector<1x256xf32>
      %245 = arith.truncf %240 : vector<2x256xf32> to vector<2x256xbf16>
      %cst_101 = arith.constant dense<0.000000e+00> : vector<2x256xf32>
      %246 = tpu.matmul %245, %242, %cst_101 {dimension_numbers = #tpu.dot_dimension_numbers<[1], [0], [0], [1], [0, 0, 1, 1], [], []>} : vector<2x256xbf16>, vector<256x256xbf16>, vector<2x256xf32> -> vector<2x256xf32>
      %247 = vector.broadcast %244 : vector<1x256xf32> to vector<2x256xf32>
      %248 = arith.addf %246, %247 : vector<2x256xf32>
      %cst_102 = arith.constant 0.000000e+00 : f32
      %249 = vector.broadcast %cst_102 : f32 to vector<2x256xf32>
      %250 = arith.maximumf %248, %249 : vector<2x256xf32>
      %cst_103 = arith.constant 1.000000e-01 : f32
      %251 = vector.broadcast %cst_103 : f32 to vector<2x256xf32>
      %252 = arith.addf %250, %251 : vector<2x256xf32>
      %cst_104 = arith.constant dense<0.000000e+00> : vector<2xf32>
      %253 = vector.multi_reduction <add>, %252, %cst_104 [1] : vector<2x256xf32> to vector<2xf32>
      %254 = vector.shape_cast %253 : vector<2xf32> to vector<2x1xf32>
      %255 = vector.broadcast %254 : vector<2x1xf32> to vector<2x256xf32>
      %256 = arith.divf %252, %255 : vector<2x256xf32>
      %c0_105 = arith.constant 0 : index
      %c0_106 = arith.constant 0 : index
      %257 = vector.load %arg23[%c0_105, %c0_106] : memref<2x256xf32, #tpu.memory_space<vmem>>, vector<2x256xf32>
      tpu.vector_store %arg23[%c0_105, %c0_106], %256 {strides = array<i32>} : memref<2x256xf32, #tpu.memory_space<vmem>>, vector<2x256xf32>,
      %c1 = arith.constant 1 : index
      %c0_107 = arith.constant 0 : index
      %c0_108 = arith.constant 0 : index
      %258 = vector.load %arg26[%c1, %c0_107, %c0_108] : memref<2x128x256xbf16, #tpu.memory_space<vmem>>, vector<1x128x256xbf16>
      %259 = vector.shape_cast %258 : vector<1x128x256xbf16> to vector<128x256xbf16>
      %c1_109 = arith.constant 1 : index
      %c0_110 = arith.constant 0 : index
      %c0_111 = arith.constant 0 : index
      %260 = vector.load %arg20[%c1_109, %c0_110, %c0_111] : memref<2x1x256xf32, #tpu.memory_space<vmem>>, vector<1x1x256xf32>
      %261 = vector.shape_cast %260 : vector<1x1x256xf32> to vector<1x256xf32>
      %262 = arith.truncf %214 : vector<2x128xf32> to vector<2x128xbf16>
      %cst_112 = arith.constant dense<0.000000e+00> : vector<2x256xf32>
      %263 = tpu.matmul %262, %259, %cst_112 {dimension_numbers = #tpu.dot_dimension_numbers<[1], [0], [0], [1], [0, 0, 1, 1], [], []>} : vector<2x128xbf16>, vector<128x256xbf16>, vector<2x256xf32> -> vector<2x256xf32>
      %264 = vector.broadcast %261 : vector<1x256xf32> to vector<2x256xf32>
      %265 = arith.addf %263, %264 : vector<2x256xf32>
      %cst_113 = arith.constant 0.000000e+00 : f32
      %266 = vector.broadcast %cst_113 : f32 to vector<2x256xf32>
      %267 = arith.cmpf ogt, %265, %266 : vector<2x256xf32>
      %cst_114 = arith.constant 0.00999999977 : f32
      %268 = vector.broadcast %cst_114 : f32 to vector<2x256xf32>
      %269 = arith.mulf %268, %265 : vector<2x256xf32>
      %270 = arith.select %267, %265, %269 : vector<2x256xi1>, vector<2x256xf32>
      %c1_115 = arith.constant 1 : index
      %c0_116 = arith.constant 0 : index
      %c0_117 = arith.constant 0 : index
      %271 = vector.load %arg27[%c1_115, %c0_116, %c0_117] : memref<2x256x256xbf16, #tpu.memory_space<vmem>>, vector<1x256x256xbf16>
      %272 = vector.shape_cast %271 : vector<1x256x256xbf16> to vector<256x256xbf16>
      %c1_118 = arith.constant 1 : index
      %c0_119 = arith.constant 0 : index
      %c0_120 = arith.constant 0 : index
      %273 = vector.load %arg21[%c1_118, %c0_119, %c0_120] : memref<2x1x256xf32, #tpu.memory_space<vmem>>, vector<1x1x256xf32>
      %274 = vector.shape_cast %273 : vector<1x1x256xf32> to vector<1x256xf32>
      %275 = arith.truncf %270 : vector<2x256xf32> to vector<2x256xbf16>
      %cst_121 = arith.constant dense<0.000000e+00> : vector<2x256xf32>
      %276 = tpu.matmul %275, %272, %cst_121 {dimension_numbers = #tpu.dot_dimension_numbers<[1], [0], [0], [1], [0, 0, 1, 1], [], []>} : vector<2x256xbf16>, vector<256x256xbf16>, vector<2x256xf32> -> vector<2x256xf32>
      %277 = vector.broadcast %274 : vector<1x256xf32> to vector<2x256xf32>
      %278 = arith.addf %276, %277 : vector<2x256xf32>
      %cst_122 = arith.constant 0.000000e+00 : f32
      %279 = vector.broadcast %cst_122 : f32 to vector<2x256xf32>
      %280 = arith.cmpf ogt, %278, %279 : vector<2x256xf32>
      %cst_123 = arith.constant 0.00999999977 : f32
      %281 = vector.broadcast %cst_123 : f32 to vector<2x256xf32>
      %282 = arith.mulf %281, %278 : vector<2x256xf32>
      %283 = arith.select %280, %278, %282 : vector<2x256xi1>, vector<2x256xf32>
      %c1_124 = arith.constant 1 : index
      %c0_125 = arith.constant 0 : index
      %c0_126 = arith.constant 0 : index
      %284 = vector.load %arg28[%c1_124, %c0_125, %c0_126] : memref<2x256x256xbf16, #tpu.memory_space<vmem>>, vector<1x256x256xbf16>
      %285 = vector.shape_cast %284 : vector<1x256x256xbf16> to vector<256x256xbf16>
      %c1_127 = arith.constant 1 : index
      %c0_128 = arith.constant 0 : index
      %c0_129 = arith.constant 0 : index
      %286 = vector.load %arg22[%c1_127, %c0_128, %c0_129] : memref<2x1x256xf32, #tpu.memory_space<vmem>>, vector<1x1x256xf32>
      %287 = vector.shape_cast %286 : vector<1x1x256xf32> to vector<1x256xf32>
      %288 = arith.truncf %283 : vector<2x256xf32> to vector<2x256xbf16>
      %cst_130 = arith.constant dense<0.000000e+00> : vector<2x256xf32>
      %289 = tpu.matmul %288, %285, %cst_130 {dimension_numbers = #tpu.dot_dimension_numbers<[1], [0], [0], [1], [0, 0, 1, 1], [], []>} : vector<2x256xbf16>, vector<256x256xbf16>, vector<2x256xf32> -> vector<2x256xf32>
      %290 = vector.broadcast %287 : vector<1x256xf32> to vector<2x256xf32>
      %291 = arith.addf %289, %290 : vector<2x256xf32>
      %cst_131 = arith.constant dense<0xFF800000> : vector<2xf32>
      %292 = vector.multi_reduction <maximumf>, %291, %cst_131 [1] : vector<2x256xf32> to vector<2xf32>
      %293 = vector.shape_cast %292 : vector<2xf32> to vector<2x1xf32>
      %294 = vector.broadcast %293 : vector<2x1xf32> to vector<2x256xf32>
      %295 = arith.subf %291, %294 : vector<2x256xf32>
      %296 = math.exp %295 : vector<2x256xf32>
      %cst_132 = arith.constant dense<0.000000e+00> : vector<2xf32>
      %297 = vector.multi_reduction <add>, %296, %cst_132 [1] : vector<2x256xf32> to vector<2xf32>
      %298 = vector.shape_cast %297 : vector<2xf32> to vector<2x1xf32>
      %299 = vector.broadcast %298 : vector<2x1xf32> to vector<2x256xf32>
      %300 = arith.divf %296, %299 : vector<2x256xf32>
      %c0_133 = arith.constant 0 : index
      %c0_134 = arith.constant 0 : index
      %301 = vector.load %arg24[%c0_133, %c0_134] : memref<2x256xf32, #tpu.memory_space<vmem>>, vector<2x256xf32>
      tpu.vector_store %arg24[%c0_133, %c0_134], %300 {strides = array<i32>} : memref<2x256xf32, #tpu.memory_space<vmem>>, vector<2x256xf32>,
    } else {
    }
    return
  }
  func.func @transform_0(%arg0: i32) -> (i32, i32) {
    %c0_i32 = arith.constant 0 : i32
    %c0_i32_0 = arith.constant 0 : i32
    %c0_i32_1 = arith.constant 0 : i32
    return %c0_i32, %c0_i32_0 : i32, i32
  }
  func.func @transform_1(%arg0: i32) -> (i32, i32) {
    %c0_i32 = arith.constant 0 : i32
    %c0_i32_0 = arith.constant 0 : i32
    %c0_i32_1 = arith.constant 0 : i32
    return %c0_i32, %c0_i32_0 : i32, i32
  }
  func.func @transform_2(%arg0: i32) -> (i32, i32) {
    %c0_i32 = arith.constant 0 : i32
    %c0_i32_0 = arith.constant 0 : i32
    %c0_i32_1 = arith.constant 0 : i32
    return %c0_i32, %c0_i32_0 : i32, i32
  }
  func.func @transform_3(%arg0: i32) -> (i32, i32) {
    %c0_i32 = arith.constant 0 : i32
    %c0_i32_0 = arith.constant 0 : i32
    %c0_i32_1 = arith.constant 0 : i32
    return %c0_i32, %c0_i32_0 : i32, i32
  }
  func.func @transform_4(%arg0: i32) -> (i32, i32, i32) {
    %c0_i32 = arith.constant 0 : i32
    %c0_i32_0 = arith.constant 0 : i32
    %c0_i32_1 = arith.constant 0 : i32
    return %arg0, %c0_i32, %c0_i32_0 : i32, i32, i32
  }
  func.func @transform_5(%arg0: i32) -> (i32, i32, i32) {
    %c0_i32 = arith.constant 0 : i32
    %c0_i32_0 = arith.constant 0 : i32
    %c0_i32_1 = arith.constant 0 : i32
    return %arg0, %c0_i32, %c0_i32_0 : i32, i32, i32
  }
  func.func @transform_6(%arg0: i32) -> (i32, i32, i32) {
    %c0_i32 = arith.constant 0 : i32
    %c0_i32_0 = arith.constant 0 : i32
    %c0_i32_1 = arith.constant 0 : i32
    return %arg0, %c0_i32, %c0_i32_0 : i32, i32, i32
  }
  func.func @transform_7(%arg0: i32) -> (i32, i32, i32) {
    %c0_i32 = arith.constant 0 : i32
    %c0_i32_0 = arith.constant 0 : i32
    %c0_i32_1 = arith.constant 0 : i32
    return %arg0, %c0_i32, %c0_i32_0 : i32, i32, i32
  }
  func.func @transform_8(%arg0: i32) -> (i32, i32, i32) {
    %c0_i32 = arith.constant 0 : i32
    %c0_i32_0 = arith.constant 0 : i32
    %c0_i32_1 = arith.constant 0 : i32
    return %arg0, %c0_i32, %c0_i32_0 : i32, i32, i32
  }
  func.func @transform_9(%arg0: i32) -> (i32, i32, i32) {
    %c0_i32 = arith.constant 0 : i32
    %c0_i32_0 = arith.constant 0 : i32
    %c0_i32_1 = arith.constant 0 : i32
    return %arg0, %c0_i32, %c0_i32_0 : i32, i32, i32
  }
  func.func @transform_10(%arg0: i32) -> (i32, i32, i32) {
    %c0_i32 = arith.constant 0 : i32
    %c0_i32_0 = arith.constant 0 : i32
    %c0_i32_1 = arith.constant 0 : i32
    return %arg0, %c0_i32, %c0_i32_0 : i32, i32, i32
  }
  func.func @transform_11(%arg0: i32) -> (i32, i32, i32) {
    %c0_i32 = arith.constant 0 : i32
    %c0_i32_0 = arith.constant 0 : i32
    %c0_i32_1 = arith.constant 0 : i32
    return %arg0, %c0_i32, %c0_i32_0 : i32, i32, i32
  }
  func.func @transform_12(%arg0: i32) -> (i32, i32, i32) {
    %c0_i32 = arith.constant 0 : i32
    %c0_i32_0 = arith.constant 0 : i32
    %c0_i32_1 = arith.constant 0 : i32
    return %arg0, %c0_i32, %c0_i32_0 : i32, i32, i32
  }
  func.func @transform_13(%arg0: i32) -> (i32, i32, i32) {
    %c0_i32 = arith.constant 0 : i32
    %c0_i32_0 = arith.constant 0 : i32
    %c0_i32_1 = arith.constant 0 : i32
    return %arg0, %c0_i32, %c0_i32_0 : i32, i32, i32
  }
  func.func @transform_14(%arg0: i32) -> (i32, i32, i32) {
    %c0_i32 = arith.constant 0 : i32
    %c0_i32_0 = arith.constant 0 : i32
    %c0_i32_1 = arith.constant 0 : i32
    return %arg0, %c0_i32, %c0_i32_0 : i32, i32, i32
  }
  func.func @transform_15(%arg0: i32) -> (i32, i32, i32) {
    %c0_i32 = arith.constant 0 : i32
    %c0_i32_0 = arith.constant 0 : i32
    %c0_i32_1 = arith.constant 0 : i32
    return %arg0, %c0_i32, %c0_i32_0 : i32, i32, i32
  }
  func.func @transform_19(%arg0: i32) -> (i32, i32, i32) {
    %c0_i32 = arith.constant 0 : i32
    %c0_i32_0 = arith.constant 0 : i32
    %c0_i32_1 = arith.constant 0 : i32
    %c0_i32_2 = arith.constant 0 : i32
    return %c0_i32, %c0_i32_0, %c0_i32_1 : i32, i32, i32
  }
  func.func @transform_20(%arg0: i32) -> (i32, i32, i32) {
    %c0_i32 = arith.constant 0 : i32
    %c0_i32_0 = arith.constant 0 : i32
    %c0_i32_1 = arith.constant 0 : i32
    %c0_i32_2 = arith.constant 0 : i32
    return %c0_i32, %c0_i32_0, %c0_i32_1 : i32, i32, i32
  }
  func.func @transform_21(%arg0: i32) -> (i32, i32, i32) {
    %c0_i32 = arith.constant 0 : i32
    %c0_i32_0 = arith.constant 0 : i32
    %c0_i32_1 = arith.constant 0 : i32
    %c0_i32_2 = arith.constant 0 : i32
    return %c0_i32, %c0_i32_0, %c0_i32_1 : i32, i32, i32
  }
  func.func @transform_22(%arg0: i32) -> (i32, i32) {
    %c0_i32 = arith.constant 0 : i32
    %c0_i32_0 = arith.constant 0 : i32
    %c0_i32_1 = arith.constant 0 : i32
    return %c0_i32, %c0_i32_0 : i32, i32
  }
  func.func @transform_23(%arg0: i32) -> (i32, i32) {
    %c0_i32 = arith.constant 0 : i32
    %c0_i32_0 = arith.constant 0 : i32
    %c0_i32_1 = arith.constant 0 : i32
    return %c0_i32, %c0_i32_0 : i32, i32
  }
}

</mosaic_0001>

<llo_original>
// kernel: vit_forward.1
$region0: #{vit_forward.1}
  #allocation0 [shape = 'u32[]', space=smem, size = 0x4, offset = 0x4, fixed_abs, tag = 'smem constant byte address 0x4 - core index']
  #allocation1 [shape = 'u32[144,128]{1,0:T(1,128)}', space=vmem, size = 0x12000, scoped, tag = 'internal scratch']
  #allocation2 [shape = 'f32[32,128]{1,0:T(8,128)}', space=vmem, size = 0x4000, scoped, tag = 'scratch operand']
  #allocation3 [shape = 'bf16[2,128,256]{2,1,0:T(16,128)(2,1)}', space=vmem, size = 0x20000, scoped, tag = 'scratch operand']
  #allocation4 [shape = 'bf16[2,256,256]{2,1,0:T(16,128)(2,1)}', space=vmem, size = 0x40000, scoped, tag = 'scratch operand']
  #allocation5 [shape = 'bf16[2,256,256]{2,1,0:T(16,128)(2,1)}', space=vmem, size = 0x40000, scoped, tag = 'scratch operand']
  #allocation6 [shape = 's32[3]{0}', space=sflag, size = 0xc, scoped, tag = 'scratch operand']
  #allocation11 [shape = 's32[]', space=sflag, size = 0x4, offset = 0, fixed_abs, tag = 'sflag constant byte address 0x0 - dummy sync flag']
  #allocation13 [shape = 's32[]', space=sflag, size = 0x4, offset = 0, fixed_abs, tag = 'sflag constant byte address 0x0 - dummy sync flag']
  #allocation15 [shape = 's32[]', space=sflag, size = 0x4, offset = 0, fixed_abs, tag = 'sflag constant byte address 0x0 - dummy sync flag']
  %s0 = inlined_call_operand.vmem [shape: f32[32,64], index: 0, kind: input, shape index: {}]
  %s1 = inlined_call_operand.vmem [shape: f32[16,128], index: 1, kind: input, shape index: {}]
  %s2 = inlined_call_operand.vmem [shape: bf16[64,128], index: 2, kind: input, shape index: {}]
  %s3 = inlined_call_operand.vmem [shape: f32[1,128], index: 3, kind: input, shape index: {}]
  %s4 = inlined_call_operand.vmem [shape: bf16[4,128,384], index: 4, kind: input, shape index: {}]
  %s5 = inlined_call_operand.vmem [shape: f32[4,1,384], index: 5, kind: input, shape index: {}]
  %s6 = inlined_call_operand.vmem [shape: bf16[4,128,128], index: 6, kind: input, shape index: {}]
  %s7 = inlined_call_operand.vmem [shape: f32[4,1,128], index: 7, kind: input, shape index: {}]
  %s8 = inlined_call_operand.vmem [shape: f32[4,1,128], index: 8, kind: input, shape index: {}]
  %s9 = inlined_call_operand.vmem [shape: f32[4,1,128], index: 9, kind: input, shape index: {}]
  %s10 = inlined_call_operand.vmem [shape: bf16[4,128,256], index: 10, kind: input, shape index: {}]
  %s11 = inlined_call_operand.vmem [shape: f32[4,1,256], index: 11, kind: input, shape index: {}]
  %s12 = inlined_call_operand.vmem [shape: bf16[4,256,128], index: 12, kind: input, shape index: {}]
  %s13 = inlined_call_operand.vmem [shape: f32[4,1,128], index: 13, kind: input, shape index: {}]
  %s14 = inlined_call_operand.vmem [shape: f32[4,1,128], index: 14, kind: input, shape index: {}]
  %s15 = inlined_call_operand.vmem [shape: f32[4,1,128], index: 15, kind: input, shape index: {}]
  %s16 = inlined_call_operand.hbm [shape: bf16[2,128,256], index: 16, kind: input, shape index: {}]
  %s17 = inlined_call_operand.hbm [shape: bf16[2,256,256], index: 17, kind: input, shape index: {}]
  %s18 = inlined_call_operand.hbm [shape: bf16[2,256,256], index: 18, kind: input, shape index: {}]
  %s19 = inlined_call_operand.vmem [shape: f32[2,1,256], index: 19, kind: input, shape index: {}]
  %s20 = inlined_call_operand.vmem [shape: f32[2,1,256], index: 20, kind: input, shape index: {}]
  %s21 = inlined_call_operand.vmem [shape: f32[2,1,256], index: 21, kind: input, shape index: {}]
  %s22 = inlined_call_operand.hbm [shape: f32[2,256], index: 22, kind: output, shape index: {0}]
  %s23 = inlined_call_operand.hbm [shape: f32[2,256], index: 23, kind: output, shape index: {1}]
  %24 = xla_tuple %s22, %s23
  %s25 = sld [smem:[#allocation0]]
  $region125: #{vit_forward.1} parent=0
    _
  %s27 = ssub.s32 1, %s25
  %s28 = scalar_select 0, %s27, %s25
  $region1: #{vit_forward.1} parent=0
    #allocation7 [shape = 'u8[2048]{0}', space=vmem, size = 0x800, scoped, tag = 'output window, operand 0, single buffered']
    #allocation8 [shape = 's32[2]{0}', space=sflag, size = 0x8, scoped, tag = 'scoped memory for vit_forward.1']
    #allocation9 [shape = 'u8[2048]{0}', space=vmem, size = 0x800, scoped, tag = 'output window, operand 1, single buffered']
    #allocation10 [shape = 's32[1]{0}', space=sflag, size = 0x4, scoped, tag = 'scoped memory for vit_forward.1']
    %29 = vsyncpa [#allocation8], 0
    %30 = vsyncpa [#allocation10], 0
    loop: start=0, step=1, limit=6
    $region2: #{vit_forward.1} parent=1 // loop_pre_header
      _
    $region3: #{vit_forward.1} parent=1 // loop_header
      %s32 = sphi 0, %s36
      %p33 = scmp.ge.s32.totalorder %s32, 6
      %s40 = sphi 0, %s40
      %s42 = sphi 0, %s40
      %s43 = sphi 0, %s42
      %s57 = sphi 0, %s43
      %s61 = sphi 0, %s61
      %s63 = sphi 0, %s61
      %s64 = sphi 0, %s63
      %s78 = sphi 0, %s64
      %s82 = sphi 0, %s82
      %s84 = sphi 0, %s82
      %s85 = sphi 0, %s84
      %s99 = sphi 0, %s85
      %s103 = sphi 0, %s103
      %s105 = sphi 0, %s103
      %s106 = sphi 0, %s105
      %s120 = sphi 0, %s106
      %s126 = sphi 0, %s128
      %s129 = sphi 0, %s126
      %s130 = sphi 0, %s129
      %s146 = sphi 0, %s130
      %s152 = sphi 0, %s154
      %s155 = sphi 0, %s152
      %s156 = sphi 0, %s155
      %s172 = sphi 0, %s156
      %s178 = sphi 0, %s180
      %s181 = sphi 0, %s178
      %s182 = sphi 0, %s181
      %s198 = sphi 0, %s182
      %s204 = sphi 0, %s206
      %s207 = sphi 0, %s204
      %s208 = sphi 0, %s207
      %s224 = sphi 0, %s208
      %s230 = sphi 0, %s232
      %s233 = sphi 0, %s230
      %s234 = sphi 0, %s233
      %s250 = sphi 0, %s234
      %s256 = sphi 0, %s258
      %s259 = sphi 0, %s256
      %s260 = sphi 0, %s259
      %s276 = sphi 0, %s260
      %s282 = sphi 0, %s284
      %s285 = sphi 0, %s282
      %s286 = sphi 0, %s285
      %s302 = sphi 0, %s286
      %s308 = sphi 0, %s310
      %s311 = sphi 0, %s308
      %s312 = sphi 0, %s311
      %s328 = sphi 0, %s312
      %s334 = sphi 0, %s336
      %s337 = sphi 0, %s334
      %s338 = sphi 0, %s337
      %s354 = sphi 0, %s338
      %s360 = sphi 0, %s362
      %s363 = sphi 0, %s360
      %s364 = sphi 0, %s363
      %s380 = sphi 0, %s364
      %s386 = sphi 0, %s388
      %s389 = sphi 0, %s386
      %s390 = sphi 0, %s389
      %s406 = sphi 0, %s390
      %s412 = sphi 0, %s414
      %s415 = sphi 0, %s412
      %s416 = sphi 0, %s415
      %s432 = sphi 0, %s416
      %s436 = sphi 0, %s436
      %s438 = sphi 0, %s436
      %s439 = sphi 0, %s438
      %s453 = sphi 0, %s439
      %s457 = sphi 0, %s457
      %s459 = sphi 0, %s457
      %s460 = sphi 0, %s459
      %s474 = sphi 0, %s460
      %s478 = sphi 0, %s478
      %s480 = sphi 0, %s478
      %s481 = sphi 0, %s480
      %s495 = sphi 0, %s481
      %s499 = sphi 0, %s499
      %s501 = sphi 0, %s499
      %s502 = sphi 0, %s501
      %s516 = sphi 0, %s502
      %s520 = sphi 0, %s520
      %s522 = sphi 0, %s520
      %s523 = sphi 0, %s522
      %s537 = sphi 0, %s523
    $region4: #{vit_forward.1} parent=1 // loop_header_branch
      %35 = sbr.rel (%p33) target = $region8
    $region5: #{vit_forward.1} parent=1 // loop_body
      %s37 = ssub.s32 %s32, 1
      %s38 = ssub.s32 %s32, 2
      %s39 = sadd.s32 %s32, 1
      %s41 = sadd.s32 %s40, 1
      %p44 = scmp.eq.s32.totalorder %s32, 3
      %p45 = scmp.ne.s32.totalorder %s40, %s42
      %p46 = scmp.eq.s32.totalorder %s32, 0
      %p47 = por %p45, %p46
      %p48 = scmp.ne.s32.totalorder %s40, %s42
      %p49 = scmp.eq.s32.totalorder %s37, 3
      %p50 = por %p48, %p49
      %p51 = scmp.ne.s32.totalorder %s42, %s43
      %p52 = scmp.eq.s32.totalorder %s37, 0
      %p53 = por %p51, %p52
      %p54 = scmp.ne.s32.totalorder %s42, %s43
      %p55 = scmp.eq.s32.totalorder %s38, 3
      %p56 = por %p54, %p55
      %p58 = scmp.ne.s32.totalorder %s43, %s57
      %p59 = scmp.eq.s32.totalorder %s38, 0
      %p60 = por %p58, %p59
      %s62 = sadd.s32 %s61, 1
      %p65 = scmp.eq.s32.totalorder %s32, 3
      %p66 = scmp.ne.s32.totalorder %s61, %s63
      %p67 = scmp.eq.s32.totalorder %s32, 0
      %p68 = por %p66, %p67
      %p69 = scmp.ne.s32.totalorder %s61, %s63
      %p70 = scmp.eq.s32.totalorder %s37, 3
      %p71 = por %p69, %p70
      %p72 = scmp.ne.s32.totalorder %s63, %s64
      %p73 = scmp.eq.s32.totalorder %s37, 0
      %p74 = por %p72, %p73
      %p75 = scmp.ne.s32.totalorder %s63, %s64
      %p76 = scmp.eq.s32.totalorder %s38, 3
      %p77 = por %p75, %p76
      %p79 = scmp.ne.s32.totalorder %s64, %s78
      %p80 = scmp.eq.s32.totalorder %s38, 0
      %p81 = por %p79, %p80
      %s83 = sadd.s32 %s82, 1
      %p86 = scmp.eq.s32.totalorder %s32, 3
      %p87 = scmp.ne.s32.totalorder %s82, %s84
      %p88 = scmp.eq.s32.totalorder %s32, 0
      %p89 = por %p87, %p88
      %p90 = scmp.ne.s32.totalorder %s82, %s84
      %p91 = scmp.eq.s32.totalorder %s37, 3
      %p92 = por %p90, %p91
      %p93 = scmp.ne.s32.totalorder %s84, %s85
      %p94 = scmp.eq.s32.totalorder %s37, 0
      %p95 = por %p93, %p94
      %p96 = scmp.ne.s32.totalorder %s84, %s85
      %p97 = scmp.eq.s32.totalorder %s38, 3
      %p98 = por %p96, %p97
      %p100 = scmp.ne.s32.totalorder %s85, %s99
      %p101 = scmp.eq.s32.totalorder %s38, 0
      %p102 = por %p100, %p101
      %s104 = sadd.s32 %s103, 1
      %p107 = scmp.eq.s32.totalorder %s32, 3
      %p108 = scmp.ne.s32.totalorder %s103, %s105
      %p109 = scmp.eq.s32.totalorder %s32, 0
      %p110 = por %p108, %p109
      %p111 = scmp.ne.s32.totalorder %s103, %s105
      %p112 = scmp.eq.s32.totalorder %s37, 3
      %p113 = por %p111, %p112
      %p114 = scmp.ne.s32.totalorder %s105, %s106
      %p115 = scmp.eq.s32.totalorder %s37, 0
      %p116 = por %p114, %p115
      %p117 = scmp.ne.s32.totalorder %s105, %s106
      %p118 = scmp.eq.s32.totalorder %s38, 3
      %p119 = por %p117, %p118
      %p121 = scmp.ne.s32.totalorder %s106, %s120
      %p122 = scmp.eq.s32.totalorder %s38, 0
      %p123 = por %p121, %p122
      %s124 = ssub.s32 %s32, %s39
      %p125 = scmp.eq.s32.totalorder %s124, 0
      %s127 = sadd.s32 %s126, 1
      %s128 = scalar_select %p125, %s126, %s127
      %p131 = pneg %p125
      %p132 = scmp.eq.s32.totalorder %s32, 3
      %p133 = por %p131, %p132
      %p134 = scmp.ne.s32.totalorder %s126, %s129
      %p135 = scmp.eq.s32.totalorder %s32, 0
      %p136 = por %p134, %p135
      %p137 = scmp.ne.s32.totalorder %s126, %s129
      %p138 = scmp.eq.s32.totalorder %s37, 3
      %p139 = por %p137, %p138
      %p140 = scmp.ne.s32.totalorder %s129, %s130
      %p141 = scmp.eq.s32.totalorder %s37, 0
      %p142 = por %p140, %p141
      %p143 = scmp.ne.s32.totalorder %s129, %s130
      %p144 = scmp.eq.s32.totalorder %s38, 3
      %p145 = por %p143, %p144
      %p147 = scmp.ne.s32.totalorder %s130, %s146
      %p148 = scmp.eq.s32.totalorder %s38, 0
      %p149 = por %p147, %p148
      %s150 = ssub.s32 %s32, %s39
      %p151 = scmp.eq.s32.totalorder %s150, 0
      %s153 = sadd.s32 %s152, 1
      %s154 = scalar_select %p151, %s152, %s153
      %p157 = pneg %p151
      %p158 = scmp.eq.s32.totalorder %s32, 3
      %p159 = por %p157, %p158
      %p160 = scmp.ne.s32.totalorder %s152, %s155
      %p161 = scmp.eq.s32.totalorder %s32, 0
      %p162 = por %p160, %p161
      %p163 = scmp.ne.s32.totalorder %s152, %s155
      %p164 = scmp.eq.s32.totalorder %s37, 3
      %p165 = por %p163, %p164
      %p166 = scmp.ne.s32.totalorder %s155, %s156
      %p167 = scmp.eq.s32.totalorder %s37, 0
      %p168 = por %p166, %p167
      %p169 = scmp.ne.s32.totalorder %s155, %s156
      %p170 = scmp.eq.s32.totalorder %s38, 3
      %p171 = por %p169, %p170
      %p173 = scmp.ne.s32.totalorder %s156, %s172
      %p174 = scmp.eq.s32.totalorder %s38, 0
      %p175 = por %p173, %p174
      %s176 = ssub.s32 %s32, %s39
      %p177 = scmp.eq.s32.totalorder %s176, 0
      %s179 = sadd.s32 %s178, 1
      %s180 = scalar_select %p177, %s178, %s179
      %p183 = pneg %p177
      %p184 = scmp.eq.s32.totalorder %s32, 3
      %p185 = por %p183, %p184
      %p186 = scmp.ne.s32.totalorder %s178, %s181
      %p187 = scmp.eq.s32.totalorder %s32, 0
      %p188 = por %p186, %p187
      %p189 = scmp.ne.s32.totalorder %s178, %s181
      %p190 = scmp.eq.s32.totalorder %s37, 3
      %p191 = por %p189, %p190
      %p192 = scmp.ne.s32.totalorder %s181, %s182
      %p193 = scmp.eq.s32.totalorder %s37, 0
      %p194 = por %p192, %p193
      %p195 = scmp.ne.s32.totalorder %s181, %s182
      %p196 = scmp.eq.s32.totalorder %s38, 3
      %p197 = por %p195, %p196
      %p199 = scmp.ne.s32.totalorder %s182, %s198
      %p200 = scmp.eq.s32.totalorder %s38, 0
      %p201 = por %p199, %p200
      %s202 = ssub.s32 %s32, %s39
      %p203 = scmp.eq.s32.totalorder %s202, 0
      %s205 = sadd.s32 %s204, 1
      %s206 = scalar_select %p203, %s204, %s205
      %p209 = pneg %p203
      %p210 = scmp.eq.s32.totalorder %s32, 3
      %p211 = por %p209, %p210
      %p212 = scmp.ne.s32.totalorder %s204, %s207
      %p213 = scmp.eq.s32.totalorder %s32, 0
      %p214 = por %p212, %p213
      %p215 = scmp.ne.s32.totalorder %s204, %s207
      %p216 = scmp.eq.s32.totalorder %s37, 3
      %p217 = por %p215, %p216
      %p218 = scmp.ne.s32.totalorder %s207, %s208
      %p219 = scmp.eq.s32.totalorder %s37, 0
      %p220 = por %p218, %p219
      %p221 = scmp.ne.s32.totalorder %s207, %s208
      %p222 = scmp.eq.s32.totalorder %s38, 3
      %p223 = por %p221, %p222
      %p225 = scmp.ne.s32.totalorder %s208, %s224
      %p226 = scmp.eq.s32.totalorder %s38, 0
      %p227 = por %p225, %p226
      %s228 = ssub.s32 %s32, %s39
      %p229 = scmp.eq.s32.totalorder %s228, 0
      %s231 = sadd.s32 %s230, 1
      %s232 = scalar_select %p229, %s230, %s231
      %p235 = pneg %p229
      %p236 = scmp.eq.s32.totalorder %s32, 3
      %p237 = por %p235, %p236
      %p238 = scmp.ne.s32.totalorder %s230, %s233
      %p239 = scmp.eq.s32.totalorder %s32, 0
      %p240 = por %p238, %p239
      %p241 = scmp.ne.s32.totalorder %s230, %s233
      %p242 = scmp.eq.s32.totalorder %s37, 3
      %p243 = por %p241, %p242
      %p244 = scmp.ne.s32.totalorder %s233, %s234
      %p245 = scmp.eq.s32.totalorder %s37, 0
      %p246 = por %p244, %p245
      %p247 = scmp.ne.s32.totalorder %s233, %s234
      %p248 = scmp.eq.s32.totalorder %s38, 3
      %p249 = por %p247, %p248
      %p251 = scmp.ne.s32.totalorder %s234, %s250
      %p252 = scmp.eq.s32.totalorder %s38, 0
      %p253 = por %p251, %p252
      %s254 = ssub.s32 %s32, %s39
      %p255 = scmp.eq.s32.totalorder %s254, 0
      %s257 = sadd.s32 %s256, 1
      %s258 = scalar_select %p255, %s256, %s257
      %p261 = pneg %p255
      %p262 = scmp.eq.s32.totalorder %s32, 3
      %p263 = por %p261, %p262
      %p264 = scmp.ne.s32.totalorder %s256, %s259
      %p265 = scmp.eq.s32.totalorder %s32, 0
      %p266 = por %p264, %p265
      %p267 = scmp.ne.s32.totalorder %s256, %s259
      %p268 = scmp.eq.s32.totalorder %s37, 3
      %p269 = por %p267, %p268
      %p270 = scmp.ne.s32.totalorder %s259, %s260
      %p271 = scmp.eq.s32.totalorder %s37, 0
      %p272 = por %p270, %p271
      %p273 = scmp.ne.s32.totalorder %s259, %s260
      %p274 = scmp.eq.s32.totalorder %s38, 3
      %p275 = por %p273, %p274
      %p277 = scmp.ne.s32.totalorder %s260, %s276
      %p278 = scmp.eq.s32.totalorder %s38, 0
      %p279 = por %p277, %p278
      %s280 = ssub.s32 %s32, %s39
      %p281 = scmp.eq.s32.totalorder %s280, 0
      %s283 = sadd.s32 %s282, 1
      %s284 = scalar_select %p281, %s282, %s283
      %p287 = pneg %p281
      %p288 = scmp.eq.s32.totalorder %s32, 3
      %p289 = por %p287, %p288
      %p290 = scmp.ne.s32.totalorder %s282, %s285
      %p291 = scmp.eq.s32.totalorder %s32, 0
      %p292 = por %p290, %p291
      %p293 = scmp.ne.s32.totalorder %s282, %s285
      %p294 = scmp.eq.s32.totalorder %s37, 3
      %p295 = por %p293, %p294
      %p296 = scmp.ne.s32.totalorder %s285, %s286
      %p297 = scmp.eq.s32.totalorder %s37, 0
      %p298 = por %p296, %p297
      %p299 = scmp.ne.s32.totalorder %s285, %s286
      %p300 = scmp.eq.s32.totalorder %s38, 3
      %p301 = por %p299, %p300
      %p303 = scmp.ne.s32.totalorder %s286, %s302
      %p304 = scmp.eq.s32.totalorder %s38, 0
      %p305 = por %p303, %p304
      %s306 = ssub.s32 %s32, %s39
      %p307 = scmp.eq.s32.totalorder %s306, 0
      %s309 = sadd.s32 %s308, 1
      %s310 = scalar_select %p307, %s308, %s309
      %p313 = pneg %p307
      %p314 = scmp.eq.s32.totalorder %s32, 3
      %p315 = por %p313, %p314
      %p316 = scmp.ne.s32.totalorder %s308, %s311
      %p317 = scmp.eq.s32.totalorder %s32, 0
      %p318 = por %p316, %p317
      %p319 = scmp.ne.s32.totalorder %s308, %s311
      %p320 = scmp.eq.s32.totalorder %s37, 3
      %p321 = por %p319, %p320
      %p322 = scmp.ne.s32.totalorder %s311, %s312
      %p323 = scmp.eq.s32.totalorder %s37, 0
      %p324 = por %p322, %p323
      %p325 = scmp.ne.s32.totalorder %s311, %s312
      %p326 = scmp.eq.s32.totalorder %s38, 3
      %p327 = por %p325, %p326
      %p329 = scmp.ne.s32.totalorder %s312, %s328
      %p330 = scmp.eq.s32.totalorder %s38, 0
      %p331 = por %p329, %p330
      %s332 = ssub.s32 %s32, %s39
      %p333 = scmp.eq.s32.totalorder %s332, 0
      %s335 = sadd.s32 %s334, 1
      %s336 = scalar_select %p333, %s334, %s335
      %p339 = pneg %p333
      %p340 = scmp.eq.s32.totalorder %s32, 3
      %p341 = por %p339, %p340
      %p342 = scmp.ne.s32.totalorder %s334, %s337
      %p343 = scmp.eq.s32.totalorder %s32, 0
      %p344 = por %p342, %p343
      %p345 = scmp.ne.s32.totalorder %s334, %s337
      %p346 = scmp.eq.s32.totalorder %s37, 3
      %p347 = por %p345, %p346
      %p348 = scmp.ne.s32.totalorder %s337, %s338
      %p349 = scmp.eq.s32.totalorder %s37, 0
      %p350 = por %p348, %p349
      %p351 = scmp.ne.s32.totalorder %s337, %s338
      %p352 = scmp.eq.s32.totalorder %s38, 3
      %p353 = por %p351, %p352
      %p355 = scmp.ne.s32.totalorder %s338, %s354
      %p356 = scmp.eq.s32.totalorder %s38, 0
      %p357 = por %p355, %p356
      %s358 = ssub.s32 %s32, %s39
      %p359 = scmp.eq.s32.totalorder %s358, 0
      %s361 = sadd.s32 %s360, 1
      %s362 = scalar_select %p359, %s360, %s361
      %p365 = pneg %p359
      %p366 = scmp.eq.s32.totalorder %s32, 3
      %p367 = por %p365, %p366
      %p368 = scmp.ne.s32.totalorder %s360, %s363
      %p369 = scmp.eq.s32.totalorder %s32, 0
      %p370 = por %p368, %p369
      %p371 = scmp.ne.s32.totalorder %s360, %s363
      %p372 = scmp.eq.s32.totalorder %s37, 3
      %p373 = por %p371, %p372
      %p374 = scmp.ne.s32.totalorder %s363, %s364
      %p375 = scmp.eq.s32.totalorder %s37, 0
      %p376 = por %p374, %p375
      %p377 = scmp.ne.s32.totalorder %s363, %s364
      %p378 = scmp.eq.s32.totalorder %s38, 3
      %p379 = por %p377, %p378
      %p381 = scmp.ne.s32.totalorder %s364, %s380
      %p382 = scmp.eq.s32.totalorder %s38, 0
      %p383 = por %p381, %p382
      %s384 = ssub.s32 %s32, %s39
      %p385 = scmp.eq.s32.totalorder %s384, 0
      %s387 = sadd.s32 %s386, 1
      %s388 = scalar_select %p385, %s386, %s387
      %p391 = pneg %p385
      %p392 = scmp.eq.s32.totalorder %s32, 3
      %p393 = por %p391, %p392
      %p394 = scmp.ne.s32.totalorder %s386, %s389
      %p395 = scmp.eq.s32.totalorder %s32, 0
      %p396 = por %p394, %p395
      %p397 = scmp.ne.s32.totalorder %s386, %s389
      %p398 = scmp.eq.s32.totalorder %s37, 3
      %p399 = por %p397, %p398
      %p400 = scmp.ne.s32.totalorder %s389, %s390
      %p401 = scmp.eq.s32.totalorder %s37, 0
      %p402 = por %p400, %p401
      %p403 = scmp.ne.s32.totalorder %s389, %s390
      %p404 = scmp.eq.s32.totalorder %s38, 3
      %p405 = por %p403, %p404
      %p407 = scmp.ne.s32.totalorder %s390, %s406
      %p408 = scmp.eq.s32.totalorder %s38, 0
      %p409 = por %p407, %p408
      %s410 = ssub.s32 %s32, %s39
      %p411 = scmp.eq.s32.totalorder %s410, 0
      %s413 = sadd.s32 %s412, 1
      %s414 = scalar_select %p411, %s412, %s413
      %p417 = pneg %p411
      %p418 = scmp.eq.s32.totalorder %s32, 3
      %p419 = por %p417, %p418
      %p420 = scmp.ne.s32.totalorder %s412, %s415
      %p421 = scmp.eq.s32.totalorder %s32, 0
      %p422 = por %p420, %p421
      %p423 = scmp.ne.s32.totalorder %s412, %s415
      %p424 = scmp.eq.s32.totalorder %s37, 3
      %p425 = por %p423, %p424
      %p426 = scmp.ne.s32.totalorder %s415, %s416
      %p427 = scmp.eq.s32.totalorder %s37, 0
      %p428 = por %p426, %p427
      %p429 = scmp.ne.s32.totalorder %s415, %s416
      %p430 = scmp.eq.s32.totalorder %s38, 3
      %p431 = por %p429, %p430
      %p433 = scmp.ne.s32.totalorder %s416, %s432
      %p434 = scmp.eq.s32.totalorder %s38, 0
      %p435 = por %p433, %p434
      %s437 = sadd.s32 %s436, 1
      %p440 = scmp.eq.s32.totalorder %s32, 3
      %p441 = scmp.ne.s32.totalorder %s436, %s438
      %p442 = scmp.eq.s32.totalorder %s32, 0
      %p443 = por %p441, %p442
      %p444 = scmp.ne.s32.totalorder %s436, %s438
      %p445 = scmp.eq.s32.totalorder %s37, 3
      %p446 = por %p444, %p445
      %p447 = scmp.ne.s32.totalorder %s438, %s439
      %p448 = scmp.eq.s32.totalorder %s37, 0
      %p449 = por %p447, %p448
      %p450 = scmp.ne.s32.totalorder %s438, %s439
      %p451 = scmp.eq.s32.totalorder %s38, 3
      %p452 = por %p450, %p451
      %p454 = scmp.ne.s32.totalorder %s439, %s453
      %p455 = scmp.eq.s32.totalorder %s38, 0
      %p456 = por %p454, %p455
      %s458 = sadd.s32 %s457, 1
      %p461 = scmp.eq.s32.totalorder %s32, 3
      %p462 = scmp.ne.s32.totalorder %s457, %s459
      %p463 = scmp.eq.s32.totalorder %s32, 0
      %p464 = por %p462, %p463
      %p465 = scmp.ne.s32.totalorder %s457, %s459
      %p466 = scmp.eq.s32.totalorder %s37, 3
      %p467 = por %p465, %p466
      %p468 = scmp.ne.s32.totalorder %s459, %s460
      %p469 = scmp.eq.s32.totalorder %s37, 0
      %p470 = por %p468, %p469
      %p471 = scmp.ne.s32.totalorder %s459, %s460
      %p472 = scmp.eq.s32.totalorder %s38, 3
      %p473 = por %p471, %p472
      %p475 = scmp.ne.s32.totalorder %s460, %s474
      %p476 = scmp.eq.s32.totalorder %s38, 0
      %p477 = por %p475, %p476
      %s479 = sadd.s32 %s478, 1
      %p482 = scmp.eq.s32.totalorder %s32, 3
      %p483 = scmp.ne.s32.totalorder %s478, %s480
      %p484 = scmp.eq.s32.totalorder %s32, 0
      %p485 = por %p483, %p484
      %p486 = scmp.ne.s32.totalorder %s478, %s480
      %p487 = scmp.eq.s32.totalorder %s37, 3
      %p488 = por %p486, %p487
      %p489 = scmp.ne.s32.totalorder %s480, %s481
      %p490 = scmp.eq.s32.totalorder %s37, 0
      %p491 = por %p489, %p490
      %p492 = scmp.ne.s32.totalorder %s480, %s481
      %p493 = scmp.eq.s32.totalorder %s38, 3
      %p494 = por %p492, %p493
      %p496 = scmp.ne.s32.totalorder %s481, %s495
      %p497 = scmp.eq.s32.totalorder %s38, 0
      %p498 = por %p496, %p497
      %s500 = sadd.s32 %s499, 1
      %p503 = scmp.eq.s32.totalorder %s32, 3
      %p504 = scmp.ne.s32.totalorder %s499, %s501
      %p505 = scmp.eq.s32.totalorder %s32, 0
      %p506 = por %p504, %p505
      %p507 = scmp.ne.s32.totalorder %s499, %s501
      %p508 = scmp.eq.s32.totalorder %s37, 3
      %p509 = por %p507, %p508
      %p510 = scmp.ne.s32.totalorder %s501, %s502
      %p511 = scmp.eq.s32.totalorder %s37, 0
      %p512 = por %p510, %p511
      %p513 = scmp.ne.s32.totalorder %s501, %s502
      %p514 = scmp.eq.s32.totalorder %s38, 3
      %p515 = por %p513, %p514
      %p517 = scmp.ne.s32.totalorder %s502, %s516
      %p518 = scmp.eq.s32.totalorder %s38, 0
      %p519 = por %p517, %p518
      %s521 = sadd.s32 %s520, 1
      %p524 = scmp.eq.s32.totalorder %s32, 3
      %p525 = scmp.ne.s32.totalorder %s520, %s522
      %p526 = scmp.eq.s32.totalorder %s32, 0
      %p527 = por %p525, %p526
      %p528 = scmp.ne.s32.totalorder %s520, %s522
      %p529 = scmp.eq.s32.totalorder %s37, 3
      %p530 = por %p528, %p529
      %p531 = scmp.ne.s32.totalorder %s522, %s523
      %p532 = scmp.eq.s32.totalorder %s37, 0
      %p533 = por %p531, %p532
      %p534 = scmp.ne.s32.totalorder %s522, %s523
      %p535 = scmp.eq.s32.totalorder %s38, 3
      %p536 = por %p534, %p535
      %p538 = scmp.ne.s32.totalorder %s523, %s537
      %p539 = scmp.eq.s32.totalorder %s38, 0
      %p540 = por %p538, %p539
      %p541 = scmp.le.s32.totalorder 1, %s32
      %p542 = scmp.lt.s32.totalorder %s32, 5
      %p543 = pnand %p541, %p542
      %p544 = pneg %p543
      // Predicated region
      $region9: #{vit_forward.1} parent=5 // pred_check
        _
      $region10: #{vit_forward.1} parent=5 // pred_check_branch
        %546 = sbr.rel (%p543) target = $region12
      $region11: #{vit_forward.1} parent=5 // pred_region
        %s547 = ssub.s32 %s32, 1
        // Predicated region
        $region13: #{vit_forward.1} parent=11 // pred_check
          %p548 = pneg %p53
        $region14: #{vit_forward.1} parent=11 // pred_check_branch
          %550 = sbr.rel (%p548) target = $region16
        $region15: #{vit_forward.1} parent=11 // pred_region
          _
        $region16: #{vit_forward.1} parent=11 // pred_fallthru
          _
        // Predicated region
        $region17: #{vit_forward.1} parent=11 // pred_check
          %p551 = pneg %p74
        $region18: #{vit_forward.1} parent=11 // pred_check_branch
          %553 = sbr.rel (%p551) target = $region20
        $region19: #{vit_forward.1} parent=11 // pred_region
          _
        $region20: #{vit_forward.1} parent=11 // pred_fallthru
          _
        // Predicated region
        $region21: #{vit_forward.1} parent=11 // pred_check
          %p554 = pneg %p95
        $region22: #{vit_forward.1} parent=11 // pred_check_branch
          %556 = sbr.rel (%p554) target = $region24
        $region23: #{vit_forward.1} parent=11 // pred_region
          _
        $region24: #{vit_forward.1} parent=11 // pred_fallthru
          _
        // Predicated region
        $region25: #{vit_forward.1} parent=11 // pred_check
          %p557 = pneg %p116
        $region26: #{vit_forward.1} parent=11 // pred_check_branch
          %559 = sbr.rel (%p557) target = $region28
        $region27: #{vit_forward.1} parent=11 // pred_region
          _
        $region28: #{vit_forward.1} parent=11 // pred_fallthru
          _
        // Predicated region
        $region29: #{vit_forward.1} parent=11 // pred_check
          %p560 = pneg %p449
        $region30: #{vit_forward.1} parent=11 // pred_check_branch
          %562 = sbr.rel (%p560) target = $region32
        $region31: #{vit_forward.1} parent=11 // pred_region
          _
        $region32: #{vit_forward.1} parent=11 // pred_fallthru
          _
        // Predicated region
        $region33: #{vit_forward.1} parent=11 // pred_check
          %p563 = pneg %p470
        $region34: #{vit_forward.1} parent=11 // pred_check_branch
          %565 = sbr.rel (%p563) target = $region36
        $region35: #{vit_forward.1} parent=11 // pred_region
          _
        $region36: #{vit_forward.1} parent=11 // pred_fallthru
          _
        // Predicated region
        $region37: #{vit_forward.1} parent=11 // pred_check
          %p566 = pneg %p491
        $region38: #{vit_forward.1} parent=11 // pred_check_branch
          %568 = sbr.rel (%p566) target = $region40
        $region39: #{vit_forward.1} parent=11 // pred_region
          _
        $region40: #{vit_forward.1} parent=11 // pred_fallthru
          _
      $region12: #{vit_forward.1} parent=5 // pred_fallthru
        _
      %p569 = scmp.lt.s32.totalorder %s32, 4
      // Predicated region
      $region41: #{vit_forward.1} parent=5 // pred_check
        %p570 = pneg %p569
      $region42: #{vit_forward.1} parent=5 // pred_check_branch
        %572 = sbr.rel (%p570) target = $region44
      $region43: #{vit_forward.1} parent=5 // pred_region
        // Predicated region
        $region45: #{vit_forward.1} parent=43 // pred_check
          %p573 = pneg %p136
        $region46: #{vit_forward.1} parent=43 // pred_check_branch
          %575 = sbr.rel (%p573) target = $region48
        $region47: #{vit_forward.1} parent=43 // pred_region
          %p576 = scmp.lt.s32.totalorder %s32, 3
          %s577 = scalar_select %p576, %s32, 3
          %s578 = smul.addr %s577, 48
          %s579 = smul.addr %s578, 4
          %s580 = scalar_lea.vmem %s4, %s579
        $region48: #{vit_forward.1} parent=43 // pred_fallthru
          _
        // Predicated region
        $region49: #{vit_forward.1} parent=43 // pred_check
          %p581 = pneg %p162
        $region50: #{vit_forward.1} parent=43 // pred_check_branch
          %583 = sbr.rel (%p581) target = $region52
        $region51: #{vit_forward.1} parent=43 // pred_region
          %p584 = scmp.lt.s32.totalorder %s32, 3
          %s585 = scalar_select %p584, %s32, 3
          %s586 = smul.addr %s585, 3
          %s587 = scalar_lea.vmem %s5, %s586
        $region52: #{vit_forward.1} parent=43 // pred_fallthru
          _
        // Predicated region
        $region53: #{vit_forward.1} parent=43 // pred_check
          %p588 = pneg %p188
        $region54: #{vit_forward.1} parent=43 // pred_check_branch
          %590 = sbr.rel (%p588) target = $region56
        $region55: #{vit_forward.1} parent=43 // pred_region
          %p591 = scmp.lt.s32.totalorder %s32, 3
          %s592 = scalar_select %p591, %s32, 3
          %s593 = smul.addr %s592, 16
          %s594 = smul.addr %s593, 4
          %s595 = scalar_lea.vmem %s6, %s594
        $region56: #{vit_forward.1} parent=43 // pred_fallthru
          _
        // Predicated region
        $region57: #{vit_forward.1} parent=43 // pred_check
          %p596 = pneg %p214
        $region58: #{vit_forward.1} parent=43 // pred_check_branch
          %598 = sbr.rel (%p596) target = $region60
        $region59: #{vit_forward.1} parent=43 // pred_region
          %p599 = scmp.lt.s32.totalorder %s32, 3
          %s600 = scalar_select %p599, %s32, 3
          %s601 = scalar_lea.vmem %s7, %s600
        $region60: #{vit_forward.1} parent=43 // pred_fallthru
          _
        // Predicated region
        $region61: #{vit_forward.1} parent=43 // pred_check
          %p602 = pneg %p240
        $region62: #{vit_forward.1} parent=43 // pred_check_branch
          %604 = sbr.rel (%p602) target = $region64
        $region63: #{vit_forward.1} parent=43 // pred_region
          %p605 = scmp.lt.s32.totalorder %s32, 3
          %s606 = scalar_select %p605, %s32, 3
          %s607 = scalar_lea.vmem %s8, %s606
        $region64: #{vit_forward.1} parent=43 // pred_fallthru
          _
        // Predicated region
        $region65: #{vit_forward.1} parent=43 // pred_check
          %p608 = pneg %p266
        $region66: #{vit_forward.1} parent=43 // pred_check_branch
          %610 = sbr.rel (%p608) target = $region68
        $region67: #{vit_forward.1} parent=43 // pred_region
          %p611 = scmp.lt.s32.totalorder %s32, 3
          %s612 = scalar_select %p611, %s32, 3
          %s613 = scalar_lea.vmem %s9, %s612
        $region68: #{vit_forward.1} parent=43 // pred_fallthru
          _
        // Predicated region
        $region69: #{vit_forward.1} parent=43 // pred_check
          %p614 = pneg %p292
        $region70: #{vit_forward.1} parent=43 // pred_check_branch
          %616 = sbr.rel (%p614) target = $region72
        $region71: #{vit_forward.1} parent=43 // pred_region
          %p617 = scmp.lt.s32.totalorder %s32, 3
          %s618 = scalar_select %p617, %s32, 3
          %s619 = smul.addr %s618, 32
          %s620 = smul.addr %s619, 4
          %s621 = scalar_lea.vmem %s10, %s620
        $region72: #{vit_forward.1} parent=43 // pred_fallthru
          _
        // Predicated region
        $region73: #{vit_forward.1} parent=43 // pred_check
          %p622 = pneg %p318
        $region74: #{vit_forward.1} parent=43 // pred_check_branch
          %624 = sbr.rel (%p622) target = $region76
        $region75: #{vit_forward.1} parent=43 // pred_region
          %p625 = scmp.lt.s32.totalorder %s32, 3
          %s626 = scalar_select %p625, %s32, 3
          %s627 = smul.addr %s626, 2
          %s628 = scalar_lea.vmem %s11, %s627
        $region76: #{vit_forward.1} parent=43 // pred_fallthru
          _
        // Predicated region
        $region77: #{vit_forward.1} parent=43 // pred_check
          %p629 = pneg %p344
        $region78: #{vit_forward.1} parent=43 // pred_check_branch
          %631 = sbr.rel (%p629) target = $region80
        $region79: #{vit_forward.1} parent=43 // pred_region
          %p632 = scmp.lt.s32.totalorder %s32, 3
          %s633 = scalar_select %p632, %s32, 3
          %s634 = smul.addr %s633, 32
          %s635 = smul.addr %s634, 4
          %s636 = scalar_lea.vmem %s12, %s635
        $region80: #{vit_forward.1} parent=43 // pred_fallthru
          _
        // Predicated region
        $region81: #{vit_forward.1} parent=43 // pred_check
          %p637 = pneg %p370
        $region82: #{vit_forward.1} parent=43 // pred_check_branch
          %639 = sbr.rel (%p637) target = $region84
        $region83: #{vit_forward.1} parent=43 // pred_region
          %p640 = scmp.lt.s32.totalorder %s32, 3
          %s641 = scalar_select %p640, %s32, 3
          %s642 = scalar_lea.vmem %s13, %s641
        $region84: #{vit_forward.1} parent=43 // pred_fallthru
          _
        // Predicated region
        $region85: #{vit_forward.1} parent=43 // pred_check
          %p643 = pneg %p396
        $region86: #{vit_forward.1} parent=43 // pred_check_branch
          %645 = sbr.rel (%p643) target = $region88
        $region87: #{vit_forward.1} parent=43 // pred_region
          %p646 = scmp.lt.s32.totalorder %s32, 3
          %s647 = scalar_select %p646, %s32, 3
          %s648 = scalar_lea.vmem %s14, %s647
        $region88: #{vit_forward.1} parent=43 // pred_fallthru
          _
        // Predicated region
        $region89: #{vit_forward.1} parent=43 // pred_check
          %p649 = pneg %p422
        $region90: #{vit_forward.1} parent=43 // pred_check_branch
          %651 = sbr.rel (%p649) target = $region92
        $region91: #{vit_forward.1} parent=43 // pred_region
          %p652 = scmp.lt.s32.totalorder %s32, 3
          %s653 = scalar_select %p652, %s32, 3
          %s654 = scalar_lea.vmem %s15, %s653
        $region92: #{vit_forward.1} parent=43 // pred_fallthru
          _
      $region44: #{vit_forward.1} parent=5 // pred_fallthru
        _
      %p655 = scmp.le.s32.totalorder 1, %s32
      %p656 = scmp.lt.s32.totalorder %s32, 5
      %p657 = pnand %p655, %p656
      %p658 = pneg %p657
      // Predicated region
      $region93: #{vit_forward.1} parent=5 // pred_check
        _
      $region94: #{vit_forward.1} parent=5 // pred_check_branch
        %660 = sbr.rel (%p657) target = $region96
      $region95: #{vit_forward.1} parent=5 // pred_region
        %s661 = ssub.s32 %s32, 1
        %p662 = pneg %p53
        %p663 = pneg %p50
        %p664 = pneg %p74
        %p665 = pneg %p71
        %p666 = pneg %p95
        %p667 = pneg %p92
        %p668 = pneg %p116
        %p669 = pneg %p113
        %p670 = scmp.lt.s32.totalorder %s37, 3
        %s671 = scalar_select %p670, %s37, 3
        %s672 = smul.addr %s671, 48
        %s673 = smul.addr %s672, 4
        %s674 = scalar_lea.vmem %s4, %s673
        %p675 = pneg %p142
        %p676 = pneg %p139
        %p677 = scmp.lt.s32.totalorder %s37, 3
        %s678 = scalar_select %p677, %s37, 3
        %s679 = smul.addr %s678, 3
        %s680 = scalar_lea.vmem %s5, %s679
        %p681 = pneg %p168
        %p682 = pneg %p165
        %p683 = scmp.lt.s32.totalorder %s37, 3
        %s684 = scalar_select %p683, %s37, 3
        %s685 = smul.addr %s684, 16
        %s686 = smul.addr %s685, 4
        %s687 = scalar_lea.vmem %s6, %s686
        %p688 = pneg %p194
        %p689 = pneg %p191
        %p690 = scmp.lt.s32.totalorder %s37, 3
        %s691 = scalar_select %p690, %s37, 3
        %s692 = scalar_lea.vmem %s7, %s691
        %p693 = pneg %p220
        %p694 = pneg %p217
        %p695 = scmp.lt.s32.totalorder %s37, 3
        %s696 = scalar_select %p695, %s37, 3
        %s697 = scalar_lea.vmem %s8, %s696
        %p698 = pneg %p246
        %p699 = pneg %p243
        %p700 = scmp.lt.s32.totalorder %s37, 3
        %s701 = scalar_select %p700, %s37, 3
        %s702 = scalar_lea.vmem %s9, %s701
        %p703 = pneg %p272
        %p704 = pneg %p269
        %p705 = scmp.lt.s32.totalorder %s37, 3
        %s706 = scalar_select %p705, %s37, 3
        %s707 = smul.addr %s706, 32
        %s708 = smul.addr %s707, 4
        %s709 = scalar_lea.vmem %s10, %s708
        %p710 = pneg %p298
        %p711 = pneg %p295
        %p712 = scmp.lt.s32.totalorder %s37, 3
        %s713 = scalar_select %p712, %s37, 3
        %s714 = smul.addr %s713, 2
        %s715 = scalar_lea.vmem %s11, %s714
        %p716 = pneg %p324
        %p717 = pneg %p321
        %p718 = scmp.lt.s32.totalorder %s37, 3
        %s719 = scalar_select %p718, %s37, 3
        %s720 = smul.addr %s719, 32
        %s721 = smul.addr %s720, 4
        %s722 = scalar_lea.vmem %s12, %s721
        %p723 = pneg %p350
        %p724 = pneg %p347
        %p725 = scmp.lt.s32.totalorder %s37, 3
        %s726 = scalar_select %p725, %s37, 3
        %s727 = scalar_lea.vmem %s13, %s726
        %p728 = pneg %p376
        %p729 = pneg %p373
        %p730 = scmp.lt.s32.totalorder %s37, 3
        %s731 = scalar_select %p730, %s37, 3
        %s732 = scalar_lea.vmem %s14, %s731
        %p733 = pneg %p402
        %p734 = pneg %p399
        %p735 = scmp.lt.s32.totalorder %s37, 3
        %s736 = scalar_select %p735, %s37, 3
        %s737 = scalar_lea.vmem %s15, %s736
        %p738 = pneg %p428
        %p739 = pneg %p425
        %p740 = pneg %p449
        %p741 = pneg %p446
        %p742 = pneg %p470
        %p743 = pneg %p467
        %p744 = pneg %p491
        %p745 = pneg %p488
        %p746 = pneg %p512
        %p747 = pneg %p509
        %p748 = pneg %p533
        %p749 = pneg %p530
        %p750 = scmp.lt.s32.totalorder %s37, 3
        %s751 = scalar_select %p750, %s37, 3
        %s752 = smul.addr %s751, 48
        %s753 = smul.addr %s752, 4
        %s754 = scalar_lea.vmem %s4, %s753
        %p755 = scmp.lt.s32.totalorder %s37, 3
        %s756 = scalar_select %p755, %s37, 3
        %s757 = smul.addr %s756, 3
        %s758 = scalar_lea.vmem %s5, %s757
        %p759 = scmp.lt.s32.totalorder %s37, 3
        %s760 = scalar_select %p759, %s37, 3
        %s761 = smul.addr %s760, 16
        %s762 = smul.addr %s761, 4
        %s763 = scalar_lea.vmem %s6, %s762
        %p764 = scmp.lt.s32.totalorder %s37, 3
        %s765 = scalar_select %p764, %s37, 3
        %s766 = scalar_lea.vmem %s7, %s765
        %p767 = scmp.lt.s32.totalorder %s37, 3
        %s768 = scalar_select %p767, %s37, 3
        %s769 = scalar_lea.vmem %s8, %s768
        %p770 = scmp.lt.s32.totalorder %s37, 3
        %s771 = scalar_select %p770, %s37, 3
        %s772 = scalar_lea.vmem %s9, %s771
        %p773 = scmp.lt.s32.totalorder %s37, 3
        %s774 = scalar_select %p773, %s37, 3
        %s775 = smul.addr %s774, 32
        %s776 = smul.addr %s775, 4
        %s777 = scalar_lea.vmem %s10, %s776
        %p778 = scmp.lt.s32.totalorder %s37, 3
        %s779 = scalar_select %p778, %s37, 3
        %s780 = smul.addr %s779, 2
        %s781 = scalar_lea.vmem %s11, %s780
        %p782 = scmp.lt.s32.totalorder %s37, 3
        %s783 = scalar_select %p782, %s37, 3
        %s784 = smul.addr %s783, 32
        %s785 = smul.addr %s784, 4
        %s786 = scalar_lea.vmem %s12, %s785
        %p787 = scmp.lt.s32.totalorder %s37, 3
        %s788 = scalar_select %p787, %s37, 3
        %s789 = scalar_lea.vmem %s13, %s788
        %p790 = scmp.lt.s32.totalorder %s37, 3
        %s791 = scalar_select %p790, %s37, 3
        %s792 = scalar_lea.vmem %s14, %s791
        %p793 = scmp.lt.s32.totalorder %s37, 3
        %s794 = scalar_select %p793, %s37, 3
        %s795 = scalar_lea.vmem %s15, %s794
        %p797 = scmp.eq.s32.totalorder %s37, 0
        // Predicated region
        $region97: #{vit_forward.1} parent=95 // pred_check
          %p798 = pneg %p797
        $region98: #{vit_forward.1} parent=95 // pred_check_branch
          %800 = sbr.rel (%p798) target = $region100
        $region99: #{vit_forward.1} parent=95 // pred_region
          #allocation12 [shape = 'u32[9]{0}', space=smem, size = 0x24, scoped, tag = 'DMA stride descriptor']
          #allocation14 [shape = 'u32[9]{0}', space=smem, size = 0x24, scoped, tag = 'DMA stride descriptor']
          #allocation16 [shape = 'u32[9]{0}', space=smem, size = 0x24, scoped, tag = 'DMA stride descriptor']
          %s802 = sshll.u32 1, 14
          %s803 = sxor.u32 4294967295, %s802
          %s805 = sld [smem:[#allocation0]]
          %s806 = sadd.s32 2, %s805
          %s808 = sshll.u32 7, 26
          %s809 = sxor.u32 4294967295, %s808
          %s810 = sand.u32 0, %s809
          %s811 = sshll.u32 %s806, 26
          %s812 = sor.u32 %s810, %s811
          %s813 = sshll.u32 [#allocation3], 4
          %s814 = int_to_ptr.vmem [resolvable:$true] %s813
          %817 = sst [smem:[#allocation12]] 256
          %s818 = scalar_lea.smem [#allocation12], 1
          %819 = sst [smem:[%s818]] 256
          %s820 = scalar_lea.smem [#allocation12], 2
          %821 = sst [smem:[%s820]] 2
          %s822 = scalar_lea.smem [#allocation12], 3
          %823 = sst [smem:[%s822]] 64
          %s824 = scalar_lea.smem [#allocation12], 4
          %825 = sst [smem:[%s824]] 128
          %s826 = scalar_lea.smem [#allocation12], 5
          %827 = sst [smem:[%s826]] 2
          %s828 = scalar_lea.smem [#allocation12], 6
          %829 = sst [smem:[%s828]] 128
          %s830 = scalar_lea.smem [#allocation12], 7
          %831 = sst [smem:[%s830]] 64
          %s832 = scalar_lea.smem [#allocation12], 8
          %833 = sst [smem:[%s832]] 4
          %835 = dma.general %s16, 4096, %s814, [#allocation6], [#allocation11], [#allocation12], %s812, 0
          %s836 = scalar_lea.sflag [#allocation6], 1
          %s838 = sshll.u32 1, 14
          %s839 = sxor.u32 4294967295, %s838
          %s841 = sadd.s32 2, %s805
          %s843 = sshll.u32 7, 26
          %s844 = sxor.u32 4294967295, %s843
          %s845 = sand.u32 0, %s844
          %s846 = sshll.u32 %s841, 26
          %s847 = sor.u32 %s845, %s846
          %s848 = sshll.u32 [#allocation4], 4
          %s849 = int_to_ptr.vmem [resolvable:$true] %s848
          %852 = sst [smem:[#allocation14]] 256
          %s853 = scalar_lea.smem [#allocation14], 1
          %854 = sst [smem:[%s853]] 256
          %s855 = scalar_lea.smem [#allocation14], 2
          %856 = sst [smem:[%s855]] 2
          %s857 = scalar_lea.smem [#allocation14], 3
          %858 = sst [smem:[%s857]] 64
          %s859 = scalar_lea.smem [#allocation14], 4
          %860 = sst [smem:[%s859]] 128
          %s861 = scalar_lea.smem [#allocation14], 5
          %862 = sst [smem:[%s861]] 2
          %s863 = scalar_lea.smem [#allocation14], 6
          %864 = sst [smem:[%s863]] 128
          %s865 = scalar_lea.smem [#allocation14], 7
          %866 = sst [smem:[%s865]] 64
          %s867 = scalar_lea.smem [#allocation14], 8
          %868 = sst [smem:[%s867]] 4
          %870 = dma.general %s17, 8192, %s849, %s836, [#allocation13], [#allocation14], %s847, 0
          %s871 = scalar_lea.sflag [#allocation6], 2
          %s873 = sshll.u32 1, 14
          %s874 = sxor.u32 4294967295, %s873
          %s876 = sadd.s32 2, %s805
          %s878 = sshll.u32 7, 26
          %s879 = sxor.u32 4294967295, %s878
          %s880 = sand.u32 0, %s879
          %s881 = sshll.u32 %s876, 26
          %s882 = sor.u32 %s880, %s881
          %s883 = sshll.u32 [#allocation5], 4
          %s884 = int_to_ptr.vmem [resolvable:$true] %s883
          %887 = sst [smem:[#allocation16]] 256
          %s888 = scalar_lea.smem [#allocation16], 1
          %889 = sst [smem:[%s888]] 256
          %s890 = scalar_lea.smem [#allocation16], 2
          %891 = sst [smem:[%s890]] 2
          %s892 = scalar_lea.smem [#allocation16], 3
          %893 = sst [smem:[%s892]] 64
          %s894 = scalar_lea.smem [#allocation16], 4
          %895 = sst [smem:[%s894]] 128
          %s896 = scalar_lea.smem [#allocation16], 5
          %897 = sst [smem:[%s896]] 2
          %s898 = scalar_lea.smem [#allocation16], 6
          %899 = sst [smem:[%s898]] 128
          %s900 = scalar_lea.smem [#allocation16], 7
          %901 = sst [smem:[%s900]] 64
          %s902 = scalar_lea.smem [#allocation16], 8
          %903 = sst [smem:[%s902]] 4
          %905 = dma.general %s18, 8192, %s884, %s871, [#allocation15], [#allocation16], %s882, 0
          %v906 = vld [vmem:[%s0] sm:$0xff]
          %v907 = vld [vmem:[%s0 + $0x8] sm:$0xff]
          %v908 = vld [vmem:[%s0 + $0x10] sm:$0xff]
          %v909 = vld [vmem:[%s0 + $0x18] sm:$0xff]
          %v910 = vld [vmem:[%s2] sm:$0xf]
          %v911 = vld [vmem:[%s2 + $0x4] sm:$0xf]
          %v912 = vld [vmem:[%s2 + $0x8] sm:$0xf]
          %v913 = vld [vmem:[%s2 + $0xc] sm:$0xf]
          %v914 = vld [vmem:[%s2 + $0x10] sm:$0xf]
          %v915 = vld [vmem:[%s2 + $0x14] sm:$0xf]
          %v916 = vld [vmem:[%s2 + $0x18] sm:$0xf]
          %v917 = vld [vmem:[%s2 + $0x1c] sm:$0xf]
          %v918 = vld [vmem:[%s3] sm:$0x1]
          %v919 = vpack.c.bf16 %v907, %v906
          %v920 = vpack.c.bf16 %v909, %v908
          %v922 = vlaneseq
          %v923 = vshrl.u32 %v922, 7
          %v924 = vsub.s32 0, %v923
          %v925 = vrot.slane %v918, %v924
          %v935 = vunpack.c.l.b16 %v910
          %v936 = vunpack.c.l.b16 %v911
          %v937 = vunpack.c.l.b16 %v912
          %v938 = vunpack.c.l.b16 %v913
          %v939 = vunpack.c.l.b16 %v914
          %v940 = vunpack.c.l.b16 %v915
          %v941 = vunpack.c.l.b16 %v916
          %v942 = vunpack.c.l.b16 %v917
          %v943 = vpack.c.b16 %v936, %v935
          %v944 = vpack.c.b16 %v938, %v937
          %v945 = vpack.c.b16 %v940, %v939
          %v946 = vpack.c.b16 %v942, %v941
          %vm951 = vcmask 523264
          %v953 = vsel %vm951, %v919, 0
          %v956 = vsel %vm951, %v920, 0
          %958 = vmatprep.subr.bf16.mxu0 0
          %959 = vmatpush1.bf16.msra.mxu0 %v943
          %960 = vmatprep.subr.bf16.mxu0 0
          %961 = vmatpush1.bf16.msra.mxu0 %v944
          %962 = vmatprep.subr.bf16.mxu0 0
          %963 = vmatpush1.bf16.msra.mxu0 %v945
          %964 = vmatprep.subr.bf16.mxu0 0
          %965 = vmatpush1.bf16.msra.mxu0 %v946
          %966 = vmatprep.subr.bf16.mxu0 0
          %967 = vmatpush1.bf16.msra.mxu0 0
          %968 = vmatprep.subr.bf16.mxu0 0
          %969 = vmatpush1.bf16.msra.mxu0 0
          %970 = vmatprep.subr.bf16.mxu0 0
          %971 = vmatpush1.bf16.msra.mxu0 0
          %972 = vmatprep.subr.bf16.mxu0 0
          %973 = vmatpush1.bf16.msra.mxu0 0
          %974 = vmatprep.subr.bf16.mxu0 0
          %975 = vmatpush1.bf16.msra.mxu0 0
          %976 = vmatprep.subr.bf16.mxu0 0
          %977 = vmatpush1.bf16.msra.mxu0 0
          %978 = vmatprep.subr.bf16.mxu0 0
          %979 = vmatpush1.bf16.msra.mxu0 0
          %980 = vmatprep.subr.bf16.mxu0 0
          %981 = vmatpush1.bf16.msra.mxu0 0
          %982 = vmatprep.subr.bf16.mxu0 0
          %983 = vmatpush1.bf16.msra.mxu0 0
          %984 = vmatprep.subr.bf16.mxu0 0
          %985 = vmatpush1.bf16.msra.mxu0 0
          %986 = vmatprep.subr.bf16.mxu0 0
          %987 = vmatpush1.bf16.msra.mxu0 0
          %988 = vmatprep.subr.bf16.mxu0 0
          %989 = vmatpush1.bf16.msra.mxu0 0
          %990 = vmatprep.mubr.bf16.mxu0 0
          %991 = vmatmul.mubr.bf16.gmra.mrb[0].mxu0 %v953
          %v992 = vpop.f32.mrb[0].mxu0
          %v993 = vadd.f32 %v925, %v992
          %v994 = vpop.f32.mrb[0].mxu0
          %v995 = vpop.f32.mrb[0].mxu0
          %v996 = vadd.f32 %v925, %v995
          %v997 = vpop.f32.mrb[0].mxu0
          %998 = vmatprep.mubr.bf16.mxu0 0
          %999 = vmatmul.mubr.bf16.gmra.mrb[0].mxu0 %v956
          %v1000 = vpop.f32.mrb[0].mxu0
          %v1001 = vadd.f32 %v925, %v1000
          %v1002 = vpop.f32.mrb[0].mxu0
          %v1003 = vpop.f32.mrb[0].mxu0
          %v1004 = vadd.f32 %v925, %v1003
          %v1005 = vpop.f32.mrb[0].mxu0
          %1006 = vdwg.mxu0
          %v1007 = vld [vmem:[%s1] sm:$0xff]
          %v1008 = vld [vmem:[%s1 + $0x8] sm:$0xff]
          %v1009 = vadd.f32 %v993, %v1007
          %v1010 = vadd.f32 %v996, %v1008
          %v1011 = vadd.f32 %v1001, %v1007
          %v1012 = vadd.f32 %v1004, %v1008
          %1013 = vst [vmem:[#allocation2] sm:$0xff] %v1009
          %1014 = vst [vmem:[#allocation2 + $0x8] sm:$0xff] %v1010
          %1015 = vst [vmem:[#allocation2 + $0x10] sm:$0xff] %v1011
          %1016 = vst [vmem:[#allocation2 + $0x18] sm:$0xff] %v1012
        $region100: #{vit_forward.1} parent=95 // pred_fallthru
          _
        %v1017 = vld [vmem:[#allocation2] sm:$0xff]
        %v1018 = vld [vmem:[#allocation2 + $0x8] sm:$0xff]
        %v1019 = vld [vmem:[#allocation2 + $0x10] sm:$0xff]
        %v1020 = vld [vmem:[#allocation2 + $0x18] sm:$0xff]
        %v1021 = vld [vmem:[%s754] sm:$0xff]
        %v1022 = vld [vmem:[%s754 + $0x8] sm:$0xf]
        %v1023 = vld [vmem:[%s754 + $0xc] sm:$0xff]
        %v1024 = vld [vmem:[%s754 + $0x14] sm:$0xf]
        %v1025 = vld [vmem:[%s754 + $0x18] sm:$0xff]
        %v1026 = vld [vmem:[%s754 + $0x20] sm:$0xf]
        %v1027 = vld [vmem:[%s754 + $0x24] sm:$0xff]
        %v1028 = vld [vmem:[%s754 + $0x2c] sm:$0xf]
        %v1029 = vld [vmem:[%s754 + $0x30] sm:$0xff]
        %v1030 = vld [vmem:[%s754 + $0x38] sm:$0xf]
        %v1031 = vld [vmem:[%s754 + $0x3c] sm:$0xff]
        %v1032 = vld [vmem:[%s754 + $0x44] sm:$0xf]
        %v1033 = vld [vmem:[%s754 + $0x48] sm:$0xff]
        %v1034 = vld [vmem:[%s754 + $0x50] sm:$0xf]
        %v1035 = vld [vmem:[%s754 + $0x54] sm:$0xff]
        %v1036 = vld [vmem:[%s754 + $0x5c] sm:$0xf]
        %v1037 = vld [vmem:[%s754 + $0x60] sm:$0xff]
        %v1038 = vld [vmem:[%s754 + $0x68] sm:$0xf]
        %v1039 = vld [vmem:[%s754 + $0x6c] sm:$0xff]
        %v1040 = vld [vmem:[%s754 + $0x74] sm:$0xf]
        %v1041 = vld [vmem:[%s754 + $0x78] sm:$0xff]
        %v1042 = vld [vmem:[%s754 + $0x80] sm:$0xf]
        %v1043 = vld [vmem:[%s754 + $0x84] sm:$0xff]
        %v1044 = vld [vmem:[%s754 + $0x8c] sm:$0xf]
        %v1045 = vld [vmem:[%s754 + $0x90] sm:$0xff]
        %v1046 = vld [vmem:[%s754 + $0x98] sm:$0xf]
        %v1047 = vld [vmem:[%s754 + $0x9c] sm:$0xff]
        %v1048 = vld [vmem:[%s754 + $0xa4] sm:$0xf]
        %v1049 = vld [vmem:[%s754 + $0xa8] sm:$0xff]
        %v1050 = vld [vmem:[%s754 + $0xb0] sm:$0xf]
        %v1051 = vld [vmem:[%s754 + $0xb4] sm:$0xff]
        %v1052 = vld [vmem:[%s754 + $0xbc] sm:$0xf]
        %v1053 = vld [vmem:[%s758] sm:$0x7]
        %v1054 = vpack.c.bf16 %v1018, %v1017
        %v1055 = vpack.c.bf16 %v1020, %v1019
        %v1057 = vlaneseq
        %v1058 = vshrl.u32 %v1057, 7
        %v1059 = vsub.s32 0, %v1058
        %v1060 = vrot.slane %v1053, %v1059
        %v1061 = vlaneseq
        %v1062 = vshrl.u32 %v1061, 7
        %v1063 = vsub.s32 1, %v1062
        %v1064 = vrot.slane %v1053, %v1063
        %v1065 = vlaneseq
        %v1066 = vshrl.u32 %v1065, 7
        %v1067 = vsub.s32 2, %v1066
        %v1068 = vrot.slane %v1053, %v1067
        %v1104 = vunpack.c.l.b16 %v1021
        %v1105 = vunpack.c.h.b16 %v1021
        %v1106 = vunpack.c.l.b16 %v1022
        %v1107 = vunpack.c.l.b16 %v1023
        %v1108 = vunpack.c.h.b16 %v1023
        %v1109 = vunpack.c.l.b16 %v1024
        %v1110 = vunpack.c.l.b16 %v1025
        %v1111 = vunpack.c.h.b16 %v1025
        %v1112 = vunpack.c.l.b16 %v1026
        %v1113 = vunpack.c.l.b16 %v1027
        %v1114 = vunpack.c.h.b16 %v1027
        %v1115 = vunpack.c.l.b16 %v1028
        %v1116 = vunpack.c.l.b16 %v1029
        %v1117 = vunpack.c.h.b16 %v1029
        %v1118 = vunpack.c.l.b16 %v1030
        %v1119 = vunpack.c.l.b16 %v1031
        %v1120 = vunpack.c.h.b16 %v1031
        %v1121 = vunpack.c.l.b16 %v1032
        %v1122 = vunpack.c.l.b16 %v1033
        %v1123 = vunpack.c.h.b16 %v1033
        %v1124 = vunpack.c.l.b16 %v1034
        %v1125 = vunpack.c.l.b16 %v1035
        %v1126 = vunpack.c.h.b16 %v1035
        %v1127 = vunpack.c.l.b16 %v1036
        %v1128 = vunpack.c.l.b16 %v1037
        %v1129 = vunpack.c.h.b16 %v1037
        %v1130 = vunpack.c.l.b16 %v1038
        %v1131 = vunpack.c.l.b16 %v1039
        %v1132 = vunpack.c.h.b16 %v1039
        %v1133 = vunpack.c.l.b16 %v1040
        %v1134 = vunpack.c.l.b16 %v1041
        %v1135 = vunpack.c.h.b16 %v1041
        %v1136 = vunpack.c.l.b16 %v1042
        %v1137 = vunpack.c.l.b16 %v1043
        %v1138 = vunpack.c.h.b16 %v1043
        %v1139 = vunpack.c.l.b16 %v1044
        %v1140 = vunpack.c.l.b16 %v1045
        %v1141 = vunpack.c.h.b16 %v1045
        %v1142 = vunpack.c.l.b16 %v1046
        %v1143 = vunpack.c.l.b16 %v1047
        %v1144 = vunpack.c.h.b16 %v1047
        %v1145 = vunpack.c.l.b16 %v1048
        %v1146 = vunpack.c.l.b16 %v1049
        %v1147 = vunpack.c.h.b16 %v1049
        %v1148 = vunpack.c.l.b16 %v1050
        %v1149 = vunpack.c.l.b16 %v1051
        %v1150 = vunpack.c.h.b16 %v1051
        %v1151 = vunpack.c.l.b16 %v1052
        %v1152 = vpack.c.b16 %v1107, %v1104
        %v1153 = vpack.c.b16 %v1108, %v1105
        %v1154 = vpack.c.b16 %v1109, %v1106
        %v1155 = vpack.c.b16 %v1113, %v1110
        %v1156 = vpack.c.b16 %v1114, %v1111
        %v1157 = vpack.c.b16 %v1115, %v1112
        %v1158 = vpack.c.b16 %v1119, %v1116
        %v1159 = vpack.c.b16 %v1120, %v1117
        %v1160 = vpack.c.b16 %v1121, %v1118
        %v1161 = vpack.c.b16 %v1125, %v1122
        %v1162 = vpack.c.b16 %v1126, %v1123
        %v1163 = vpack.c.b16 %v1127, %v1124
        %v1164 = vpack.c.b16 %v1131, %v1128
        %v1165 = vpack.c.b16 %v1132, %v1129
        %v1166 = vpack.c.b16 %v1133, %v1130
        %v1167 = vpack.c.b16 %v1137, %v1134
        %v1168 = vpack.c.b16 %v1138, %v1135
        %v1169 = vpack.c.b16 %v1139, %v1136
        %v1170 = vpack.c.b16 %v1143, %v1140
        %v1171 = vpack.c.b16 %v1144, %v1141
        %v1172 = vpack.c.b16 %v1145, %v1142
        %v1173 = vpack.c.b16 %v1149, %v1146
        %v1174 = vpack.c.b16 %v1150, %v1147
        %v1175 = vpack.c.b16 %v1151, %v1148
        %1200 = vmatprep.subr.bf16.mxu0 %v1153
        %1201 = vmatpush1.bf16.msra.mxu0 %v1152
        %1202 = vmatprep.subr.bf16.mxu0 %v1156
        %1203 = vmatpush1.bf16.msra.mxu0 %v1155
        %1204 = vmatprep.subr.bf16.mxu0 %v1159
        %1205 = vmatpush1.bf16.msra.mxu0 %v1158
        %1206 = vmatprep.subr.bf16.mxu0 %v1162
        %1207 = vmatpush1.bf16.msra.mxu0 %v1161
        %1208 = vmatprep.subr.bf16.mxu0 %v1165
        %1209 = vmatpush1.bf16.msra.mxu0 %v1164
        %1210 = vmatprep.subr.bf16.mxu0 %v1168
        %1211 = vmatpush1.bf16.msra.mxu0 %v1167
        %1212 = vmatprep.subr.bf16.mxu0 %v1171
        %1213 = vmatpush1.bf16.msra.mxu0 %v1170
        %1214 = vmatprep.subr.bf16.mxu0 %v1174
        %1215 = vmatpush1.bf16.msra.mxu0 %v1173
        %1216 = vmatprep.subr.bf16.mxu0 0
        %1217 = vmatpush1.bf16.msra.mxu0 0
        %1218 = vmatprep.subr.bf16.mxu0 0
        %1219 = vmatpush1.bf16.msra.mxu0 0
        %1220 = vmatprep.subr.bf16.mxu0 0
        %1221 = vmatpush1.bf16.msra.mxu0 0
        %1222 = vmatprep.subr.bf16.mxu0 0
        %1223 = vmatpush1.bf16.msra.mxu0 0
        %1224 = vmatprep.subr.bf16.mxu0 0
        %1225 = vmatpush1.bf16.msra.mxu0 0
        %1226 = vmatprep.subr.bf16.mxu0 0
        %1227 = vmatpush1.bf16.msra.mxu0 0
        %1228 = vmatprep.subr.bf16.mxu0 0
        %1229 = vmatpush1.bf16.msra.mxu0 0
        %1230 = vmatprep.subr.bf16.mxu0 0
        %1231 = vmatpush1.bf16.msra.mxu0 0
        %1232 = vmatprep.mubr.bf16.mxu0 0
        %1233 = vmatmul.mubr.bf16.gmra.mrb[0].mxu0 %v1054
        %v1234 = vpop.f32.mrb[0].mxu0
        %v1235 = vadd.f32 %v1060, %v1234
        %v1236 = vpop.f32.mrb[0].mxu0
        %v1237 = vadd.f32 %v1064, %v1236
        %v1238 = vpop.f32.mrb[0].mxu0
        %v1239 = vadd.f32 %v1060, %v1238
        %v1240 = vpop.f32.mrb[0].mxu0
        %v1241 = vadd.f32 %v1064, %v1240
        %1242 = vmatprep.mubr.bf16.mxu0 0
        %1243 = vmatmul.mubr.bf16.gmra.mrb[0].mxu0 %v1055
        %v1244 = vpop.f32.mrb[0].mxu0
        %v1245 = vadd.f32 %v1060, %v1244
        %v1246 = vpop.f32.mrb[0].mxu0
        %v1247 = vadd.f32 %v1064, %v1246
        %v1248 = vpop.f32.mrb[0].mxu0
        %v1249 = vadd.f32 %v1060, %v1248
        %v1250 = vpop.f32.mrb[0].mxu0
        %v1251 = vadd.f32 %v1064, %v1250
        %1252 = vdwg.mxu0
        %1253 = vmatprep.subr.bf16.mxu0 0
        %1254 = vmatpush1.bf16.msra.mxu0 %v1154
        %1255 = vmatprep.subr.bf16.mxu0 0
        %1256 = vmatpush1.bf16.msra.mxu0 %v1157
        %1257 = vmatprep.subr.bf16.mxu0 0
        %1258 = vmatpush1.bf16.msra.mxu0 %v1160
        %1259 = vmatprep.subr.bf16.mxu0 0
        %1260 = vmatpush1.bf16.msra.mxu0 %v1163
        %1261 = vmatprep.subr.bf16.mxu0 0
        %1262 = vmatpush1.bf16.msra.mxu0 %v1166
        %1263 = vmatprep.subr.bf16.mxu0 0
        %1264 = vmatpush1.bf16.msra.mxu0 %v1169
        %1265 = vmatprep.subr.bf16.mxu0 0
        %1266 = vmatpush1.bf16.msra.mxu0 %v1172
        %1267 = vmatprep.subr.bf16.mxu0 0
        %1268 = vmatpush1.bf16.msra.mxu0 %v1175
        %1269 = vmatprep.subr.bf16.mxu0 0
        %1270 = vmatpush1.bf16.msra.mxu0 0
        %1271 = vmatprep.subr.bf16.mxu0 0
        %1272 = vmatpush1.bf16.msra.mxu0 0
        %1273 = vmatprep.subr.bf16.mxu0 0
        %1274 = vmatpush1.bf16.msra.mxu0 0
        %1275 = vmatprep.subr.bf16.mxu0 0
        %1276 = vmatpush1.bf16.msra.mxu0 0
        %1277 = vmatprep.subr.bf16.mxu0 0
        %1278 = vmatpush1.bf16.msra.mxu0 0
        %1279 = vmatprep.subr.bf16.mxu0 0
        %1280 = vmatpush1.bf16.msra.mxu0 0
        %1281 = vmatprep.subr.bf16.mxu0 0
        %1282 = vmatpush1.bf16.msra.mxu0 0
        %1283 = vmatprep.subr.bf16.mxu0 0
        %1284 = vmatpush1.bf16.msra.mxu0 0
        %1285 = vmatprep.mubr.bf16.mxu0 0
        %1286 = vmatmul.mubr.bf16.gmra.mrb[0].mxu0 %v1054
        %v1287 = vpop.f32.mrb[0].mxu0
        %v1288 = vadd.f32 %v1068, %v1287
        %v1289 = vpop.f32.mrb[0].mxu0
        %v1290 = vpop.f32.mrb[0].mxu0
        %v1291 = vadd.f32 %v1068, %v1290
        %v1292 = vpop.f32.mrb[0].mxu0
        %1293 = vmatprep.mubr.bf16.mxu0 0
        %1294 = vmatmul.mubr.bf16.gmra.mrb[0].mxu0 %v1055
        %v1295 = vpop.f32.mrb[0].mxu0
        %v1296 = vadd.f32 %v1068, %v1295
        %v1297 = vpop.f32.mrb[0].mxu0
        %v1298 = vpop.f32.mrb[0].mxu0
        %v1299 = vadd.f32 %v1068, %v1298
        %v1300 = vpop.f32.mrb[0].mxu0
        %1301 = vdwg.mxu0
        %v1302 = vmul.f32 %v1235, 0.17677669
        %v1303 = vmul.f32 %v1239, 0.17677669
        %v1304 = vmul.f32 %v1245, 0.17677669
        %v1305 = vmul.f32 %v1249, 0.17677669
        %v1306 = vld [vmem:[%s763] sm:$0xf]
        %v1307 = vld [vmem:[%s763 + $0x4] sm:$0xf]
        %v1308 = vld [vmem:[%s763 + $0x8] sm:$0xf]
        %v1309 = vld [vmem:[%s763 + $0xc] sm:$0xf]
        %v1310 = vld [vmem:[%s763 + $0x10] sm:$0xf]
        %v1311 = vld [vmem:[%s763 + $0x14] sm:$0xf]
        %v1312 = vld [vmem:[%s763 + $0x18] sm:$0xf]
        %v1313 = vld [vmem:[%s763 + $0x1c] sm:$0xf]
        %v1314 = vld [vmem:[%s763 + $0x20] sm:$0xf]
        %v1315 = vld [vmem:[%s763 + $0x24] sm:$0xf]
        %v1316 = vld [vmem:[%s763 + $0x28] sm:$0xf]
        %v1317 = vld [vmem:[%s763 + $0x2c] sm:$0xf]
        %v1318 = vld [vmem:[%s763 + $0x30] sm:$0xf]
        %v1319 = vld [vmem:[%s763 + $0x34] sm:$0xf]
        %v1320 = vld [vmem:[%s763 + $0x38] sm:$0xf]
        %v1321 = vld [vmem:[%s763 + $0x3c] sm:$0xf]
        %v1322 = vpack.c.bf16 %v1303, %v1302
        %v1323 = vpack.c.bf16 %v1305, %v1304
        %v1324 = vpack.c.bf16 %v1241, %v1237
        %v1325 = vpack.c.bf16 %v1251, %v1247
        %v1326 = vpack.c.bf16 %v1291, %v1288
        %v1327 = vpack.c.bf16 %v1299, %v1296
        %vm1328 = vcmask 261120
        %v1330 = vsel %vm1328, %v1322, 0
        %v1333 = vsel %vm1328, %v1324, 0
        %1335 = vmatprep.subr.bf16.mxu0 0
        %1336 = vmatpush1.bf16.xpose.msra.mxu0 %v1333
        %1337 = vmatprep.subr.bf16.mxu0 0
        %1338 = vmatpush1.bf16.xpose.msra.mxu0 0
        %1339 = vmatprep.subr.bf16.mxu0 0
        %1340 = vmatpush1.bf16.xpose.msra.mxu0 0
        %1341 = vmatprep.subr.bf16.mxu0 0
        %1342 = vmatpush1.bf16.xpose.msra.mxu0 0
        %1343 = vmatprep.subr.bf16.mxu0 0
        %1344 = vmatpush1.bf16.xpose.msra.mxu0 0
        %1345 = vmatprep.subr.bf16.mxu0 0
        %1346 = vmatpush1.bf16.xpose.msra.mxu0 0
        %1347 = vmatprep.subr.bf16.mxu0 0
        %1348 = vmatpush1.bf16.xpose.msra.mxu0 0
        %1349 = vmatprep.subr.bf16.mxu0 0
        %1350 = vmatpush1.bf16.xpose.msra.mxu0 0
        %1351 = vmatprep.subr.bf16.mxu0 0
        %1352 = vmatpush1.bf16.xpose.msra.mxu0 0
        %1353 = vmatprep.subr.bf16.mxu0 0
        %1354 = vmatpush1.bf16.xpose.msra.mxu0 0
        %1355 = vmatprep.subr.bf16.mxu0 0
        %1356 = vmatpush1.bf16.xpose.msra.mxu0 0
        %1357 = vmatprep.subr.bf16.mxu0 0
        %1358 = vmatpush1.bf16.xpose.msra.mxu0 0
        %1359 = vmatprep.subr.bf16.mxu0 0
        %1360 = vmatpush1.bf16.xpose.msra.mxu0 0
        %1361 = vmatprep.subr.bf16.mxu0 0
        %1362 = vmatpush1.bf16.xpose.msra.mxu0 0
        %1363 = vmatprep.subr.bf16.mxu0 0
        %1364 = vmatpush1.bf16.xpose.msra.mxu0 0
        %1365 = vmatprep.subr.bf16.mxu0 0
        %1366 = vmatpush1.bf16.xpose.msra.mxu0 0
        %1367 = vmatprep.mubr.bf16.mxu0 0
        %1368 = vmatmul.mubr.bf16.gmra.mrb[0].mxu0 %v1330
        %v1369 = vpop.f32.mrb[0].mxu0
        %v1370 = vadd.f32 0.0, %v1369
        %v1371 = vpop.f32.mrb[0].mxu0
        %v1372 = vpop.f32.mrb[0].mxu0
        %v1373 = vadd.f32 0.0, %v1372
        %v1374 = vpop.f32.mrb[0].mxu0
        %1375 = vdwg.mxu0
        %v1377 = vsel %vm1328, %v1323, 0
        %v1380 = vsel %vm1328, %v1325, 0
        %1382 = vmatprep.subr.bf16.mxu0 0
        %1383 = vmatpush1.bf16.xpose.msra.mxu0 %v1380
        %1384 = vmatprep.subr.bf16.mxu0 0
        %1385 = vmatpush1.bf16.xpose.msra.mxu0 0
        %1386 = vmatprep.subr.bf16.mxu0 0
        %1387 = vmatpush1.bf16.xpose.msra.mxu0 0
        %1388 = vmatprep.subr.bf16.mxu0 0
        %1389 = vmatpush1.bf16.xpose.msra.mxu0 0
        %1390 = vmatprep.subr.bf16.mxu0 0
        %1391 = vmatpush1.bf16.xpose.msra.mxu0 0
        %1392 = vmatprep.subr.bf16.mxu0 0
        %1393 = vmatpush1.bf16.xpose.msra.mxu0 0
        %1394 = vmatprep.subr.bf16.mxu0 0
        %1395 = vmatpush1.bf16.xpose.msra.mxu0 0
        %1396 = vmatprep.subr.bf16.mxu0 0
        %1397 = vmatpush1.bf16.xpose.msra.mxu0 0
        %1398 = vmatprep.subr.bf16.mxu0 0
        %1399 = vmatpush1.bf16.xpose.msra.mxu0 0
        %1400 = vmatprep.subr.bf16.mxu0 0
        %1401 = vmatpush1.bf16.xpose.msra.mxu0 0
        %1402 = vmatprep.subr.bf16.mxu0 0
        %1403 = vmatpush1.bf16.xpose.msra.mxu0 0
        %1404 = vmatprep.subr.bf16.mxu0 0
        %1405 = vmatpush1.bf16.xpose.msra.mxu0 0
        %1406 = vmatprep.subr.bf16.mxu0 0
        %1407 = vmatpush1.bf16.xpose.msra.mxu0 0
        %1408 = vmatprep.subr.bf16.mxu0 0
        %1409 = vmatpush1.bf16.xpose.msra.mxu0 0
        %1410 = vmatprep.subr.bf16.mxu0 0
        %1411 = vmatpush1.bf16.xpose.msra.mxu0 0
        %1412 = vmatprep.subr.bf16.mxu0 0
        %1413 = vmatpush1.bf16.xpose.msra.mxu0 0
        %1414 = vmatprep.mubr.bf16.mxu0 0
        %1415 = vmatmul.mubr.bf16.gmra.mrb[0].mxu0 %v1377
        %v1416 = vpop.f32.mrb[0].mxu0
        %v1417 = vadd.f32 0.0, %v1416
        %v1418 = vpop.f32.mrb[0].mxu0
        %v1419 = vpop.f32.mrb[0].mxu0
        %v1420 = vadd.f32 0.0, %v1419
        %v1421 = vpop.f32.mrb[0].mxu0
        %1422 = vdwg.mxu0
        %vm1423 = vcmask 130048
        %v1424 = vsel %vm1423, %v1370, -inf
        %1425 = vmax.xlane.f32.xlu0 %v1424
        %v1426 = vpop.xlane.xlu0 %1425
        %v1427 = vsel %vm1423, %v1373, -inf
        %1428 = vmax.xlane.f32.xlu0 %v1427
        %v1429 = vpop.xlane.xlu0 %1428
        %v1430 = vsel %vm1423, %v1417, -inf
        %1431 = vmax.xlane.f32.xlu0 %v1430
        %v1432 = vpop.xlane.xlu0 %1431
        %v1433 = vsel %vm1423, %v1420, -inf
        %1434 = vmax.xlane.f32.xlu0 %v1433
        %v1435 = vpop.xlane.xlu0 %1434
        %v1436 = vsub.f32 %v1370, %v1426
        %v1437 = vsub.f32 %v1373, %v1429
        %v1438 = vsub.f32 %v1417, %v1432
        %v1439 = vsub.f32 %v1420, %v1435
        %v1440 = vmul.f32 %v1436, 1.442695
        %v1441 = vpow.pop %v1440
        %v1442 = vmul.f32 %v1437, 1.442695
        %v1443 = vpow.pop %v1442
        %v1444 = vmul.f32 %v1438, 1.442695
        %v1445 = vpow.pop %v1444
        %v1446 = vmul.f32 %v1439, 1.442695
        %v1447 = vpow.pop %v1446
        %v1448 = vsel %vm1423, %v1441, 0.0
        %1449 = vadd.xlane.f32.xlu0 %v1448
        %v1450 = vpop.xlane.xlu0 %1449
        %v1451 = vsel %vm1423, %v1443, 0.0
        %1452 = vadd.xlane.f32.xlu0 %v1451
        %v1453 = vpop.xlane.xlu0 %1452
        %v1454 = vsel %vm1423, %v1445, 0.0
        %1455 = vadd.xlane.f32.xlu0 %v1454
        %v1456 = vpop.xlane.xlu0 %1455
        %v1457 = vsel %vm1423, %v1447, 0.0
        %1458 = vadd.xlane.f32.xlu0 %v1457
        %v1459 = vpop.xlane.xlu0 %1458
        %v1460 = vrcp.pop %v1450
        %v1461 = vmul.f32 %v1441, %v1460
        %v1462 = vrcp.pop %v1453
        %v1463 = vmul.f32 %v1443, %v1462
        %v1464 = vrcp.pop %v1456
        %v1465 = vmul.f32 %v1445, %v1464
        %v1466 = vrcp.pop %v1459
        %v1467 = vmul.f32 %v1447, %v1466
        %v1468 = vpack.c.bf16 %v1463, %v1461
        %v1469 = vpack.c.bf16 %v1467, %v1465
        %v1471 = vsel %vm1423, %v1468, 0
        %1473 = vmatprep.subr.bf16.mxu0 0
        %1474 = vmatpush1.bf16.msra.mxu0 %v1326
        %1475 = vmatprep.subr.bf16.mxu0 0
        %1476 = vmatpush1.bf16.msra.mxu0 0
        %1477 = vmatprep.subr.bf16.mxu0 0
        %1478 = vmatpush1.bf16.msra.mxu0 0
        %1479 = vmatprep.subr.bf16.mxu0 0
        %1480 = vmatpush1.bf16.msra.mxu0 0
        %1481 = vmatprep.subr.bf16.mxu0 0
        %1482 = vmatpush1.bf16.msra.mxu0 0
        %1483 = vmatprep.subr.bf16.mxu0 0
        %1484 = vmatpush1.bf16.msra.mxu0 0
        %1485 = vmatprep.subr.bf16.mxu0 0
        %1486 = vmatpush1.bf16.msra.mxu0 0
        %1487 = vmatprep.subr.bf16.mxu0 0
        %1488 = vmatpush1.bf16.msra.mxu0 0
        %1489 = vmatprep.subr.bf16.mxu0 0
        %1490 = vmatpush1.bf16.msra.mxu0 0
        %1491 = vmatprep.subr.bf16.mxu0 0
        %1492 = vmatpush1.bf16.msra.mxu0 0
        %1493 = vmatprep.subr.bf16.mxu0 0
        %1494 = vmatpush1.bf16.msra.mxu0 0
        %1495 = vmatprep.subr.bf16.mxu0 0
        %1496 = vmatpush1.bf16.msra.mxu0 0
        %1497 = vmatprep.subr.bf16.mxu0 0
        %1498 = vmatpush1.bf16.msra.mxu0 0
        %1499 = vmatprep.subr.bf16.mxu0 0
        %1500 = vmatpush1.bf16.msra.mxu0 0
        %1501 = vmatprep.subr.bf16.mxu0 0
        %1502 = vmatpush1.bf16.msra.mxu0 0
        %1503 = vmatprep.subr.bf16.mxu0 0
        %1504 = vmatpush1.bf16.msra.mxu0 0
        %1505 = vmatprep.mubr.bf16.mxu0 0
        %1506 = vmatmul.mubr.bf16.gmra.mrb[0].mxu0 %v1471
        %v1507 = vpop.f32.mrb[0].mxu0
        %v1508 = vadd.f32 0.0, %v1507
        %v1509 = vpop.f32.mrb[0].mxu0
        %v1510 = vpop.f32.mrb[0].mxu0
        %v1511 = vadd.f32 0.0, %v1510
        %v1512 = vpop.f32.mrb[0].mxu0
        %1513 = vdwg.mxu0
        %v1515 = vsel %vm1423, %v1469, 0
        %1517 = vmatprep.subr.bf16.mxu0 0
        %1518 = vmatpush1.bf16.msra.mxu0 %v1327
        %1519 = vmatprep.subr.bf16.mxu0 0
        %1520 = vmatpush1.bf16.msra.mxu0 0
        %1521 = vmatprep.subr.bf16.mxu0 0
        %1522 = vmatpush1.bf16.msra.mxu0 0
        %1523 = vmatprep.subr.bf16.mxu0 0
        %1524 = vmatpush1.bf16.msra.mxu0 0
        %1525 = vmatprep.subr.bf16.mxu0 0
        %1526 = vmatpush1.bf16.msra.mxu0 0
        %1527 = vmatprep.subr.bf16.mxu0 0
        %1528 = vmatpush1.bf16.msra.mxu0 0
        %1529 = vmatprep.subr.bf16.mxu0 0
        %1530 = vmatpush1.bf16.msra.mxu0 0
        %1531 = vmatprep.subr.bf16.mxu0 0
        %1532 = vmatpush1.bf16.msra.mxu0 0
        %1533 = vmatprep.subr.bf16.mxu0 0
        %1534 = vmatpush1.bf16.msra.mxu0 0
        %1535 = vmatprep.subr.bf16.mxu0 0
        %1536 = vmatpush1.bf16.msra.mxu0 0
        %1537 = vmatprep.subr.bf16.mxu0 0
        %1538 = vmatpush1.bf16.msra.mxu0 0
        %1539 = vmatprep.subr.bf16.mxu0 0
        %1540 = vmatpush1.bf16.msra.mxu0 0
        %1541 = vmatprep.subr.bf16.mxu0 0
        %1542 = vmatpush1.bf16.msra.mxu0 0
        %1543 = vmatprep.subr.bf16.mxu0 0
        %1544 = vmatpush1.bf16.msra.mxu0 0
        %1545 = vmatprep.subr.bf16.mxu0 0
        %1546 = vmatpush1.bf16.msra.mxu0 0
        %1547 = vmatprep.subr.bf16.mxu0 0
        %1548 = vmatpush1.bf16.msra.mxu0 0
        %1549 = vmatprep.mubr.bf16.mxu0 0
        %1550 = vmatmul.mubr.bf16.gmra.mrb[0].mxu0 %v1515
        %v1551 = vpop.f32.mrb[0].mxu0
        %v1552 = vadd.f32 0.0, %v1551
        %v1553 = vpop.f32.mrb[0].mxu0
        %v1554 = vpop.f32.mrb[0].mxu0
        %v1555 = vadd.f32 0.0, %v1554
        %v1556 = vpop.f32.mrb[0].mxu0
        %1557 = vdwg.mxu0
        %v1558 = vpack.c.bf16 %v1511, %v1508
        %v1559 = vpack.c.bf16 %v1555, %v1552
        %1561 = vrot.lane.b32.xlu0 %v1322, 96
        %v1562 = vpop.permute.xlu0 %1561
        %1564 = vrot.lane.b32.xlu0 %v1324, 96
        %v1565 = vpop.permute.xlu0 %1564
        %v1567 = vsel %vm1328, %v1562, 0
        %v1570 = vsel %vm1328, %v1565, 0
        %1572 = vmatprep.subr.bf16.mxu0 0
        %1573 = vmatpush1.bf16.xpose.msra.mxu0 %v1570
        %1574 = vmatprep.subr.bf16.mxu0 0
        %1575 = vmatpush1.bf16.xpose.msra.mxu0 0
        %1576 = vmatprep.subr.bf16.mxu0 0
        %1577 = vmatpush1.bf16.xpose.msra.mxu0 0
        %1578 = vmatprep.subr.bf16.mxu0 0
        %1579 = vmatpush1.bf16.xpose.msra.mxu0 0
        %1580 = vmatprep.subr.bf16.mxu0 0
        %1581 = vmatpush1.bf16.xpose.msra.mxu0 0
        %1582 = vmatprep.subr.bf16.mxu0 0
        %1583 = vmatpush1.bf16.xpose.msra.mxu0 0
        %1584 = vmatprep.subr.bf16.mxu0 0
        %1585 = vmatpush1.bf16.xpose.msra.mxu0 0
        %1586 = vmatprep.subr.bf16.mxu0 0
        %1587 = vmatpush1.bf16.xpose.msra.mxu0 0
        %1588 = vmatprep.subr.bf16.mxu0 0
        %1589 = vmatpush1.bf16.xpose.msra.mxu0 0
        %1590 = vmatprep.subr.bf16.mxu0 0
        %1591 = vmatpush1.bf16.xpose.msra.mxu0 0
        %1592 = vmatprep.subr.bf16.mxu0 0
        %1593 = vmatpush1.bf16.xpose.msra.mxu0 0
        %1594 = vmatprep.subr.bf16.mxu0 0
        %1595 = vmatpush1.bf16.xpose.msra.mxu0 0
        %1596 = vmatprep.subr.bf16.mxu0 0
        %1597 = vmatpush1.bf16.xpose.msra.mxu0 0
        %1598 = vmatprep.subr.bf16.mxu0 0
        %1599 = vmatpush1.bf16.xpose.msra.mxu0 0
        %1600 = vmatprep.subr.bf16.mxu0 0
        %1601 = vmatpush1.bf16.xpose.msra.mxu0 0
        %1602 = vmatprep.subr.bf16.mxu0 0
        %1603 = vmatpush1.bf16.xpose.msra.mxu0 0
        %1604 = vmatprep.mubr.bf16.mxu0 0
        %1605 = vmatmul.mubr.bf16.gmra.mrb[0].mxu0 %v1567
        %v1606 = vpop.f32.mrb[0].mxu0
        %v1607 = vadd.f32 0.0, %v1606
        %v1608 = vpop.f32.mrb[0].mxu0
        %v1609 = vpop.f32.mrb[0].mxu0
        %v1610 = vadd.f32 0.0, %v1609
        %v1611 = vpop.f32.mrb[0].mxu0
        %1612 = vdwg.mxu0
        %1614 = vrot.lane.b32.xlu0 %v1323, 96
        %v1615 = vpop.permute.xlu0 %1614
        %1617 = vrot.lane.b32.xlu0 %v1325, 96
        %v1618 = vpop.permute.xlu0 %1617
        %v1620 = vsel %vm1328, %v1615, 0
        %v1623 = vsel %vm1328, %v1618, 0
        %1625 = vmatprep.subr.bf16.mxu0 0
        %1626 = vmatpush1.bf16.xpose.msra.mxu0 %v1623
        %1627 = vmatprep.subr.bf16.mxu0 0
        %1628 = vmatpush1.bf16.xpose.msra.mxu0 0
        %1629 = vmatprep.subr.bf16.mxu0 0
        %1630 = vmatpush1.bf16.xpose.msra.mxu0 0
        %1631 = vmatprep.subr.bf16.mxu0 0
        %1632 = vmatpush1.bf16.xpose.msra.mxu0 0
        %1633 = vmatprep.subr.bf16.mxu0 0
        %1634 = vmatpush1.bf16.xpose.msra.mxu0 0
        %1635 = vmatprep.subr.bf16.mxu0 0
        %1636 = vmatpush1.bf16.xpose.msra.mxu0 0
        %1637 = vmatprep.subr.bf16.mxu0 0
        %1638 = vmatpush1.bf16.xpose.msra.mxu0 0
        %1639 = vmatprep.subr.bf16.mxu0 0
        %1640 = vmatpush1.bf16.xpose.msra.mxu0 0
        %1641 = vmatprep.subr.bf16.mxu0 0
        %1642 = vmatpush1.bf16.xpose.msra.mxu0 0
        %1643 = vmatprep.subr.bf16.mxu0 0
        %1644 = vmatpush1.bf16.xpose.msra.mxu0 0
        %1645 = vmatprep.subr.bf16.mxu0 0
        %1646 = vmatpush1.bf16.xpose.msra.mxu0 0
        %1647 = vmatprep.subr.bf16.mxu0 0
        %1648 = vmatpush1.bf16.xpose.msra.mxu0 0
        %1649 = vmatprep.subr.bf16.mxu0 0
        %1650 = vmatpush1.bf16.xpose.msra.mxu0 0
        %1651 = vmatprep.subr.bf16.mxu0 0
        %1652 = vmatpush1.bf16.xpose.msra.mxu0 0
        %1653 = vmatprep.subr.bf16.mxu0 0
        %1654 = vmatpush1.bf16.xpose.msra.mxu0 0
        %1655 = vmatprep.subr.bf16.mxu0 0
        %1656 = vmatpush1.bf16.xpose.msra.mxu0 0
        %1657 = vmatprep.mubr.bf16.mxu0 0
        %1658 = vmatmul.mubr.bf16.gmra.mrb[0].mxu0 %v1620
        %v1659 = vpop.f32.mrb[0].mxu0
        %v1660 = vadd.f32 0.0, %v1659
        %v1661 = vpop.f32.mrb[0].mxu0
        %v1662 = vpop.f32.mrb[0].mxu0
        %v1663 = vadd.f32 0.0, %v1662
        %v1664 = vpop.f32.mrb[0].mxu0
        %1665 = vdwg.mxu0
        %v1666 = vsel %vm1423, %v1607, -inf
        %1667 = vmax.xlane.f32.xlu0 %v1666
        %v1668 = vpop.xlane.xlu0 %1667
        %v1669 = vsel %vm1423, %v1610, -inf
        %1670 = vmax.xlane.f32.xlu0 %v1669
        %v1671 = vpop.xlane.xlu0 %1670
        %v1672 = vsel %vm1423, %v1660, -inf
        %1673 = vmax.xlane.f32.xlu0 %v1672
        %v1674 = vpop.xlane.xlu0 %1673
        %v1675 = vsel %vm1423, %v1663, -inf
        %1676 = vmax.xlane.f32.xlu0 %v1675
        %v1677 = vpop.xlane.xlu0 %1676
        %v1678 = vsub.f32 %v1607, %v1668
        %v1679 = vsub.f32 %v1610, %v1671
        %v1680 = vsub.f32 %v1660, %v1674
        %v1681 = vsub.f32 %v1663, %v1677
        %v1682 = vmul.f32 %v1678, 1.442695
        %v1683 = vpow.pop %v1682
        %v1684 = vmul.f32 %v1679, 1.442695
        %v1685 = vpow.pop %v1684
        %v1686 = vmul.f32 %v1680, 1.442695
        %v1687 = vpow.pop %v1686
        %v1688 = vmul.f32 %v1681, 1.442695
        %v1689 = vpow.pop %v1688
        %v1690 = vsel %vm1423, %v1683, 0.0
        %1691 = vadd.xlane.f32.xlu0 %v1690
        %v1692 = vpop.xlane.xlu0 %1691
        %v1693 = vsel %vm1423, %v1685, 0.0
        %1694 = vadd.xlane.f32.xlu0 %v1693
        %v1695 = vpop.xlane.xlu0 %1694
        %v1696 = vsel %vm1423, %v1687, 0.0
        %1697 = vadd.xlane.f32.xlu0 %v1696
        %v1698 = vpop.xlane.xlu0 %1697
        %v1699 = vsel %vm1423, %v1689, 0.0
        %1700 = vadd.xlane.f32.xlu0 %v1699
        %v1701 = vpop.xlane.xlu0 %1700
        %v1702 = vrcp.pop %v1692
        %v1703 = vmul.f32 %v1683, %v1702
        %v1704 = vrcp.pop %v1695
        %v1705 = vmul.f32 %v1685, %v1704
        %v1706 = vrcp.pop %v1698
        %v1707 = vmul.f32 %v1687, %v1706
        %v1708 = vrcp.pop %v1701
        %v1709 = vmul.f32 %v1689, %v1708
        %v1710 = vpack.c.bf16 %v1705, %v1703
        %v1711 = vpack.c.bf16 %v1709, %v1707
        %1713 = vrot.lane.b32.xlu0 %v1326, 96
        %v1714 = vpop.permute.xlu0 %1713
        %v1717 = vsel %vm1423, %v1710, 0
        %1719 = vmatprep.subr.bf16.mxu0 0
        %1720 = vmatpush1.bf16.msra.mxu0 %v1714
        %1721 = vmatprep.subr.bf16.mxu0 0
        %1722 = vmatpush1.bf16.msra.mxu0 0
        %1723 = vmatprep.subr.bf16.mxu0 0
        %1724 = vmatpush1.bf16.msra.mxu0 0
        %1725 = vmatprep.subr.bf16.mxu0 0
        %1726 = vmatpush1.bf16.msra.mxu0 0
        %1727 = vmatprep.subr.bf16.mxu0 0
        %1728 = vmatpush1.bf16.msra.mxu0 0
        %1729 = vmatprep.subr.bf16.mxu0 0
        %1730 = vmatpush1.bf16.msra.mxu0 0
        %1731 = vmatprep.subr.bf16.mxu0 0
        %1732 = vmatpush1.bf16.msra.mxu0 0
        %1733 = vmatprep.subr.bf16.mxu0 0
        %1734 = vmatpush1.bf16.msra.mxu0 0
        %1735 = vmatprep.subr.bf16.mxu0 0
        %1736 = vmatpush1.bf16.msra.mxu0 0
        %1737 = vmatprep.subr.bf16.mxu0 0
        %1738 = vmatpush1.bf16.msra.mxu0 0
        %1739 = vmatprep.subr.bf16.mxu0 0
        %1740 = vmatpush1.bf16.msra.mxu0 0
        %1741 = vmatprep.subr.bf16.mxu0 0
        %1742 = vmatpush1.bf16.msra.mxu0 0
        %1743 = vmatprep.subr.bf16.mxu0 0
        %1744 = vmatpush1.bf16.msra.mxu0 0
        %1745 = vmatprep.subr.bf16.mxu0 0
        %1746 = vmatpush1.bf16.msra.mxu0 0
        %1747 = vmatprep.subr.bf16.mxu0 0
        %1748 = vmatpush1.bf16.msra.mxu0 0
        %1749 = vmatprep.subr.bf16.mxu0 0
        %1750 = vmatpush1.bf16.msra.mxu0 0
        %1751 = vmatprep.mubr.bf16.mxu0 0
        %1752 = vmatmul.mubr.bf16.gmra.mrb[0].mxu0 %v1717
        %v1753 = vpop.f32.mrb[0].mxu0
        %v1754 = vadd.f32 0.0, %v1753
        %v1755 = vpop.f32.mrb[0].mxu0
        %v1756 = vpop.f32.mrb[0].mxu0
        %v1757 = vadd.f32 0.0, %v1756
        %v1758 = vpop.f32.mrb[0].mxu0
        %1759 = vdwg.mxu0
        %1761 = vrot.lane.b32.xlu0 %v1327, 96
        %v1762 = vpop.permute.xlu0 %1761
        %v1765 = vsel %vm1423, %v1711, 0
        %1767 = vmatprep.subr.bf16.mxu0 0
        %1768 = vmatpush1.bf16.msra.mxu0 %v1762
        %1769 = vmatprep.subr.bf16.mxu0 0
        %1770 = vmatpush1.bf16.msra.mxu0 0
        %1771 = vmatprep.subr.bf16.mxu0 0
        %1772 = vmatpush1.bf16.msra.mxu0 0
        %1773 = vmatprep.subr.bf16.mxu0 0
        %1774 = vmatpush1.bf16.msra.mxu0 0
        %1775 = vmatprep.subr.bf16.mxu0 0
        %1776 = vmatpush1.bf16.msra.mxu0 0
        %1777 = vmatprep.subr.bf16.mxu0 0
        %1778 = vmatpush1.bf16.msra.mxu0 0
        %1779 = vmatprep.subr.bf16.mxu0 0
        %1780 = vmatpush1.bf16.msra.mxu0 0
        %1781 = vmatprep.subr.bf16.mxu0 0
        %1782 = vmatpush1.bf16.msra.mxu0 0
        %1783 = vmatprep.subr.bf16.mxu0 0
        %1784 = vmatpush1.bf16.msra.mxu0 0
        %1785 = vmatprep.subr.bf16.mxu0 0
        %1786 = vmatpush1.bf16.msra.mxu0 0
        %1787 = vmatprep.subr.bf16.mxu0 0
        %1788 = vmatpush1.bf16.msra.mxu0 0
        %1789 = vmatprep.subr.bf16.mxu0 0
        %1790 = vmatpush1.bf16.msra.mxu0 0
        %1791 = vmatprep.subr.bf16.mxu0 0
        %1792 = vmatpush1.bf16.msra.mxu0 0
        %1793 = vmatprep.subr.bf16.mxu0 0
        %1794 = vmatpush1.bf16.msra.mxu0 0
        %1795 = vmatprep.subr.bf16.mxu0 0
        %1796 = vmatpush1.bf16.msra.mxu0 0
        %1797 = vmatprep.subr.bf16.mxu0 0
        %1798 = vmatpush1.bf16.msra.mxu0 0
        %1799 = vmatprep.mubr.bf16.mxu0 0
        %1800 = vmatmul.mubr.bf16.gmra.mrb[0].mxu0 %v1765
        %v1801 = vpop.f32.mrb[0].mxu0
        %v1802 = vadd.f32 0.0, %v1801
        %v1803 = vpop.f32.mrb[0].mxu0
        %v1804 = vpop.f32.mrb[0].mxu0
        %v1805 = vadd.f32 0.0, %v1804
        %v1806 = vpop.f32.mrb[0].mxu0
        %1807 = vdwg.mxu0
        %v1808 = vpack.c.bf16 %v1757, %v1754
        %v1809 = vpack.c.bf16 %v1805, %v1802
        %v1814 = vunpack.c.l.b16 %v1310
        %v1815 = vunpack.c.l.b16 %v1311
        %v1816 = vunpack.c.l.b16 %v1312
        %v1817 = vunpack.c.l.b16 %v1313
        %v1818 = vpack.c.b16 %v1815, %v1814
        %v1819 = vpack.c.b16 %v1817, %v1816
        %v1823 = vsel %vm1328, %v1808, 0
        %v1826 = vsel %vm1328, %v1809, 0
        %1828 = vmatprep.subr.bf16.mxu0 0
        %1829 = vmatpush1.bf16.msra.mxu0 %v1818
        %1830 = vmatprep.subr.bf16.mxu0 0
        %1831 = vmatpush1.bf16.msra.mxu0 %v1819
        %1832 = vmatprep.subr.bf16.mxu0 0
        %1833 = vmatpush1.bf16.msra.mxu0 0
        %1834 = vmatprep.subr.bf16.mxu0 0
        %1835 = vmatpush1.bf16.msra.mxu0 0
        %1836 = vmatprep.subr.bf16.mxu0 0
        %1837 = vmatpush1.bf16.msra.mxu0 0
        %1838 = vmatprep.subr.bf16.mxu0 0
        %1839 = vmatpush1.bf16.msra.mxu0 0
        %1840 = vmatprep.subr.bf16.mxu0 0
        %1841 = vmatpush1.bf16.msra.mxu0 0
        %1842 = vmatprep.subr.bf16.mxu0 0
        %1843 = vmatpush1.bf16.msra.mxu0 0
        %1844 = vmatprep.subr.bf16.mxu0 0
        %1845 = vmatpush1.bf16.msra.mxu0 0
        %1846 = vmatprep.subr.bf16.mxu0 0
        %1847 = vmatpush1.bf16.msra.mxu0 0
        %1848 = vmatprep.subr.bf16.mxu0 0
        %1849 = vmatpush1.bf16.msra.mxu0 0
        %1850 = vmatprep.subr.bf16.mxu0 0
        %1851 = vmatpush1.bf16.msra.mxu0 0
        %1852 = vmatprep.subr.bf16.mxu0 0
        %1853 = vmatpush1.bf16.msra.mxu0 0
        %1854 = vmatprep.subr.bf16.mxu0 0
        %1855 = vmatpush1.bf16.msra.mxu0 0
        %1856 = vmatprep.subr.bf16.mxu0 0
        %1857 = vmatpush1.bf16.msra.mxu0 0
        %1858 = vmatprep.subr.bf16.mxu0 0
        %1859 = vmatpush1.bf16.msra.mxu0 0
        %1860 = vmatprep.mubr.bf16.mxu0 0
        %1861 = vmatmul.mubr.bf16.gmra.mrb[0].mxu0 %v1823
        %v1862 = vpop.f32.mrb[0].mxu0
        %v1863 = vadd.f32 0.0, %v1862
        %v1864 = vpop.f32.mrb[0].mxu0
        %v1865 = vpop.f32.mrb[0].mxu0
        %v1866 = vadd.f32 0.0, %v1865
        %v1867 = vpop.f32.mrb[0].mxu0
        %1868 = vmatprep.mubr.bf16.mxu0 0
        %1869 = vmatmul.mubr.bf16.gmra.mrb[0].mxu0 %v1826
        %v1870 = vpop.f32.mrb[0].mxu0
        %v1871 = vadd.f32 0.0, %v1870
        %v1872 = vpop.f32.mrb[0].mxu0
        %v1873 = vpop.f32.mrb[0].mxu0
        %v1874 = vadd.f32 0.0, %v1873
        %v1875 = vpop.f32.mrb[0].mxu0
        %1876 = vdwg.mxu0
        %v1881 = vunpack.c.l.b16 %v1306
        %v1882 = vunpack.c.l.b16 %v1307
        %v1883 = vunpack.c.l.b16 %v1308
        %v1884 = vunpack.c.l.b16 %v1309
        %v1885 = vpack.c.b16 %v1882, %v1881
        %v1886 = vpack.c.b16 %v1884, %v1883
        %v1890 = vsel %vm1328, %v1558, 0
        %v1893 = vsel %vm1328, %v1559, 0
        %1895 = vmatprep.subr.bf16.mxu0 0
        %1896 = vmatpush1.bf16.msra.mxu0 %v1885
        %1897 = vmatprep.subr.bf16.mxu0 0
        %1898 = vmatpush1.bf16.msra.mxu0 %v1886
        %1899 = vmatprep.subr.bf16.mxu0 0
        %1900 = vmatpush1.bf16.msra.mxu0 0
        %1901 = vmatprep.subr.bf16.mxu0 0
        %1902 = vmatpush1.bf16.msra.mxu0 0
        %1903 = vmatprep.subr.bf16.mxu0 0
        %1904 = vmatpush1.bf16.msra.mxu0 0
        %1905 = vmatprep.subr.bf16.mxu0 0
        %1906 = vmatpush1.bf16.msra.mxu0 0
        %1907 = vmatprep.subr.bf16.mxu0 0
        %1908 = vmatpush1.bf16.msra.mxu0 0
        %1909 = vmatprep.subr.bf16.mxu0 0
        %1910 = vmatpush1.bf16.msra.mxu0 0
        %1911 = vmatprep.subr.bf16.mxu0 0
        %1912 = vmatpush1.bf16.msra.mxu0 0
        %1913 = vmatprep.subr.bf16.mxu0 0
        %1914 = vmatpush1.bf16.msra.mxu0 0
        %1915 = vmatprep.subr.bf16.mxu0 0
        %1916 = vmatpush1.bf16.msra.mxu0 0
        %1917 = vmatprep.subr.bf16.mxu0 0
        %1918 = vmatpush1.bf16.msra.mxu0 0
        %1919 = vmatprep.subr.bf16.mxu0 0
        %1920 = vmatpush1.bf16.msra.mxu0 0
        %1921 = vmatprep.subr.bf16.mxu0 0
        %1922 = vmatpush1.bf16.msra.mxu0 0
        %1923 = vmatprep.subr.bf16.mxu0 0
        %1924 = vmatpush1.bf16.msra.mxu0 0
        %1925 = vmatprep.subr.bf16.mxu0 0
        %1926 = vmatpush1.bf16.msra.mxu0 0
        %1927 = vmatprep.mubr.bf16.mxu0 0
        %1928 = vmatmul.mubr.bf16.gmra.mrb[0].mxu0 %v1890
        %v1929 = vpop.f32.mrb[0].mxu0
        %v1930 = vadd.f32 %v1863, %v1929
        %v1931 = vpop.f32.mrb[0].mxu0
        %v1932 = vpop.f32.mrb[0].mxu0
        %v1933 = vadd.f32 %v1866, %v1932
        %v1934 = vpop.f32.mrb[0].mxu0
        %1935 = vmatprep.mubr.bf16.mxu0 0
        %1936 = vmatmul.mubr.bf16.gmra.mrb[0].mxu0 %v1893
        %v1937 = vpop.f32.mrb[0].mxu0
        %v1938 = vadd.f32 %v1871, %v1937
        %v1939 = vpop.f32.mrb[0].mxu0
        %v1940 = vpop.f32.mrb[0].mxu0
        %v1941 = vadd.f32 %v1874, %v1940
        %v1942 = vpop.f32.mrb[0].mxu0
        %1943 = vdwg.mxu0
        %1944 = vrot.lane.b32.xlu0 %v1322, 64
        %v1945 = vpop.permute.xlu0 %1944
        %1946 = vrot.lane.b32.xlu0 %v1324, 64
        %v1947 = vpop.permute.xlu0 %1946
        %v1949 = vsel %vm1328, %v1945, 0
        %v1952 = vsel %vm1328, %v1947, 0
        %1954 = vmatprep.subr.bf16.mxu0 0
        %1955 = vmatpush1.bf16.xpose.msra.mxu0 %v1952
        %1956 = vmatprep.subr.bf16.mxu0 0
        %1957 = vmatpush1.bf16.xpose.msra.mxu0 0
        %1958 = vmatprep.subr.bf16.mxu0 0
        %1959 = vmatpush1.bf16.xpose.msra.mxu0 0
        %1960 = vmatprep.subr.bf16.mxu0 0
        %1961 = vmatpush1.bf16.xpose.msra.mxu0 0
        %1962 = vmatprep.subr.bf16.mxu0 0
        %1963 = vmatpush1.bf16.xpose.msra.mxu0 0
        %1964 = vmatprep.subr.bf16.mxu0 0
        %1965 = vmatpush1.bf16.xpose.msra.mxu0 0
        %1966 = vmatprep.subr.bf16.mxu0 0
        %1967 = vmatpush1.bf16.xpose.msra.mxu0 0
        %1968 = vmatprep.subr.bf16.mxu0 0
        %1969 = vmatpush1.bf16.xpose.msra.mxu0 0
        %1970 = vmatprep.subr.bf16.mxu0 0
        %1971 = vmatpush1.bf16.xpose.msra.mxu0 0
        %1972 = vmatprep.subr.bf16.mxu0 0
        %1973 = vmatpush1.bf16.xpose.msra.mxu0 0
        %1974 = vmatprep.subr.bf16.mxu0 0
        %1975 = vmatpush1.bf16.xpose.msra.mxu0 0
        %1976 = vmatprep.subr.bf16.mxu0 0
        %1977 = vmatpush1.bf16.xpose.msra.mxu0 0
        %1978 = vmatprep.subr.bf16.mxu0 0
        %1979 = vmatpush1.bf16.xpose.msra.mxu0 0
        %1980 = vmatprep.subr.bf16.mxu0 0
        %1981 = vmatpush1.bf16.xpose.msra.mxu0 0
        %1982 = vmatprep.subr.bf16.mxu0 0
        %1983 = vmatpush1.bf16.xpose.msra.mxu0 0
        %1984 = vmatprep.subr.bf16.mxu0 0
        %1985 = vmatpush1.bf16.xpose.msra.mxu0 0
        %1986 = vmatprep.mubr.bf16.mxu0 0
        %1987 = vmatmul.mubr.bf16.gmra.mrb[0].mxu0 %v1949
        %v1988 = vpop.f32.mrb[0].mxu0
        %v1989 = vadd.f32 0.0, %v1988
        %v1990 = vpop.f32.mrb[0].mxu0
        %v1991 = vpop.f32.mrb[0].mxu0
        %v1992 = vadd.f32 0.0, %v1991
        %v1993 = vpop.f32.mrb[0].mxu0
        %1994 = vdwg.mxu0
        %1995 = vrot.lane.b32.xlu0 %v1323, 64
        %v1996 = vpop.permute.xlu0 %1995
        %1997 = vrot.lane.b32.xlu0 %v1325, 64
        %v1998 = vpop.permute.xlu0 %1997
        %v2000 = vsel %vm1328, %v1996, 0
        %v2003 = vsel %vm1328, %v1998, 0
        %2005 = vmatprep.subr.bf16.mxu0 0
        %2006 = vmatpush1.bf16.xpose.msra.mxu0 %v2003
        %2007 = vmatprep.subr.bf16.mxu0 0
        %2008 = vmatpush1.bf16.xpose.msra.mxu0 0
        %2009 = vmatprep.subr.bf16.mxu0 0
        %2010 = vmatpush1.bf16.xpose.msra.mxu0 0
        %2011 = vmatprep.subr.bf16.mxu0 0
        %2012 = vmatpush1.bf16.xpose.msra.mxu0 0
        %2013 = vmatprep.subr.bf16.mxu0 0
        %2014 = vmatpush1.bf16.xpose.msra.mxu0 0
        %2015 = vmatprep.subr.bf16.mxu0 0
        %2016 = vmatpush1.bf16.xpose.msra.mxu0 0
        %2017 = vmatprep.subr.bf16.mxu0 0
        %2018 = vmatpush1.bf16.xpose.msra.mxu0 0
        %2019 = vmatprep.subr.bf16.mxu0 0
        %2020 = vmatpush1.bf16.xpose.msra.mxu0 0
        %2021 = vmatprep.subr.bf16.mxu0 0
        %2022 = vmatpush1.bf16.xpose.msra.mxu0 0
        %2023 = vmatprep.subr.bf16.mxu0 0
        %2024 = vmatpush1.bf16.xpose.msra.mxu0 0
        %2025 = vmatprep.subr.bf16.mxu0 0
        %2026 = vmatpush1.bf16.xpose.msra.mxu0 0
        %2027 = vmatprep.subr.bf16.mxu0 0
        %2028 = vmatpush1.bf16.xpose.msra.mxu0 0
        %2029 = vmatprep.subr.bf16.mxu0 0
        %2030 = vmatpush1.bf16.xpose.msra.mxu0 0
        %2031 = vmatprep.subr.bf16.mxu0 0
        %2032 = vmatpush1.bf16.xpose.msra.mxu0 0
        %2033 = vmatprep.subr.bf16.mxu0 0
        %2034 = vmatpush1.bf16.xpose.msra.mxu0 0
        %2035 = vmatprep.subr.bf16.mxu0 0
        %2036 = vmatpush1.bf16.xpose.msra.mxu0 0
        %2037 = vmatprep.mubr.bf16.mxu0 0
        %2038 = vmatmul.mubr.bf16.gmra.mrb[0].mxu0 %v2000
        %v2039 = vpop.f32.mrb[0].mxu0
        %v2040 = vadd.f32 0.0, %v2039
        %v2041 = vpop.f32.mrb[0].mxu0
        %v2042 = vpop.f32.mrb[0].mxu0
        %v2043 = vadd.f32 0.0, %v2042
        %v2044 = vpop.f32.mrb[0].mxu0
        %2045 = vdwg.mxu0
        %v2046 = vsel %vm1423, %v1989, -inf
        %2047 = vmax.xlane.f32.xlu0 %v2046
        %v2048 = vpop.xlane.xlu0 %2047
        %v2049 = vsel %vm1423, %v1992, -inf
        %2050 = vmax.xlane.f32.xlu0 %v2049
        %v2051 = vpop.xlane.xlu0 %2050
        %v2052 = vsel %vm1423, %v2040, -inf
        %2053 = vmax.xlane.f32.xlu0 %v2052
        %v2054 = vpop.xlane.xlu0 %2053
        %v2055 = vsel %vm1423, %v2043, -inf
        %2056 = vmax.xlane.f32.xlu0 %v2055
        %v2057 = vpop.xlane.xlu0 %2056
        %v2058 = vsub.f32 %v1989, %v2048
        %v2059 = vsub.f32 %v1992, %v2051
        %v2060 = vsub.f32 %v2040, %v2054
        %v2061 = vsub.f32 %v2043, %v2057
        %v2062 = vmul.f32 %v2058, 1.442695
        %v2063 = vpow.pop %v2062
        %v2064 = vmul.f32 %v2059, 1.442695
        %v2065 = vpow.pop %v2064
        %v2066 = vmul.f32 %v2060, 1.442695
        %v2067 = vpow.pop %v2066
        %v2068 = vmul.f32 %v2061, 1.442695
        %v2069 = vpow.pop %v2068
        %v2070 = vsel %vm1423, %v2063, 0.0
        %2071 = vadd.xlane.f32.xlu0 %v2070
        %v2072 = vpop.xlane.xlu0 %2071
        %v2073 = vsel %vm1423, %v2065, 0.0
        %2074 = vadd.xlane.f32.xlu0 %v2073
        %v2075 = vpop.xlane.xlu0 %2074
        %v2076 = vsel %vm1423, %v2067, 0.0
        %2077 = vadd.xlane.f32.xlu0 %v2076
        %v2078 = vpop.xlane.xlu0 %2077
        %v2079 = vsel %vm1423, %v2069, 0.0
        %2080 = vadd.xlane.f32.xlu0 %v2079
        %v2081 = vpop.xlane.xlu0 %2080
        %v2082 = vrcp.pop %v2072
        %v2083 = vmul.f32 %v2063, %v2082
        %v2084 = vrcp.pop %v2075
        %v2085 = vmul.f32 %v2065, %v2084
        %v2086 = vrcp.pop %v2078
        %v2087 = vmul.f32 %v2067, %v2086
        %v2088 = vrcp.pop %v2081
        %v2089 = vmul.f32 %v2069, %v2088
        %v2090 = vpack.c.bf16 %v2085, %v2083
        %v2091 = vpack.c.bf16 %v2089, %v2087
        %2092 = vrot.lane.b32.xlu0 %v1326, 64
        %v2093 = vpop.permute.xlu0 %2092
        %v2096 = vsel %vm1423, %v2090, 0
        %2098 = vmatprep.subr.bf16.mxu0 0
        %2099 = vmatpush1.bf16.msra.mxu0 %v2093
        %2100 = vmatprep.subr.bf16.mxu0 0
        %2101 = vmatpush1.bf16.msra.mxu0 0
        %2102 = vmatprep.subr.bf16.mxu0 0
        %2103 = vmatpush1.bf16.msra.mxu0 0
        %2104 = vmatprep.subr.bf16.mxu0 0
        %2105 = vmatpush1.bf16.msra.mxu0 0
        %2106 = vmatprep.subr.bf16.mxu0 0
        %2107 = vmatpush1.bf16.msra.mxu0 0
        %2108 = vmatprep.subr.bf16.mxu0 0
        %2109 = vmatpush1.bf16.msra.mxu0 0
        %2110 = vmatprep.subr.bf16.mxu0 0
        %2111 = vmatpush1.bf16.msra.mxu0 0
        %2112 = vmatprep.subr.bf16.mxu0 0
        %2113 = vmatpush1.bf16.msra.mxu0 0
        %2114 = vmatprep.subr.bf16.mxu0 0
        %2115 = vmatpush1.bf16.msra.mxu0 0
        %2116 = vmatprep.subr.bf16.mxu0 0
        %2117 = vmatpush1.bf16.msra.mxu0 0
        %2118 = vmatprep.subr.bf16.mxu0 0
        %2119 = vmatpush1.bf16.msra.mxu0 0
        %2120 = vmatprep.subr.bf16.mxu0 0
        %2121 = vmatpush1.bf16.msra.mxu0 0
        %2122 = vmatprep.subr.bf16.mxu0 0
        %2123 = vmatpush1.bf16.msra.mxu0 0
        %2124 = vmatprep.subr.bf16.mxu0 0
        %2125 = vmatpush1.bf16.msra.mxu0 0
        %2126 = vmatprep.subr.bf16.mxu0 0
        %2127 = vmatpush1.bf16.msra.mxu0 0
        %2128 = vmatprep.subr.bf16.mxu0 0
        %2129 = vmatpush1.bf16.msra.mxu0 0
        %2130 = vmatprep.mubr.bf16.mxu0 0
        %2131 = vmatmul.mubr.bf16.gmra.mrb[0].mxu0 %v2096
        %v2132 = vpop.f32.mrb[0].mxu0
        %v2133 = vadd.f32 0.0, %v2132
        %v2134 = vpop.f32.mrb[0].mxu0
        %v2135 = vpop.f32.mrb[0].mxu0
        %v2136 = vadd.f32 0.0, %v2135
        %v2137 = vpop.f32.mrb[0].mxu0
        %2138 = vdwg.mxu0
        %2139 = vrot.lane.b32.xlu0 %v1327, 64
        %v2140 = vpop.permute.xlu0 %2139
        %v2143 = vsel %vm1423, %v2091, 0
        %2145 = vmatprep.subr.bf16.mxu0 0
        %2146 = vmatpush1.bf16.msra.mxu0 %v2140
        %2147 = vmatprep.subr.bf16.mxu0 0
        %2148 = vmatpush1.bf16.msra.mxu0 0
        %2149 = vmatprep.subr.bf16.mxu0 0
        %2150 = vmatpush1.bf16.msra.mxu0 0
        %2151 = vmatprep.subr.bf16.mxu0 0
        %2152 = vmatpush1.bf16.msra.mxu0 0
        %2153 = vmatprep.subr.bf16.mxu0 0
        %2154 = vmatpush1.bf16.msra.mxu0 0
        %2155 = vmatprep.subr.bf16.mxu0 0
        %2156 = vmatpush1.bf16.msra.mxu0 0
        %2157 = vmatprep.subr.bf16.mxu0 0
        %2158 = vmatpush1.bf16.msra.mxu0 0
        %2159 = vmatprep.subr.bf16.mxu0 0
        %2160 = vmatpush1.bf16.msra.mxu0 0
        %2161 = vmatprep.subr.bf16.mxu0 0
        %2162 = vmatpush1.bf16.msra.mxu0 0
        %2163 = vmatprep.subr.bf16.mxu0 0
        %2164 = vmatpush1.bf16.msra.mxu0 0
        %2165 = vmatprep.subr.bf16.mxu0 0
        %2166 = vmatpush1.bf16.msra.mxu0 0
        %2167 = vmatprep.subr.bf16.mxu0 0
        %2168 = vmatpush1.bf16.msra.mxu0 0
        %2169 = vmatprep.subr.bf16.mxu0 0
        %2170 = vmatpush1.bf16.msra.mxu0 0
        %2171 = vmatprep.subr.bf16.mxu0 0
        %2172 = vmatpush1.bf16.msra.mxu0 0
        %2173 = vmatprep.subr.bf16.mxu0 0
        %2174 = vmatpush1.bf16.msra.mxu0 0
        %2175 = vmatprep.subr.bf16.mxu0 0
        %2176 = vmatpush1.bf16.msra.mxu0 0
        %2177 = vmatprep.mubr.bf16.mxu0 0
        %2178 = vmatmul.mubr.bf16.gmra.mrb[0].mxu0 %v2143
        %v2179 = vpop.f32.mrb[0].mxu0
        %v2180 = vadd.f32 0.0, %v2179
        %v2181 = vpop.f32.mrb[0].mxu0
        %v2182 = vpop.f32.mrb[0].mxu0
        %v2183 = vadd.f32 0.0, %v2182
        %v2184 = vpop.f32.mrb[0].mxu0
        %2185 = vdwg.mxu0
        %v2186 = vpack.c.bf16 %v2136, %v2133
        %v2187 = vpack.c.bf16 %v2183, %v2180
        %v2192 = vunpack.c.l.b16 %v1314
        %v2193 = vunpack.c.l.b16 %v1315
        %v2194 = vunpack.c.l.b16 %v1316
        %v2195 = vunpack.c.l.b16 %v1317
        %v2196 = vpack.c.b16 %v2193, %v2192
        %v2197 = vpack.c.b16 %v2195, %v2194
        %v2201 = vsel %vm1328, %v2186, 0
        %v2204 = vsel %vm1328, %v2187, 0
        %2206 = vmatprep.subr.bf16.mxu0 0
        %2207 = vmatpush1.bf16.msra.mxu0 %v2196
        %2208 = vmatprep.subr.bf16.mxu0 0
        %2209 = vmatpush1.bf16.msra.mxu0 %v2197
        %2210 = vmatprep.subr.bf16.mxu0 0
        %2211 = vmatpush1.bf16.msra.mxu0 0
        %2212 = vmatprep.subr.bf16.mxu0 0
        %2213 = vmatpush1.bf16.msra.mxu0 0
        %2214 = vmatprep.subr.bf16.mxu0 0
        %2215 = vmatpush1.bf16.msra.mxu0 0
        %2216 = vmatprep.subr.bf16.mxu0 0
        %2217 = vmatpush1.bf16.msra.mxu0 0
        %2218 = vmatprep.subr.bf16.mxu0 0
        %2219 = vmatpush1.bf16.msra.mxu0 0
        %2220 = vmatprep.subr.bf16.mxu0 0
        %2221 = vmatpush1.bf16.msra.mxu0 0
        %2222 = vmatprep.subr.bf16.mxu0 0
        %2223 = vmatpush1.bf16.msra.mxu0 0
        %2224 = vmatprep.subr.bf16.mxu0 0
        %2225 = vmatpush1.bf16.msra.mxu0 0
        %2226 = vmatprep.subr.bf16.mxu0 0
        %2227 = vmatpush1.bf16.msra.mxu0 0
        %2228 = vmatprep.subr.bf16.mxu0 0
        %2229 = vmatpush1.bf16.msra.mxu0 0
        %2230 = vmatprep.subr.bf16.mxu0 0
        %2231 = vmatpush1.bf16.msra.mxu0 0
        %2232 = vmatprep.subr.bf16.mxu0 0
        %2233 = vmatpush1.bf16.msra.mxu0 0
        %2234 = vmatprep.subr.bf16.mxu0 0
        %2235 = vmatpush1.bf16.msra.mxu0 0
        %2236 = vmatprep.subr.bf16.mxu0 0
        %2237 = vmatpush1.bf16.msra.mxu0 0
        %2238 = vmatprep.mubr.bf16.mxu0 0
        %2239 = vmatmul.mubr.bf16.gmra.mrb[0].mxu0 %v2201
        %v2240 = vpop.f32.mrb[0].mxu0
        %v2241 = vadd.f32 0.0, %v2240
        %v2242 = vpop.f32.mrb[0].mxu0
        %v2243 = vpop.f32.mrb[0].mxu0
        %v2244 = vadd.f32 0.0, %v2243
        %v2245 = vpop.f32.mrb[0].mxu0
        %2246 = vmatprep.mubr.bf16.mxu0 0
        %2247 = vmatmul.mubr.bf16.gmra.mrb[0].mxu0 %v2204
        %v2248 = vpop.f32.mrb[0].mxu0
        %v2249 = vadd.f32 0.0, %v2248
        %v2250 = vpop.f32.mrb[0].mxu0
        %v2251 = vpop.f32.mrb[0].mxu0
        %v2252 = vadd.f32 0.0, %v2251
        %v2253 = vpop.f32.mrb[0].mxu0
        %2254 = vdwg.mxu0
        %v2255 = vadd.f32 %v1930, %v2241
        %v2256 = vadd.f32 %v1933, %v2244
        %v2257 = vadd.f32 %v1938, %v2249
        %v2258 = vadd.f32 %v1941, %v2252
        %2259 = vrot.lane.b32.xlu0 %v1322, 32
        %v2260 = vpop.permute.xlu0 %2259
        %2261 = vrot.lane.b32.xlu0 %v1324, 32
        %v2262 = vpop.permute.xlu0 %2261
        %v2264 = vsel %vm1328, %v2260, 0
        %v2267 = vsel %vm1328, %v2262, 0
        %2269 = vmatprep.subr.bf16.mxu0 0
        %2270 = vmatpush1.bf16.xpose.msra.mxu0 %v2267
        %2271 = vmatprep.subr.bf16.mxu0 0
        %2272 = vmatpush1.bf16.xpose.msra.mxu0 0
        %2273 = vmatprep.subr.bf16.mxu0 0
        %2274 = vmatpush1.bf16.xpose.msra.mxu0 0
        %2275 = vmatprep.subr.bf16.mxu0 0
        %2276 = vmatpush1.bf16.xpose.msra.mxu0 0
        %2277 = vmatprep.subr.bf16.mxu0 0
        %2278 = vmatpush1.bf16.xpose.msra.mxu0 0
        %2279 = vmatprep.subr.bf16.mxu0 0
        %2280 = vmatpush1.bf16.xpose.msra.mxu0 0
        %2281 = vmatprep.subr.bf16.mxu0 0
        %2282 = vmatpush1.bf16.xpose.msra.mxu0 0
        %2283 = vmatprep.subr.bf16.mxu0 0
        %2284 = vmatpush1.bf16.xpose.msra.mxu0 0
        %2285 = vmatprep.subr.bf16.mxu0 0
        %2286 = vmatpush1.bf16.xpose.msra.mxu0 0
        %2287 = vmatprep.subr.bf16.mxu0 0
        %2288 = vmatpush1.bf16.xpose.msra.mxu0 0
        %2289 = vmatprep.subr.bf16.mxu0 0
        %2290 = vmatpush1.bf16.xpose.msra.mxu0 0
        %2291 = vmatprep.subr.bf16.mxu0 0
        %2292 = vmatpush1.bf16.xpose.msra.mxu0 0
        %2293 = vmatprep.subr.bf16.mxu0 0
        %2294 = vmatpush1.bf16.xpose.msra.mxu0 0
        %2295 = vmatprep.subr.bf16.mxu0 0
        %2296 = vmatpush1.bf16.xpose.msra.mxu0 0
        %2297 = vmatprep.subr.bf16.mxu0 0
        %2298 = vmatpush1.bf16.xpose.msra.mxu0 0
        %2299 = vmatprep.subr.bf16.mxu0 0
        %2300 = vmatpush1.bf16.xpose.msra.mxu0 0
        %2301 = vmatprep.mubr.bf16.mxu0 0
        %2302 = vmatmul.mubr.bf16.gmra.mrb[0].mxu0 %v2264
        %v2303 = vpop.f32.mrb[0].mxu0
        %v2304 = vadd.f32 0.0, %v2303
        %v2305 = vpop.f32.mrb[0].mxu0
        %v2306 = vpop.f32.mrb[0].mxu0
        %v2307 = vadd.f32 0.0, %v2306
        %v2308 = vpop.f32.mrb[0].mxu0
        %2309 = vdwg.mxu0
        %2310 = vrot.lane.b32.xlu0 %v1323, 32
        %v2311 = vpop.permute.xlu0 %2310
        %2312 = vrot.lane.b32.xlu0 %v1325, 32
        %v2313 = vpop.permute.xlu0 %2312
        %v2315 = vsel %vm1328, %v2311, 0
        %v2318 = vsel %vm1328, %v2313, 0
        %2320 = vmatprep.subr.bf16.mxu0 0
        %2321 = vmatpush1.bf16.xpose.msra.mxu0 %v2318
        %2322 = vmatprep.subr.bf16.mxu0 0
        %2323 = vmatpush1.bf16.xpose.msra.mxu0 0
        %2324 = vmatprep.subr.bf16.mxu0 0
        %2325 = vmatpush1.bf16.xpose.msra.mxu0 0
        %2326 = vmatprep.subr.bf16.mxu0 0
        %2327 = vmatpush1.bf16.xpose.msra.mxu0 0
        %2328 = vmatprep.subr.bf16.mxu0 0
        %2329 = vmatpush1.bf16.xpose.msra.mxu0 0
        %2330 = vmatprep.subr.bf16.mxu0 0
        %2331 = vmatpush1.bf16.xpose.msra.mxu0 0
        %2332 = vmatprep.subr.bf16.mxu0 0
        %2333 = vmatpush1.bf16.xpose.msra.mxu0 0
        %2334 = vmatprep.subr.bf16.mxu0 0
        %2335 = vmatpush1.bf16.xpose.msra.mxu0 0
        %2336 = vmatprep.subr.bf16.mxu0 0
        %2337 = vmatpush1.bf16.xpose.msra.mxu0 0
        %2338 = vmatprep.subr.bf16.mxu0 0
        %2339 = vmatpush1.bf16.xpose.msra.mxu0 0
        %2340 = vmatprep.subr.bf16.mxu0 0
        %2341 = vmatpush1.bf16.xpose.msra.mxu0 0
        %2342 = vmatprep.subr.bf16.mxu0 0
        %2343 = vmatpush1.bf16.xpose.msra.mxu0 0
        %2344 = vmatprep.subr.bf16.mxu0 0
        %2345 = vmatpush1.bf16.xpose.msra.mxu0 0
        %2346 = vmatprep.subr.bf16.mxu0 0
        %2347 = vmatpush1.bf16.xpose.msra.mxu0 0
        %2348 = vmatprep.subr.bf16.mxu0 0
        %2349 = vmatpush1.bf16.xpose.msra.mxu0 0
        %2350 = vmatprep.subr.bf16.mxu0 0
        %2351 = vmatpush1.bf16.xpose.msra.mxu0 0
        %2352 = vmatprep.mubr.bf16.mxu0 0
        %2353 = vmatmul.mubr.bf16.gmra.mrb[0].mxu0 %v2315
        %v2354 = vpop.f32.mrb[0].mxu0
        %v2355 = vadd.f32 0.0, %v2354
        %v2356 = vpop.f32.mrb[0].mxu0
        %v2357 = vpop.f32.mrb[0].mxu0
        %v2358 = vadd.f32 0.0, %v2357
        %v2359 = vpop.f32.mrb[0].mxu0
        %2360 = vdwg.mxu0
        %v2361 = vsel %vm1423, %v2304, -inf
        %2362 = vmax.xlane.f32.xlu0 %v2361
        %v2363 = vpop.xlane.xlu0 %2362
        %v2364 = vsel %vm1423, %v2307, -inf
        %2365 = vmax.xlane.f32.xlu0 %v2364
        %v2366 = vpop.xlane.xlu0 %2365
        %v2367 = vsel %vm1423, %v2355, -inf
        %2368 = vmax.xlane.f32.xlu0 %v2367
        %v2369 = vpop.xlane.xlu0 %2368
        %v2370 = vsel %vm1423, %v2358, -inf
        %2371 = vmax.xlane.f32.xlu0 %v2370
        %v2372 = vpop.xlane.xlu0 %2371
        %v2373 = vsub.f32 %v2304, %v2363
        %v2374 = vsub.f32 %v2307, %v2366
        %v2375 = vsub.f32 %v2355, %v2369
        %v2376 = vsub.f32 %v2358, %v2372
        %v2377 = vmul.f32 %v2373, 1.442695
        %v2378 = vpow.pop %v2377
        %v2379 = vmul.f32 %v2374, 1.442695
        %v2380 = vpow.pop %v2379
        %v2381 = vmul.f32 %v2375, 1.442695
        %v2382 = vpow.pop %v2381
        %v2383 = vmul.f32 %v2376, 1.442695
        %v2384 = vpow.pop %v2383
        %v2385 = vsel %vm1423, %v2378, 0.0
        %2386 = vadd.xlane.f32.xlu0 %v2385
        %v2387 = vpop.xlane.xlu0 %2386
        %v2388 = vsel %vm1423, %v2380, 0.0
        %2389 = vadd.xlane.f32.xlu0 %v2388
        %v2390 = vpop.xlane.xlu0 %2389
        %v2391 = vsel %vm1423, %v2382, 0.0
        %2392 = vadd.xlane.f32.xlu0 %v2391
        %v2393 = vpop.xlane.xlu0 %2392
        %v2394 = vsel %vm1423, %v2384, 0.0
        %2395 = vadd.xlane.f32.xlu0 %v2394
        %v2396 = vpop.xlane.xlu0 %2395
        %v2397 = vrcp.pop %v2387
        %v2398 = vmul.f32 %v2378, %v2397
        %v2399 = vrcp.pop %v2390
        %v2400 = vmul.f32 %v2380, %v2399
        %v2401 = vrcp.pop %v2393
        %v2402 = vmul.f32 %v2382, %v2401
        %v2403 = vrcp.pop %v2396
        %v2404 = vmul.f32 %v2384, %v2403
        %v2405 = vpack.c.bf16 %v2400, %v2398
        %v2406 = vpack.c.bf16 %v2404, %v2402
        %2407 = vrot.lane.b32.xlu0 %v1326, 32
        %v2408 = vpop.permute.xlu0 %2407
        %v2411 = vsel %vm1423, %v2405, 0
        %2413 = vmatprep.subr.bf16.mxu0 0
        %2414 = vmatpush1.bf16.msra.mxu0 %v2408
        %2415 = vmatprep.subr.bf16.mxu0 0
        %2416 = vmatpush1.bf16.msra.mxu0 0
        %2417 = vmatprep.subr.bf16.mxu0 0
        %2418 = vmatpush1.bf16.msra.mxu0 0
        %2419 = vmatprep.subr.bf16.mxu0 0
        %2420 = vmatpush1.bf16.msra.mxu0 0
        %2421 = vmatprep.subr.bf16.mxu0 0
        %2422 = vmatpush1.bf16.msra.mxu0 0
        %2423 = vmatprep.subr.bf16.mxu0 0
        %2424 = vmatpush1.bf16.msra.mxu0 0
        %2425 = vmatprep.subr.bf16.mxu0 0
        %2426 = vmatpush1.bf16.msra.mxu0 0
        %2427 = vmatprep.subr.bf16.mxu0 0
        %2428 = vmatpush1.bf16.msra.mxu0 0
        %2429 = vmatprep.subr.bf16.mxu0 0
        %2430 = vmatpush1.bf16.msra.mxu0 0
        %2431 = vmatprep.subr.bf16.mxu0 0
        %2432 = vmatpush1.bf16.msra.mxu0 0
        %2433 = vmatprep.subr.bf16.mxu0 0
        %2434 = vmatpush1.bf16.msra.mxu0 0
        %2435 = vmatprep.subr.bf16.mxu0 0
        %2436 = vmatpush1.bf16.msra.mxu0 0
        %2437 = vmatprep.subr.bf16.mxu0 0
        %2438 = vmatpush1.bf16.msra.mxu0 0
        %2439 = vmatprep.subr.bf16.mxu0 0
        %2440 = vmatpush1.bf16.msra.mxu0 0
        %2441 = vmatprep.subr.bf16.mxu0 0
        %2442 = vmatpush1.bf16.msra.mxu0 0
        %2443 = vmatprep.subr.bf16.mxu0 0
        %2444 = vmatpush1.bf16.msra.mxu0 0
        %2445 = vmatprep.mubr.bf16.mxu0 0
        %2446 = vmatmul.mubr.bf16.gmra.mrb[0].mxu0 %v2411
        %v2447 = vpop.f32.mrb[0].mxu0
        %v2448 = vadd.f32 0.0, %v2447
        %v2449 = vpop.f32.mrb[0].mxu0
        %v2450 = vpop.f32.mrb[0].mxu0
        %v2451 = vadd.f32 0.0, %v2450
        %v2452 = vpop.f32.mrb[0].mxu0
        %2453 = vdwg.mxu0
        %2454 = vrot.lane.b32.xlu0 %v1327, 32
        %v2455 = vpop.permute.xlu0 %2454
        %v2458 = vsel %vm1423, %v2406, 0
        %2460 = vmatprep.subr.bf16.mxu0 0
        %2461 = vmatpush1.bf16.msra.mxu0 %v2455
        %2462 = vmatprep.subr.bf16.mxu0 0
        %2463 = vmatpush1.bf16.msra.mxu0 0
        %2464 = vmatprep.subr.bf16.mxu0 0
        %2465 = vmatpush1.bf16.msra.mxu0 0
        %2466 = vmatprep.subr.bf16.mxu0 0
        %2467 = vmatpush1.bf16.msra.mxu0 0
        %2468 = vmatprep.subr.bf16.mxu0 0
        %2469 = vmatpush1.bf16.msra.mxu0 0
        %2470 = vmatprep.subr.bf16.mxu0 0
        %2471 = vmatpush1.bf16.msra.mxu0 0
        %2472 = vmatprep.subr.bf16.mxu0 0
        %2473 = vmatpush1.bf16.msra.mxu0 0
        %2474 = vmatprep.subr.bf16.mxu0 0
        %2475 = vmatpush1.bf16.msra.mxu0 0
        %2476 = vmatprep.subr.bf16.mxu0 0
        %2477 = vmatpush1.bf16.msra.mxu0 0
        %2478 = vmatprep.subr.bf16.mxu0 0
        %2479 = vmatpush1.bf16.msra.mxu0 0
        %2480 = vmatprep.subr.bf16.mxu0 0
        %2481 = vmatpush1.bf16.msra.mxu0 0
        %2482 = vmatprep.subr.bf16.mxu0 0
        %2483 = vmatpush1.bf16.msra.mxu0 0
        %2484 = vmatprep.subr.bf16.mxu0 0
        %2485 = vmatpush1.bf16.msra.mxu0 0
        %2486 = vmatprep.subr.bf16.mxu0 0
        %2487 = vmatpush1.bf16.msra.mxu0 0
        %2488 = vmatprep.subr.bf16.mxu0 0
        %2489 = vmatpush1.bf16.msra.mxu0 0
        %2490 = vmatprep.subr.bf16.mxu0 0
        %2491 = vmatpush1.bf16.msra.mxu0 0
        %2492 = vmatprep.mubr.bf16.mxu0 0
        %2493 = vmatmul.mubr.bf16.gmra.mrb[0].mxu0 %v2458
        %v2494 = vpop.f32.mrb[0].mxu0
        %v2495 = vadd.f32 0.0, %v2494
        %v2496 = vpop.f32.mrb[0].mxu0
        %v2497 = vpop.f32.mrb[0].mxu0
        %v2498 = vadd.f32 0.0, %v2497
        %v2499 = vpop.f32.mrb[0].mxu0
        %2500 = vdwg.mxu0
        %v2501 = vpack.c.bf16 %v2451, %v2448
        %v2502 = vpack.c.bf16 %v2498, %v2495
        %v2507 = vunpack.c.l.b16 %v1318
        %v2508 = vunpack.c.l.b16 %v1319
        %v2509 = vunpack.c.l.b16 %v1320
        %v2510 = vunpack.c.l.b16 %v1321
        %v2511 = vpack.c.b16 %v2508, %v2507
        %v2512 = vpack.c.b16 %v2510, %v2509
        %v2516 = vsel %vm1328, %v2501, 0
        %v2519 = vsel %vm1328, %v2502, 0
        %2521 = vmatprep.subr.bf16.mxu0 0
        %2522 = vmatpush1.bf16.msra.mxu0 %v2511
        %2523 = vmatprep.subr.bf16.mxu0 0
        %2524 = vmatpush1.bf16.msra.mxu0 %v2512
        %2525 = vmatprep.subr.bf16.mxu0 0
        %2526 = vmatpush1.bf16.msra.mxu0 0
        %2527 = vmatprep.subr.bf16.mxu0 0
        %2528 = vmatpush1.bf16.msra.mxu0 0
        %2529 = vmatprep.subr.bf16.mxu0 0
        %2530 = vmatpush1.bf16.msra.mxu0 0
        %2531 = vmatprep.subr.bf16.mxu0 0
        %2532 = vmatpush1.bf16.msra.mxu0 0
        %2533 = vmatprep.subr.bf16.mxu0 0
        %2534 = vmatpush1.bf16.msra.mxu0 0
        %2535 = vmatprep.subr.bf16.mxu0 0
        %2536 = vmatpush1.bf16.msra.mxu0 0
        %2537 = vmatprep.subr.bf16.mxu0 0
        %2538 = vmatpush1.bf16.msra.mxu0 0
        %2539 = vmatprep.subr.bf16.mxu0 0
        %2540 = vmatpush1.bf16.msra.mxu0 0
        %2541 = vmatprep.subr.bf16.mxu0 0
        %2542 = vmatpush1.bf16.msra.mxu0 0
        %2543 = vmatprep.subr.bf16.mxu0 0
        %2544 = vmatpush1.bf16.msra.mxu0 0
        %2545 = vmatprep.subr.bf16.mxu0 0
        %2546 = vmatpush1.bf16.msra.mxu0 0
        %2547 = vmatprep.subr.bf16.mxu0 0
        %2548 = vmatpush1.bf16.msra.mxu0 0
        %2549 = vmatprep.subr.bf16.mxu0 0
        %2550 = vmatpush1.bf16.msra.mxu0 0
        %2551 = vmatprep.subr.bf16.mxu0 0
        %2552 = vmatpush1.bf16.msra.mxu0 0
        %2553 = vmatprep.mubr.bf16.mxu0 0
        %2554 = vmatmul.mubr.bf16.gmra.mrb[0].mxu0 %v2516
        %v2555 = vpop.f32.mrb[0].mxu0
        %v2556 = vadd.f32 0.0, %v2555
        %v2557 = vpop.f32.mrb[0].mxu0
        %v2558 = vpop.f32.mrb[0].mxu0
        %v2559 = vadd.f32 0.0, %v2558
        %v2560 = vpop.f32.mrb[0].mxu0
        %2561 = vmatprep.mubr.bf16.mxu0 0
        %2562 = vmatmul.mubr.bf16.gmra.mrb[0].mxu0 %v2519
        %v2563 = vpop.f32.mrb[0].mxu0
        %v2564 = vadd.f32 0.0, %v2563
        %v2565 = vpop.f32.mrb[0].mxu0
        %v2566 = vpop.f32.mrb[0].mxu0
        %v2567 = vadd.f32 0.0, %v2566
        %v2568 = vpop.f32.mrb[0].mxu0
        %2569 = vdwg.mxu0
        %v2570 = vadd.f32 %v2255, %v2556
        %v2571 = vadd.f32 %v2256, %v2559
        %v2572 = vadd.f32 %v2257, %v2564
        %v2573 = vadd.f32 %v2258, %v2567
        %v2574 = vld [vmem:[%s766] sm:$0x1]
        %v2576 = vlaneseq
        %v2577 = vshrl.u32 %v2576, 7
        %v2578 = vsub.s32 0, %v2577
        %v2579 = vrot.slane %v2574, %v2578
        %v2581 = vadd.f32 %v2570, %v2579
        %v2582 = vadd.f32 %v2571, %v2579
        %v2583 = vadd.f32 %v2572, %v2579
        %v2584 = vadd.f32 %v2573, %v2579
        %v2585 = vadd.f32 %v1017, %v2581
        %v2586 = vadd.f32 %v1018, %v2582
        %v2587 = vadd.f32 %v1019, %v2583
        %v2588 = vadd.f32 %v1020, %v2584
        %v2589 = vld [vmem:[%s769] sm:$0x1]
        %v2590 = vld [vmem:[%s772] sm:$0x1]
        %2591 = vadd.xlane.f32.xlu0 %v2585
        %v2592 = vpop.xlane.xlu0 %2591
        %2593 = vadd.xlane.f32.xlu0 %v2586
        %v2594 = vpop.xlane.xlu0 %2593
        %2595 = vadd.xlane.f32.xlu0 %v2587
        %v2596 = vpop.xlane.xlu0 %2595
        %2597 = vadd.xlane.f32.xlu0 %v2588
        %v2598 = vpop.xlane.xlu0 %2597
        %v2599 = vrcp.pop 128.0
        %v2600 = vmul.f32 %v2592, %v2599
        %v2601 = vmul.f32 %v2594, %v2599
        %v2602 = vmul.f32 %v2596, %v2599
        %v2603 = vmul.f32 %v2598, %v2599
        %v2604 = vsub.f32 %v2585, %v2600
        %v2605 = vsub.f32 %v2586, %v2601
        %v2606 = vsub.f32 %v2587, %v2602
        %v2607 = vsub.f32 %v2588, %v2603
        %v2608 = vmul.f32 %v2604, %v2604
        %v2609 = vmul.f32 %v2605, %v2605
        %v2610 = vmul.f32 %v2606, %v2606
        %v2611 = vmul.f32 %v2607, %v2607
        %2612 = vadd.xlane.f32.xlu0 %v2608
        %v2613 = vpop.xlane.xlu0 %2612
        %2614 = vadd.xlane.f32.xlu0 %v2609
        %v2615 = vpop.xlane.xlu0 %2614
        %2616 = vadd.xlane.f32.xlu0 %v2610
        %v2617 = vpop.xlane.xlu0 %2616
        %2618 = vadd.xlane.f32.xlu0 %v2611
        %v2619 = vpop.xlane.xlu0 %2618
        %v2620 = vmul.f32 %v2613, %v2599
        %v2621 = vmul.f32 %v2615, %v2599
        %v2622 = vmul.f32 %v2617, %v2599
        %v2623 = vmul.f32 %v2619, %v2599
        %v2624 = vadd.f32 %v2620, 1e-05
        %v2625 = vadd.f32 %v2621, 1e-05
        %v2626 = vadd.f32 %v2622, 1e-05
        %v2627 = vadd.f32 %v2623, 1e-05
        %v2628 = vrsqrt.pop %v2624
        %v2629 = vrsqrt.pop %v2625
        %v2630 = vrsqrt.pop %v2626
        %v2631 = vrsqrt.pop %v2627
        %v2632 = vmul.f32 %v2604, %v2628
        %v2633 = vmul.f32 %v2605, %v2629
        %v2634 = vmul.f32 %v2606, %v2630
        %v2635 = vmul.f32 %v2607, %v2631
        %v2637 = vlaneseq
        %v2638 = vshrl.u32 %v2637, 7
        %v2639 = vsub.s32 0, %v2638
        %v2640 = vrot.slane %v2589, %v2639
        %v2642 = vmul.f32 %v2632, %v2640
        %v2643 = vmul.f32 %v2633, %v2640
        %v2644 = vmul.f32 %v2634, %v2640
        %v2645 = vmul.f32 %v2635, %v2640
        %v2647 = vlaneseq
        %v2648 = vshrl.u32 %v2647, 7
        %v2649 = vsub.s32 0, %v2648
        %v2650 = vrot.slane %v2590, %v2649
        %v2652 = vadd.f32 %v2642, %v2650
        %v2653 = vadd.f32 %v2643, %v2650
        %v2654 = vadd.f32 %v2644, %v2650
        %v2655 = vadd.f32 %v2645, %v2650
        %v2656 = vld [vmem:[%s777] sm:$0xff]
        %v2657 = vld [vmem:[%s777 + $0x8] sm:$0xff]
        %v2658 = vld [vmem:[%s777 + $0x10] sm:$0xff]
        %v2659 = vld [vmem:[%s777 + $0x18] sm:$0xff]
        %v2660 = vld [vmem:[%s777 + $0x20] sm:$0xff]
        %v2661 = vld [vmem:[%s777 + $0x28] sm:$0xff]
        %v2662 = vld [vmem:[%s777 + $0x30] sm:$0xff]
        %v2663 = vld [vmem:[%s777 + $0x38] sm:$0xff]
        %v2664 = vld [vmem:[%s777 + $0x40] sm:$0xff]
        %v2665 = vld [vmem:[%s777 + $0x48] sm:$0xff]
        %v2666 = vld [vmem:[%s777 + $0x50] sm:$0xff]
        %v2667 = vld [vmem:[%s777 + $0x58] sm:$0xff]
        %v2668 = vld [vmem:[%s777 + $0x60] sm:$0xff]
        %v2669 = vld [vmem:[%s777 + $0x68] sm:$0xff]
        %v2670 = vld [vmem:[%s777 + $0x70] sm:$0xff]
        %v2671 = vld [vmem:[%s777 + $0x78] sm:$0xff]
        %v2672 = vld [vmem:[%s781] sm:$0x3]
        %v2673 = vpack.c.bf16 %v2653, %v2652
        %v2674 = vpack.c.bf16 %v2655, %v2654
        %v2676 = vlaneseq
        %v2677 = vshrl.u32 %v2676, 7
        %v2678 = vsub.s32 0, %v2677
        %v2679 = vrot.slane %v2672, %v2678
        %v2680 = vlaneseq
        %v2681 = vshrl.u32 %v2680, 7
        %v2682 = vsub.s32 1, %v2681
        %v2683 = vrot.slane %v2672, %v2682
        %v2702 = vunpack.c.l.b16 %v2656
        %v2703 = vunpack.c.h.b16 %v2656
        %v2704 = vunpack.c.l.b16 %v2657
        %v2705 = vunpack.c.h.b16 %v2657
        %v2706 = vunpack.c.l.b16 %v2658
        %v2707 = vunpack.c.h.b16 %v2658
        %v2708 = vunpack.c.l.b16 %v2659
        %v2709 = vunpack.c.h.b16 %v2659
        %v2710 = vunpack.c.l.b16 %v2660
        %v2711 = vunpack.c.h.b16 %v2660
        %v2712 = vunpack.c.l.b16 %v2661
        %v2713 = vunpack.c.h.b16 %v2661
        %v2714 = vunpack.c.l.b16 %v2662
        %v2715 = vunpack.c.h.b16 %v2662
        %v2716 = vunpack.c.l.b16 %v2663
        %v2717 = vunpack.c.h.b16 %v2663
        %v2718 = vunpack.c.l.b16 %v2664
        %v2719 = vunpack.c.h.b16 %v2664
        %v2720 = vunpack.c.l.b16 %v2665
        %v2721 = vunpack.c.h.b16 %v2665
        %v2722 = vunpack.c.l.b16 %v2666
        %v2723 = vunpack.c.h.b16 %v2666
        %v2724 = vunpack.c.l.b16 %v2667
        %v2725 = vunpack.c.h.b16 %v2667
        %v2726 = vunpack.c.l.b16 %v2668
        %v2727 = vunpack.c.h.b16 %v2668
        %v2728 = vunpack.c.l.b16 %v2669
        %v2729 = vunpack.c.h.b16 %v2669
        %v2730 = vunpack.c.l.b16 %v2670
        %v2731 = vunpack.c.h.b16 %v2670
        %v2732 = vunpack.c.l.b16 %v2671
        %v2733 = vunpack.c.h.b16 %v2671
        %v2734 = vpack.c.b16 %v2704, %v2702
        %v2735 = vpack.c.b16 %v2705, %v2703
        %v2736 = vpack.c.b16 %v2708, %v2706
        %v2737 = vpack.c.b16 %v2709, %v2707
        %v2738 = vpack.c.b16 %v2712, %v2710
        %v2739 = vpack.c.b16 %v2713, %v2711
        %v2740 = vpack.c.b16 %v2716, %v2714
        %v2741 = vpack.c.b16 %v2717, %v2715
        %v2742 = vpack.c.b16 %v2720, %v2718
        %v2743 = vpack.c.b16 %v2721, %v2719
        %v2744 = vpack.c.b16 %v2724, %v2722
        %v2745 = vpack.c.b16 %v2725, %v2723
        %v2746 = vpack.c.b16 %v2728, %v2726
        %v2747 = vpack.c.b16 %v2729, %v2727
        %v2748 = vpack.c.b16 %v2732, %v2730
        %v2749 = vpack.c.b16 %v2733, %v2731
        %2766 = vmatprep.subr.bf16.mxu0 %v2735
        %2767 = vmatpush1.bf16.msra.mxu0 %v2734
        %2768 = vmatprep.subr.bf16.mxu0 %v2737
        %2769 = vmatpush1.bf16.msra.mxu0 %v2736
        %2770 = vmatprep.subr.bf16.mxu0 %v2739
        %2771 = vmatpush1.bf16.msra.mxu0 %v2738
        %2772 = vmatprep.subr.bf16.mxu0 %v2741
        %2773 = vmatpush1.bf16.msra.mxu0 %v2740
        %2774 = vmatprep.subr.bf16.mxu0 %v2743
        %2775 = vmatpush1.bf16.msra.mxu0 %v2742
        %2776 = vmatprep.subr.bf16.mxu0 %v2745
        %2777 = vmatpush1.bf16.msra.mxu0 %v2744
        %2778 = vmatprep.subr.bf16.mxu0 %v2747
        %2779 = vmatpush1.bf16.msra.mxu0 %v2746
        %2780 = vmatprep.subr.bf16.mxu0 %v2749
        %2781 = vmatpush1.bf16.msra.mxu0 %v2748
        %2782 = vmatprep.subr.bf16.mxu0 0
        %2783 = vmatpush1.bf16.msra.mxu0 0
        %2784 = vmatprep.subr.bf16.mxu0 0
        %2785 = vmatpush1.bf16.msra.mxu0 0
        %2786 = vmatprep.subr.bf16.mxu0 0
        %2787 = vmatpush1.bf16.msra.mxu0 0
        %2788 = vmatprep.subr.bf16.mxu0 0
        %2789 = vmatpush1.bf16.msra.mxu0 0
        %2790 = vmatprep.subr.bf16.mxu0 0
        %2791 = vmatpush1.bf16.msra.mxu0 0
        %2792 = vmatprep.subr.bf16.mxu0 0
        %2793 = vmatpush1.bf16.msra.mxu0 0
        %2794 = vmatprep.subr.bf16.mxu0 0
        %2795 = vmatpush1.bf16.msra.mxu0 0
        %2796 = vmatprep.subr.bf16.mxu0 0
        %2797 = vmatpush1.bf16.msra.mxu0 0
        %2798 = vmatprep.mubr.bf16.mxu0 0
        %2799 = vmatmul.mubr.bf16.gmra.mrb[0].mxu0 %v2673
        %v2800 = vpop.f32.mrb[0].mxu0
        %v2801 = vadd.f32 %v2679, %v2800
        %v2802 = vpop.f32.mrb[0].mxu0
        %v2803 = vadd.f32 %v2683, %v2802
        %v2804 = vpop.f32.mrb[0].mxu0
        %v2805 = vadd.f32 %v2679, %v2804
        %v2806 = vpop.f32.mrb[0].mxu0
        %v2807 = vadd.f32 %v2683, %v2806
        %2808 = vmatprep.mubr.bf16.mxu0 0
        %2809 = vmatmul.mubr.bf16.gmra.mrb[0].mxu0 %v2674
        %v2810 = vpop.f32.mrb[0].mxu0
        %v2811 = vadd.f32 %v2679, %v2810
        %v2812 = vpop.f32.mrb[0].mxu0
        %v2813 = vadd.f32 %v2683, %v2812
        %v2814 = vpop.f32.mrb[0].mxu0
        %v2815 = vadd.f32 %v2679, %v2814
        %v2816 = vpop.f32.mrb[0].mxu0
        %v2817 = vadd.f32 %v2683, %v2816
        %2818 = vdwg.mxu0
        %v2819 = vmax.f32 %v2801, 0.0
        %v2820 = vmax.f32 %v2803, 0.0
        %v2821 = vmax.f32 %v2805, 0.0
        %v2822 = vmax.f32 %v2807, 0.0
        %v2823 = vmax.f32 %v2811, 0.0
        %v2824 = vmax.f32 %v2813, 0.0
        %v2825 = vmax.f32 %v2815, 0.0
        %v2826 = vmax.f32 %v2817, 0.0
        %v2827 = vld [vmem:[%s786] sm:$0xf]
        %v2828 = vld [vmem:[%s786 + $0x4] sm:$0xf]
        %v2829 = vld [vmem:[%s786 + $0x8] sm:$0xf]
        %v2830 = vld [vmem:[%s786 + $0xc] sm:$0xf]
        %v2831 = vld [vmem:[%s786 + $0x10] sm:$0xf]
        %v2832 = vld [vmem:[%s786 + $0x14] sm:$0xf]
        %v2833 = vld [vmem:[%s786 + $0x18] sm:$0xf]
        %v2834 = vld [vmem:[%s786 + $0x1c] sm:$0xf]
        %v2835 = vld [vmem:[%s786 + $0x20] sm:$0xf]
        %v2836 = vld [vmem:[%s786 + $0x24] sm:$0xf]
        %v2837 = vld [vmem:[%s786 + $0x28] sm:$0xf]
        %v2838 = vld [vmem:[%s786 + $0x2c] sm:$0xf]
        %v2839 = vld [vmem:[%s786 + $0x30] sm:$0xf]
        %v2840 = vld [vmem:[%s786 + $0x34] sm:$0xf]
        %v2841 = vld [vmem:[%s786 + $0x38] sm:$0xf]
        %v2842 = vld [vmem:[%s786 + $0x3c] sm:$0xf]
        %v2843 = vld [vmem:[%s786 + $0x40] sm:$0xf]
        %v2844 = vld [vmem:[%s786 + $0x44] sm:$0xf]
        %v2845 = vld [vmem:[%s786 + $0x48] sm:$0xf]
        %v2846 = vld [vmem:[%s786 + $0x4c] sm:$0xf]
        %v2847 = vld [vmem:[%s786 + $0x50] sm:$0xf]
        %v2848 = vld [vmem:[%s786 + $0x54] sm:$0xf]
        %v2849 = vld [vmem:[%s786 + $0x58] sm:$0xf]
        %v2850 = vld [vmem:[%s786 + $0x5c] sm:$0xf]
        %v2851 = vld [vmem:[%s786 + $0x60] sm:$0xf]
        %v2852 = vld [vmem:[%s786 + $0x64] sm:$0xf]
        %v2853 = vld [vmem:[%s786 + $0x68] sm:$0xf]
        %v2854 = vld [vmem:[%s786 + $0x6c] sm:$0xf]
        %v2855 = vld [vmem:[%s786 + $0x70] sm:$0xf]
        %v2856 = vld [vmem:[%s786 + $0x74] sm:$0xf]
        %v2857 = vld [vmem:[%s786 + $0x78] sm:$0xf]
        %v2858 = vld [vmem:[%s786 + $0x7c] sm:$0xf]
        %v2859 = vld [vmem:[%s789] sm:$0x1]
        %v2860 = vpack.c.bf16 %v2821, %v2819
        %v2861 = vpack.c.bf16 %v2822, %v2820
        %v2862 = vpack.c.bf16 %v2825, %v2823
        %v2863 = vpack.c.bf16 %v2826, %v2824
        %v2865 = vlaneseq
        %v2866 = vshrl.u32 %v2865, 7
        %v2867 = vsub.s32 0, %v2866
        %v2868 = vrot.slane %v2859, %v2867
        %v2902 = vunpack.c.l.b16 %v2827
        %v2903 = vunpack.c.l.b16 %v2828
        %v2904 = vunpack.c.l.b16 %v2829
        %v2905 = vunpack.c.l.b16 %v2830
        %v2906 = vunpack.c.l.b16 %v2831
        %v2907 = vunpack.c.l.b16 %v2832
        %v2908 = vunpack.c.l.b16 %v2833
        %v2909 = vunpack.c.l.b16 %v2834
        %v2910 = vunpack.c.l.b16 %v2835
        %v2911 = vunpack.c.l.b16 %v2836
        %v2912 = vunpack.c.l.b16 %v2837
        %v2913 = vunpack.c.l.b16 %v2838
        %v2914 = vunpack.c.l.b16 %v2839
        %v2915 = vunpack.c.l.b16 %v2840
        %v2916 = vunpack.c.l.b16 %v2841
        %v2917 = vunpack.c.l.b16 %v2842
        %v2918 = vunpack.c.l.b16 %v2843
        %v2919 = vunpack.c.l.b16 %v2844
        %v2920 = vunpack.c.l.b16 %v2845
        %v2921 = vunpack.c.l.b16 %v2846
        %v2922 = vunpack.c.l.b16 %v2847
        %v2923 = vunpack.c.l.b16 %v2848
        %v2924 = vunpack.c.l.b16 %v2849
        %v2925 = vunpack.c.l.b16 %v2850
        %v2926 = vunpack.c.l.b16 %v2851
        %v2927 = vunpack.c.l.b16 %v2852
        %v2928 = vunpack.c.l.b16 %v2853
        %v2929 = vunpack.c.l.b16 %v2854
        %v2930 = vunpack.c.l.b16 %v2855
        %v2931 = vunpack.c.l.b16 %v2856
        %v2932 = vunpack.c.l.b16 %v2857
        %v2933 = vunpack.c.l.b16 %v2858
        %v2934 = vpack.c.b16 %v2903, %v2902
        %v2935 = vpack.c.b16 %v2905, %v2904
        %v2936 = vpack.c.b16 %v2907, %v2906
        %v2937 = vpack.c.b16 %v2909, %v2908
        %v2938 = vpack.c.b16 %v2911, %v2910
        %v2939 = vpack.c.b16 %v2913, %v2912
        %v2940 = vpack.c.b16 %v2915, %v2914
        %v2941 = vpack.c.b16 %v2917, %v2916
        %v2942 = vpack.c.b16 %v2919, %v2918
        %v2943 = vpack.c.b16 %v2921, %v2920
        %v2944 = vpack.c.b16 %v2923, %v2922
        %v2945 = vpack.c.b16 %v2925, %v2924
        %v2946 = vpack.c.b16 %v2927, %v2926
        %v2947 = vpack.c.b16 %v2929, %v2928
        %v2948 = vpack.c.b16 %v2931, %v2930
        %v2949 = vpack.c.b16 %v2933, %v2932
        %2966 = vmatprep.subr.bf16.mxu0 0
        %2967 = vmatpush1.bf16.msra.mxu0 %v2934
        %2968 = vmatprep.subr.bf16.mxu0 0
        %2969 = vmatpush1.bf16.msra.mxu0 %v2935
        %2970 = vmatprep.subr.bf16.mxu0 0
        %2971 = vmatpush1.bf16.msra.mxu0 %v2936
        %2972 = vmatprep.subr.bf16.mxu0 0
        %2973 = vmatpush1.bf16.msra.mxu0 %v2937
        %2974 = vmatprep.subr.bf16.mxu0 0
        %2975 = vmatpush1.bf16.msra.mxu0 %v2938
        %2976 = vmatprep.subr.bf16.mxu0 0
        %2977 = vmatpush1.bf16.msra.mxu0 %v2939
        %2978 = vmatprep.subr.bf16.mxu0 0
        %2979 = vmatpush1.bf16.msra.mxu0 %v2940
        %2980 = vmatprep.subr.bf16.mxu0 0
        %2981 = vmatpush1.bf16.msra.mxu0 %v2941
        %2982 = vmatprep.subr.bf16.mxu0 0
        %2983 = vmatpush1.bf16.msra.mxu0 %v2942
        %2984 = vmatprep.subr.bf16.mxu0 0
        %2985 = vmatpush1.bf16.msra.mxu0 %v2943
        %2986 = vmatprep.subr.bf16.mxu0 0
        %2987 = vmatpush1.bf16.msra.mxu0 %v2944
        %2988 = vmatprep.subr.bf16.mxu0 0
        %2989 = vmatpush1.bf16.msra.mxu0 %v2945
        %2990 = vmatprep.subr.bf16.mxu0 0
        %2991 = vmatpush1.bf16.msra.mxu0 %v2946
        %2992 = vmatprep.subr.bf16.mxu0 0
        %2993 = vmatpush1.bf16.msra.mxu0 %v2947
        %2994 = vmatprep.subr.bf16.mxu0 0
        %2995 = vmatpush1.bf16.msra.mxu0 %v2948
        %2996 = vmatprep.subr.bf16.mxu0 0
        %2997 = vmatpush1.bf16.msra.mxu0 %v2949
        %2998 = vmatprep.mubr.bf16.mxu0 %v2861
        %2999 = vmatmul.mubr.bf16.gmra.mrb[0].mxu0 %v2860
        %v3000 = vpop.f32.mrb[0].mxu0
        %v3001 = vadd.f32 %v2868, %v3000
        %v3002 = vpop.f32.mrb[0].mxu0
        %v3003 = vpop.f32.mrb[0].mxu0
        %v3004 = vadd.f32 %v2868, %v3003
        %v3005 = vpop.f32.mrb[0].mxu0
        %3006 = vmatprep.mubr.bf16.mxu0 %v2863
        %3007 = vmatmul.mubr.bf16.gmra.mrb[0].mxu0 %v2862
        %v3008 = vpop.f32.mrb[0].mxu0
        %v3009 = vadd.f32 %v2868, %v3008
        %v3010 = vpop.f32.mrb[0].mxu0
        %v3011 = vpop.f32.mrb[0].mxu0
        %v3012 = vadd.f32 %v2868, %v3011
        %v3013 = vpop.f32.mrb[0].mxu0
        %3014 = vdwg.mxu0
        %v3015 = vadd.f32 %v2652, %v3001
        %v3016 = vadd.f32 %v2653, %v3004
        %v3017 = vadd.f32 %v2654, %v3009
        %v3018 = vadd.f32 %v2655, %v3012
        %v3019 = vld [vmem:[%s792] sm:$0x1]
        %v3020 = vld [vmem:[%s795] sm:$0x1]
        %3021 = vadd.xlane.f32.xlu0 %v3015
        %v3022 = vpop.xlane.xlu0 %3021
        %3023 = vadd.xlane.f32.xlu0 %v3016
        %v3024 = vpop.xlane.xlu0 %3023
        %3025 = vadd.xlane.f32.xlu0 %v3017
        %v3026 = vpop.xlane.xlu0 %3025
        %3027 = vadd.xlane.f32.xlu0 %v3018
        %v3028 = vpop.xlane.xlu0 %3027
        %v3029 = vmul.f32 %v3022, %v2599
        %v3030 = vmul.f32 %v3024, %v2599
        %v3031 = vmul.f32 %v3026, %v2599
        %v3032 = vmul.f32 %v3028, %v2599
        %v3033 = vsub.f32 %v3015, %v3029
        %v3034 = vsub.f32 %v3016, %v3030
        %v3035 = vsub.f32 %v3017, %v3031
        %v3036 = vsub.f32 %v3018, %v3032
        %v3037 = vmul.f32 %v3033, %v3033
        %v3038 = vmul.f32 %v3034, %v3034
        %v3039 = vmul.f32 %v3035, %v3035
        %v3040 = vmul.f32 %v3036, %v3036
        %3041 = vadd.xlane.f32.xlu0 %v3037
        %v3042 = vpop.xlane.xlu0 %3041
        %3043 = vadd.xlane.f32.xlu0 %v3038
        %v3044 = vpop.xlane.xlu0 %3043
        %3045 = vadd.xlane.f32.xlu0 %v3039
        %v3046 = vpop.xlane.xlu0 %3045
        %3047 = vadd.xlane.f32.xlu0 %v3040
        %v3048 = vpop.xlane.xlu0 %3047
        %v3049 = vmul.f32 %v3042, %v2599
        %v3050 = vmul.f32 %v3044, %v2599
        %v3051 = vmul.f32 %v3046, %v2599
        %v3052 = vmul.f32 %v3048, %v2599
        %v3053 = vadd.f32 %v3049, 1e-05
        %v3054 = vadd.f32 %v3050, 1e-05
        %v3055 = vadd.f32 %v3051, 1e-05
        %v3056 = vadd.f32 %v3052, 1e-05
        %v3057 = vrsqrt.pop %v3053
        %v3058 = vrsqrt.pop %v3054
        %v3059 = vrsqrt.pop %v3055
        %v3060 = vrsqrt.pop %v3056
        %v3061 = vmul.f32 %v3033, %v3057
        %v3062 = vmul.f32 %v3034, %v3058
        %v3063 = vmul.f32 %v3035, %v3059
        %v3064 = vmul.f32 %v3036, %v3060
        %v3066 = vlaneseq
        %v3067 = vshrl.u32 %v3066, 7
        %v3068 = vsub.s32 0, %v3067
        %v3069 = vrot.slane %v3019, %v3068
        %v3071 = vmul.f32 %v3061, %v3069
        %v3072 = vmul.f32 %v3062, %v3069
        %v3073 = vmul.f32 %v3063, %v3069
        %v3074 = vmul.f32 %v3064, %v3069
        %v3076 = vlaneseq
        %v3077 = vshrl.u32 %v3076, 7
        %v3078 = vsub.s32 0, %v3077
        %v3079 = vrot.slane %v3020, %v3078
        %v3081 = vadd.f32 %v3071, %v3079
        %v3082 = vadd.f32 %v3072, %v3079
        %v3083 = vadd.f32 %v3073, %v3079
        %v3084 = vadd.f32 %v3074, %v3079
        %3085 = vst [vmem:[#allocation2] sm:$0xff] %v3081
        %3086 = vst [vmem:[#allocation2 + $0x8] sm:$0xff] %v3082
        %3087 = vst [vmem:[#allocation2 + $0x10] sm:$0xff] %v3083
        %3088 = vst [vmem:[#allocation2 + $0x18] sm:$0xff] %v3084
        %p3089 = scmp.eq.s32.totalorder %s37, 3
        // Predicated region
        $region101: #{vit_forward.1} parent=95 // pred_check
          %p3090 = pneg %p3089
        $region102: #{vit_forward.1} parent=95 // pred_check_branch
          %3092 = sbr.rel (%p3090) target = $region104
        $region103: #{vit_forward.1} parent=95 // pred_region
          %s3093 = smul.u32 4, 2
          %s3094 = smul.u32 %s3093, 16
          %s3095 = smul.u32 %s3094, 2
          %s3096 = sshll.u32 %s3095, 4
          %3097 = dma.done [#allocation6], %s3096
          %s3098 = scalar_lea.sflag [#allocation6], 1
          %s3099 = smul.u32 %s3093, 32
          %s3100 = smul.u32 %s3099, 2
          %s3101 = sshll.u32 %s3100, 4
          %3102 = dma.done %s3098, %s3101
          %s3103 = scalar_lea.sflag [#allocation6], 2
          %s3104 = sshll.u32 %s3100, 4
          %3105 = dma.done %s3103, %s3104
          %v3106 = vld [vmem:[#allocation3] sm:$0xff]
          %v3107 = vld [vmem:[#allocation3 + $0x8] sm:$0xff]
          %v3108 = vld [vmem:[#allocation3 + $0x10] sm:$0xff]
          %v3109 = vld [vmem:[#allocation3 + $0x18] sm:$0xff]
          %v3110 = vld [vmem:[#allocation3 + $0x20] sm:$0xff]
          %v3111 = vld [vmem:[#allocation3 + $0x28] sm:$0xff]
          %v3112 = vld [vmem:[#allocation3 + $0x30] sm:$0xff]
          %v3113 = vld [vmem:[#allocation3 + $0x38] sm:$0xff]
          %v3114 = vld [vmem:[#allocation3 + $0x40] sm:$0xff]
          %v3115 = vld [vmem:[#allocation3 + $0x48] sm:$0xff]
          %v3116 = vld [vmem:[#allocation3 + $0x50] sm:$0xff]
          %v3117 = vld [vmem:[#allocation3 + $0x58] sm:$0xff]
          %v3118 = vld [vmem:[#allocation3 + $0x60] sm:$0xff]
          %v3119 = vld [vmem:[#allocation3 + $0x68] sm:$0xff]
          %v3120 = vld [vmem:[#allocation3 + $0x70] sm:$0xff]
          %v3121 = vld [vmem:[#allocation3 + $0x78] sm:$0xff]
          %v3122 = vld [vmem:[%s19] sm:$0x3]
          %v3123 = vpack.c.bf16 %v3081, %v3081
          %v3124 = vpack.c.bf16 %v3083, %v3083
          %v3126 = vlaneseq
          %v3127 = vshrl.u32 %v3126, 7
          %v3128 = vsub.s32 0, %v3127
          %v3129 = vrot.slane %v3122, %v3128
          %v3130 = vlaneseq
          %v3131 = vshrl.u32 %v3130, 7
          %v3132 = vsub.s32 1, %v3131
          %v3133 = vrot.slane %v3122, %v3132
          %v3138 = vunpack.c.l.b16 %v3123
          %v3139 = vunpack.c.l.b16 %v3124
          %v3140 = vrot.slane %v3139, 7
          %vm3141 = vcmask 1041409
          %v3142 = vsel %vm3141, %v3140, %v3138
          %v3143 = vpack.c.b16 %v3142, %v3142
          %3145 = vmatprep.subr.bf16.mxu0 %v3107
          %3146 = vmatpush1.bf16.msra.mxu0 %v3106
          %3147 = vmatprep.subr.bf16.mxu0 %v3109
          %3148 = vmatpush1.bf16.msra.mxu0 %v3108
          %3149 = vmatprep.subr.bf16.mxu0 %v3111
          %3150 = vmatpush1.bf16.msra.mxu0 %v3110
          %3151 = vmatprep.subr.bf16.mxu0 %v3113
          %3152 = vmatpush1.bf16.msra.mxu0 %v3112
          %3153 = vmatprep.subr.bf16.mxu0 %v3115
          %3154 = vmatpush1.bf16.msra.mxu0 %v3114
          %3155 = vmatprep.subr.bf16.mxu0 %v3117
          %3156 = vmatpush1.bf16.msra.mxu0 %v3116
          %3157 = vmatprep.subr.bf16.mxu0 %v3119
          %3158 = vmatpush1.bf16.msra.mxu0 %v3118
          %3159 = vmatprep.subr.bf16.mxu0 %v3121
          %3160 = vmatpush1.bf16.msra.mxu0 %v3120
          %3161 = vmatprep.subr.bf16.mxu0 0
          %3162 = vmatpush1.bf16.msra.mxu0 0
          %3163 = vmatprep.subr.bf16.mxu0 0
          %3164 = vmatpush1.bf16.msra.mxu0 0
          %3165 = vmatprep.subr.bf16.mxu0 0
          %3166 = vmatpush1.bf16.msra.mxu0 0
          %3167 = vmatprep.subr.bf16.mxu0 0
          %3168 = vmatpush1.bf16.msra.mxu0 0
          %3169 = vmatprep.subr.bf16.mxu0 0
          %3170 = vmatpush1.bf16.msra.mxu0 0
          %3171 = vmatprep.subr.bf16.mxu0 0
          %3172 = vmatpush1.bf16.msra.mxu0 0
          %3173 = vmatprep.subr.bf16.mxu0 0
          %3174 = vmatpush1.bf16.msra.mxu0 0
          %3175 = vmatprep.subr.bf16.mxu0 0
          %3176 = vmatpush1.bf16.msra.mxu0 0
          %3177 = vmatprep.mubr.bf16.mxu0 0
          %3178 = vmatmul.mubr.bf16.gmra.mrb[0].mxu0 %v3143
          %v3179 = vpop.f32.mrb[0].mxu0
          %v3180 = vadd.f32 %v3129, %v3179
          %v3181 = vpop.f32.mrb[0].mxu0
          %v3182 = vadd.f32 %v3133, %v3181
          %v3183 = vpop.f32.mrb[0].mxu0
          %v3184 = vpop.f32.mrb[0].mxu0
          %3185 = vdwg.mxu0
          %vm3186 = vcmp.gt.f32.partialorder %v3180, 0.0
          %vm3187 = vcmp.gt.f32.partialorder %v3182, 0.0
          %v3188 = vmul.f32 %v3180, 0.01
          %v3189 = vmul.f32 %v3182, 0.01
          %v3190 = vsel %vm3186, %v3180, %v3188
          %v3191 = vsel %vm3187, %v3182, %v3189
          %v3192 = vld [vmem:[#allocation4] sm:$0xff]
          %v3193 = vld [vmem:[#allocation4 + $0x8] sm:$0xff]
          %v3194 = vld [vmem:[#allocation4 + $0x10] sm:$0xff]
          %v3195 = vld [vmem:[#allocation4 + $0x18] sm:$0xff]
          %v3196 = vld [vmem:[#allocation4 + $0x20] sm:$0xff]
          %v3197 = vld [vmem:[#allocation4 + $0x28] sm:$0xff]
          %v3198 = vld [vmem:[#allocation4 + $0x30] sm:$0xff]
          %v3199 = vld [vmem:[#allocation4 + $0x38] sm:$0xff]
          %v3200 = vld [vmem:[#allocation4 + $0x40] sm:$0xff]
          %v3201 = vld [vmem:[#allocation4 + $0x48] sm:$0xff]
          %v3202 = vld [vmem:[#allocation4 + $0x50] sm:$0xff]
          %v3203 = vld [vmem:[#allocation4 + $0x58] sm:$0xff]
          %v3204 = vld [vmem:[#allocation4 + $0x60] sm:$0xff]
          %v3205 = vld [vmem:[#allocation4 + $0x68] sm:$0xff]
          %v3206 = vld [vmem:[#allocation4 + $0x70] sm:$0xff]
          %v3207 = vld [vmem:[#allocation4 + $0x78] sm:$0xff]
          %v3208 = vld [vmem:[#allocation4 + $0x80] sm:$0xff]
          %v3209 = vld [vmem:[#allocation4 + $0x88] sm:$0xff]
          %v3210 = vld [vmem:[#allocation4 + $0x90] sm:$0xff]
          %v3211 = vld [vmem:[#allocation4 + $0x98] sm:$0xff]
          %v3212 = vld [vmem:[#allocation4 + $0xa0] sm:$0xff]
          %v3213 = vld [vmem:[#allocation4 + $0xa8] sm:$0xff]
          %v3214 = vld [vmem:[#allocation4 + $0xb0] sm:$0xff]
          %v3215 = vld [vmem:[#allocation4 + $0xb8] sm:$0xff]
          %v3216 = vld [vmem:[#allocation4 + $0xc0] sm:$0xff]
          %v3217 = vld [vmem:[#allocation4 + $0xc8] sm:$0xff]
          %v3218 = vld [vmem:[#allocation4 + $0xd0] sm:$0xff]
          %v3219 = vld [vmem:[#allocation4 + $0xd8] sm:$0xff]
          %v3220 = vld [vmem:[#allocation4 + $0xe0] sm:$0xff]
          %v3221 = vld [vmem:[#allocation4 + $0xe8] sm:$0xff]
          %v3222 = vld [vmem:[#allocation4 + $0xf0] sm:$0xff]
          %v3223 = vld [vmem:[#allocation4 + $0xf8] sm:$0xff]
          %v3224 = vld [vmem:[%s20] sm:$0x3]
          %v3225 = vpack.c.bf16 %v3190, %v3190
          %v3226 = vpack.c.bf16 %v3191, %v3191
          %v3228 = vlaneseq
          %v3229 = vshrl.u32 %v3228, 7
          %v3230 = vsub.s32 0, %v3229
          %v3231 = vrot.slane %v3224, %v3230
          %v3232 = vlaneseq
          %v3233 = vshrl.u32 %v3232, 7
          %v3234 = vsub.s32 1, %v3233
          %v3235 = vrot.slane %v3224, %v3234
          %3238 = vmatprep.subr.bf16.mxu0 %v3193
          %3239 = vmatpush1.bf16.msra.mxu0 %v3192
          %3240 = vmatprep.subr.bf16.mxu0 %v3195
          %3241 = vmatpush1.bf16.msra.mxu0 %v3194
          %3242 = vmatprep.subr.bf16.mxu0 %v3197
          %3243 = vmatpush1.bf16.msra.mxu0 %v3196
          %3244 = vmatprep.subr.bf16.mxu0 %v3199
          %3245 = vmatpush1.bf16.msra.mxu0 %v3198
          %3246 = vmatprep.subr.bf16.mxu0 %v3201
          %3247 = vmatpush1.bf16.msra.mxu0 %v3200
          %3248 = vmatprep.subr.bf16.mxu0 %v3203
          %3249 = vmatpush1.bf16.msra.mxu0 %v3202
          %3250 = vmatprep.subr.bf16.mxu0 %v3205
          %3251 = vmatpush1.bf16.msra.mxu0 %v3204
          %3252 = vmatprep.subr.bf16.mxu0 %v3207
          %3253 = vmatpush1.bf16.msra.mxu0 %v3206
          %3254 = vmatprep.subr.bf16.mxu0 %v3209
          %3255 = vmatpush1.bf16.msra.mxu0 %v3208
          %3256 = vmatprep.subr.bf16.mxu0 %v3211
          %3257 = vmatpush1.bf16.msra.mxu0 %v3210
          %3258 = vmatprep.subr.bf16.mxu0 %v3213
          %3259 = vmatpush1.bf16.msra.mxu0 %v3212
          %3260 = vmatprep.subr.bf16.mxu0 %v3215
          %3261 = vmatpush1.bf16.msra.mxu0 %v3214
          %3262 = vmatprep.subr.bf16.mxu0 %v3217
          %3263 = vmatpush1.bf16.msra.mxu0 %v3216
          %3264 = vmatprep.subr.bf16.mxu0 %v3219
          %3265 = vmatpush1.bf16.msra.mxu0 %v3218
          %3266 = vmatprep.subr.bf16.mxu0 %v3221
          %3267 = vmatpush1.bf16.msra.mxu0 %v3220
          %3268 = vmatprep.subr.bf16.mxu0 %v3223
          %3269 = vmatpush1.bf16.msra.mxu0 %v3222
          %3270 = vmatprep.mubr.bf16.mxu0 %v3226
          %3271 = vmatmul.mubr.bf16.gmra.mrb[0].mxu0 %v3225
          %v3272 = vpop.f32.mrb[0].mxu0
          %v3273 = vadd.f32 %v3231, %v3272
          %v3274 = vpop.f32.mrb[0].mxu0
          %v3275 = vadd.f32 %v3235, %v3274
          %v3276 = vpop.f32.mrb[0].mxu0
          %v3277 = vpop.f32.mrb[0].mxu0
          %3278 = vdwg.mxu0
          %vm3279 = vcmp.gt.f32.partialorder %v3273, 0.0
          %vm3280 = vcmp.gt.f32.partialorder %v3275, 0.0
          %v3281 = vmul.f32 %v3273, 0.01
          %v3282 = vmul.f32 %v3275, 0.01
          %v3283 = vsel %vm3279, %v3273, %v3281
          %v3284 = vsel %vm3280, %v3275, %v3282
          %v3285 = vld [vmem:[#allocation5] sm:$0xff]
          %v3286 = vld [vmem:[#allocation5 + $0x8] sm:$0xff]
          %v3287 = vld [vmem:[#allocation5 + $0x10] sm:$0xff]
          %v3288 = vld [vmem:[#allocation5 + $0x18] sm:$0xff]
          %v3289 = vld [vmem:[#allocation5 + $0x20] sm:$0xff]
          %v3290 = vld [vmem:[#allocation5 + $0x28] sm:$0xff]
          %v3291 = vld [vmem:[#allocation5 + $0x30] sm:$0xff]
          %v3292 = vld [vmem:[#allocation5 + $0x38] sm:$0xff]
          %v3293 = vld [vmem:[#allocation5 + $0x40] sm:$0xff]
          %v3294 = vld [vmem:[#allocation5 + $0x48] sm:$0xff]
          %v3295 = vld [vmem:[#allocation5 + $0x50] sm:$0xff]
          %v3296 = vld [vmem:[#allocation5 + $0x58] sm:$0xff]
          %v3297 = vld [vmem:[#allocation5 + $0x60] sm:$0xff]
          %v3298 = vld [vmem:[#allocation5 + $0x68] sm:$0xff]
          %v3299 = vld [vmem:[#allocation5 + $0x70] sm:$0xff]
          %v3300 = vld [vmem:[#allocation5 + $0x78] sm:$0xff]
          %v3301 = vld [vmem:[#allocation5 + $0x80] sm:$0xff]
          %v3302 = vld [vmem:[#allocation5 + $0x88] sm:$0xff]
          %v3303 = vld [vmem:[#allocation5 + $0x90] sm:$0xff]
          %v3304 = vld [vmem:[#allocation5 + $0x98] sm:$0xff]
          %v3305 = vld [vmem:[#allocation5 + $0xa0] sm:$0xff]
          %v3306 = vld [vmem:[#allocation5 + $0xa8] sm:$0xff]
          %v3307 = vld [vmem:[#allocation5 + $0xb0] sm:$0xff]
          %v3308 = vld [vmem:[#allocation5 + $0xb8] sm:$0xff]
          %v3309 = vld [vmem:[#allocation5 + $0xc0] sm:$0xff]
          %v3310 = vld [vmem:[#allocation5 + $0xc8] sm:$0xff]
          %v3311 = vld [vmem:[#allocation5 + $0xd0] sm:$0xff]
          %v3312 = vld [vmem:[#allocation5 + $0xd8] sm:$0xff]
          %v3313 = vld [vmem:[#allocation5 + $0xe0] sm:$0xff]
          %v3314 = vld [vmem:[#allocation5 + $0xe8] sm:$0xff]
          %v3315 = vld [vmem:[#allocation5 + $0xf0] sm:$0xff]
          %v3316 = vld [vmem:[#allocation5 + $0xf8] sm:$0xff]
          %v3317 = vld [vmem:[%s21] sm:$0x3]
          %v3318 = vpack.c.bf16 %v3283, %v3283
          %v3319 = vpack.c.bf16 %v3284, %v3284
          %v3321 = vlaneseq
          %v3322 = vshrl.u32 %v3321, 7
          %v3323 = vsub.s32 0, %v3322
          %v3324 = vrot.slane %v3317, %v3323
          %v3325 = vlaneseq
          %v3326 = vshrl.u32 %v3325, 7
          %v3327 = vsub.s32 1, %v3326
          %v3328 = vrot.slane %v3317, %v3327
          %3331 = vmatprep.subr.bf16.mxu0 %v3286
          %3332 = vmatpush1.bf16.msra.mxu0 %v3285
          %3333 = vmatprep.subr.bf16.mxu0 %v3288
          %3334 = vmatpush1.bf16.msra.mxu0 %v3287
          %3335 = vmatprep.subr.bf16.mxu0 %v3290
          %3336 = vmatpush1.bf16.msra.mxu0 %v3289
          %3337 = vmatprep.subr.bf16.mxu0 %v3292
          %3338 = vmatpush1.bf16.msra.mxu0 %v3291
          %3339 = vmatprep.subr.bf16.mxu0 %v3294
          %3340 = vmatpush1.bf16.msra.mxu0 %v3293
          %3341 = vmatprep.subr.bf16.mxu0 %v3296
          %3342 = vmatpush1.bf16.msra.mxu0 %v3295
          %3343 = vmatprep.subr.bf16.mxu0 %v3298
          %3344 = vmatpush1.bf16.msra.mxu0 %v3297
          %3345 = vmatprep.subr.bf16.mxu0 %v3300
          %3346 = vmatpush1.bf16.msra.mxu0 %v3299
          %3347 = vmatprep.subr.bf16.mxu0 %v3302
          %3348 = vmatpush1.bf16.msra.mxu0 %v3301
          %3349 = vmatprep.subr.bf16.mxu0 %v3304
          %3350 = vmatpush1.bf16.msra.mxu0 %v3303
          %3351 = vmatprep.subr.bf16.mxu0 %v3306
          %3352 = vmatpush1.bf16.msra.mxu0 %v3305
          %3353 = vmatprep.subr.bf16.mxu0 %v3308
          %3354 = vmatpush1.bf16.msra.mxu0 %v3307
          %3355 = vmatprep.subr.bf16.mxu0 %v3310
          %3356 = vmatpush1.bf16.msra.mxu0 %v3309
          %3357 = vmatprep.subr.bf16.mxu0 %v3312
          %3358 = vmatpush1.bf16.msra.mxu0 %v3311
          %3359 = vmatprep.subr.bf16.mxu0 %v3314
          %3360 = vmatpush1.bf16.msra.mxu0 %v3313
          %3361 = vmatprep.subr.bf16.mxu0 %v3316
          %3362 = vmatpush1.bf16.msra.mxu0 %v3315
          %3363 = vmatprep.mubr.bf16.mxu0 %v3319
          %3364 = vmatmul.mubr.bf16.gmra.mrb[0].mxu0 %v3318
          %v3365 = vpop.f32.mrb[0].mxu0
          %v3366 = vadd.f32 %v3324, %v3365
          %v3367 = vpop.f32.mrb[0].mxu0
          %v3368 = vadd.f32 %v3328, %v3367
          %v3369 = vpop.f32.mrb[0].mxu0
          %v3370 = vpop.f32.mrb[0].mxu0
          %3371 = vdwg.mxu0
          %v3372 = vmax.f32 %v3366, 0.0
          %v3373 = vmax.f32 %v3368, 0.0
          %v3374 = vadd.f32 %v3372, 0.1
          %v3375 = vadd.f32 %v3373, 0.1
          %vm3376 = vcmask 1041408
          %v3377 = vsel %vm3376, %v3374, 0.0
          %v3378 = vsel %vm3376, %v3375, 0.0
          %v3379 = vadd.f32 %v3377, %v3378
          %3380 = vadd.xlane.f32.xlu0 %v3379
          %v3381 = vpop.xlane.xlu0 %3380
          %v3382 = vrcp.pop %v3381
          %v3383 = vmul.f32 %v3374, %v3382
          %v3384 = vmul.f32 %v3375, %v3382
          %v3387 = vcombine.low %v3383, %v3384
          %v3389 = vunpack.c.l.s4 1983009808
          %v3390 = vunpack.c.0.s8 %v3389
          %v3391 = vlaneseq
          %v3392 = vshrl.u32 %v3391, 7
          %v3393 = vsub.s32 %v3390, %v3392
          %v3394 = vrot.slane %v3387, %v3393
          %3396 = vst [vmem:[#allocation7] sm:$0xf] %v3394
          %s3397 = scalar_lea.vmem [#allocation3], 128
          %v3398 = vld [vmem:[%s3397] sm:$0xff]
          %v3399 = vld [vmem:[%s3397 + $0x8] sm:$0xff]
          %v3400 = vld [vmem:[%s3397 + $0x10] sm:$0xff]
          %v3401 = vld [vmem:[%s3397 + $0x18] sm:$0xff]
          %v3402 = vld [vmem:[%s3397 + $0x20] sm:$0xff]
          %v3403 = vld [vmem:[%s3397 + $0x28] sm:$0xff]
          %v3404 = vld [vmem:[%s3397 + $0x30] sm:$0xff]
          %v3405 = vld [vmem:[%s3397 + $0x38] sm:$0xff]
          %v3406 = vld [vmem:[%s3397 + $0x40] sm:$0xff]
          %v3407 = vld [vmem:[%s3397 + $0x48] sm:$0xff]
          %v3408 = vld [vmem:[%s3397 + $0x50] sm:$0xff]
          %v3409 = vld [vmem:[%s3397 + $0x58] sm:$0xff]
          %v3410 = vld [vmem:[%s3397 + $0x60] sm:$0xff]
          %v3411 = vld [vmem:[%s3397 + $0x68] sm:$0xff]
          %v3412 = vld [vmem:[%s3397 + $0x70] sm:$0xff]
          %v3413 = vld [vmem:[%s3397 + $0x78] sm:$0xff]
          %s3414 = scalar_lea.vmem %s19, 2
          %v3415 = vld [vmem:[%s3414] sm:$0x3]
          %v3417 = vlaneseq
          %v3418 = vshrl.u32 %v3417, 7
          %v3419 = vsub.s32 0, %v3418
          %v3420 = vrot.slane %v3415, %v3419
          %v3421 = vlaneseq
          %v3422 = vshrl.u32 %v3421, 7
          %v3423 = vsub.s32 1, %v3422
          %v3424 = vrot.slane %v3415, %v3423
          %v3427 = vrot.slane %v3138, 1
          %v3428 = vsel %vm3141, %v3139, %v3427
          %v3429 = vpack.c.b16 %v3428, %v3428
          %3431 = vmatprep.subr.bf16.mxu0 %v3399
          %3432 = vmatpush1.bf16.msra.mxu0 %v3398
          %3433 = vmatprep.subr.bf16.mxu0 %v3401
          %3434 = vmatpush1.bf16.msra.mxu0 %v3400
          %3435 = vmatprep.subr.bf16.mxu0 %v3403
          %3436 = vmatpush1.bf16.msra.mxu0 %v3402
          %3437 = vmatprep.subr.bf16.mxu0 %v3405
          %3438 = vmatpush1.bf16.msra.mxu0 %v3404
          %3439 = vmatprep.subr.bf16.mxu0 %v3407
          %3440 = vmatpush1.bf16.msra.mxu0 %v3406
          %3441 = vmatprep.subr.bf16.mxu0 %v3409
          %3442 = vmatpush1.bf16.msra.mxu0 %v3408
          %3443 = vmatprep.subr.bf16.mxu0 %v3411
          %3444 = vmatpush1.bf16.msra.mxu0 %v3410
          %3445 = vmatprep.subr.bf16.mxu0 %v3413
          %3446 = vmatpush1.bf16.msra.mxu0 %v3412
          %3447 = vmatprep.subr.bf16.mxu0 0
          %3448 = vmatpush1.bf16.msra.mxu0 0
          %3449 = vmatprep.subr.bf16.mxu0 0
          %3450 = vmatpush1.bf16.msra.mxu0 0
          %3451 = vmatprep.subr.bf16.mxu0 0
          %3452 = vmatpush1.bf16.msra.mxu0 0
          %3453 = vmatprep.subr.bf16.mxu0 0
          %3454 = vmatpush1.bf16.msra.mxu0 0
          %3455 = vmatprep.subr.bf16.mxu0 0
          %3456 = vmatpush1.bf16.msra.mxu0 0
          %3457 = vmatprep.subr.bf16.mxu0 0
          %3458 = vmatpush1.bf16.msra.mxu0 0
          %3459 = vmatprep.subr.bf16.mxu0 0
          %3460 = vmatpush1.bf16.msra.mxu0 0
          %3461 = vmatprep.subr.bf16.mxu0 0
          %3462 = vmatpush1.bf16.msra.mxu0 0
          %3463 = vmatprep.mubr.bf16.mxu0 0
          %3464 = vmatmul.mubr.bf16.gmra.mrb[0].mxu0 %v3429
          %v3465 = vpop.f32.mrb[0].mxu0
          %v3466 = vadd.f32 %v3420, %v3465
          %v3467 = vpop.f32.mrb[0].mxu0
          %v3468 = vadd.f32 %v3424, %v3467
          %v3469 = vpop.f32.mrb[0].mxu0
          %v3470 = vpop.f32.mrb[0].mxu0
          %3471 = vdwg.mxu0
          %vm3472 = vcmp.gt.f32.partialorder %v3466, 0.0
          %vm3473 = vcmp.gt.f32.partialorder %v3468, 0.0
          %v3474 = vmul.f32 %v3466, 0.01
          %v3475 = vmul.f32 %v3468, 0.01
          %v3476 = vsel %vm3472, %v3466, %v3474
          %v3477 = vsel %vm3473, %v3468, %v3475
          %s3478 = scalar_lea.vmem [#allocation4], 256
          %v3479 = vld [vmem:[%s3478] sm:$0xff]
          %v3480 = vld [vmem:[%s3478 + $0x8] sm:$0xff]
          %v3481 = vld [vmem:[%s3478 + $0x10] sm:$0xff]
          %v3482 = vld [vmem:[%s3478 + $0x18] sm:$0xff]
          %v3483 = vld [vmem:[%s3478 + $0x20] sm:$0xff]
          %v3484 = vld [vmem:[%s3478 + $0x28] sm:$0xff]
          %v3485 = vld [vmem:[%s3478 + $0x30] sm:$0xff]
          %v3486 = vld [vmem:[%s3478 + $0x38] sm:$0xff]
          %v3487 = vld [vmem:[%s3478 + $0x40] sm:$0xff]
          %v3488 = vld [vmem:[%s3478 + $0x48] sm:$0xff]
          %v3489 = vld [vmem:[%s3478 + $0x50] sm:$0xff]
          %v3490 = vld [vmem:[%s3478 + $0x58] sm:$0xff]
          %v3491 = vld [vmem:[%s3478 + $0x60] sm:$0xff]
          %v3492 = vld [vmem:[%s3478 + $0x68] sm:$0xff]
          %v3493 = vld [vmem:[%s3478 + $0x70] sm:$0xff]
          %v3494 = vld [vmem:[%s3478 + $0x78] sm:$0xff]
          %v3495 = vld [vmem:[%s3478 + $0x80] sm:$0xff]
          %v3496 = vld [vmem:[%s3478 + $0x88] sm:$0xff]
          %v3497 = vld [vmem:[%s3478 + $0x90] sm:$0xff]
          %v3498 = vld [vmem:[%s3478 + $0x98] sm:$0xff]
          %v3499 = vld [vmem:[%s3478 + $0xa0] sm:$0xff]
          %v3500 = vld [vmem:[%s3478 + $0xa8] sm:$0xff]
          %v3501 = vld [vmem:[%s3478 + $0xb0] sm:$0xff]
          %v3502 = vld [vmem:[%s3478 + $0xb8] sm:$0xff]
          %v3503 = vld [vmem:[%s3478 + $0xc0] sm:$0xff]
          %v3504 = vld [vmem:[%s3478 + $0xc8] sm:$0xff]
          %v3505 = vld [vmem:[%s3478 + $0xd0] sm:$0xff]
          %v3506 = vld [vmem:[%s3478 + $0xd8] sm:$0xff]
          %v3507 = vld [vmem:[%s3478 + $0xe0] sm:$0xff]
          %v3508 = vld [vmem:[%s3478 + $0xe8] sm:$0xff]
          %v3509 = vld [vmem:[%s3478 + $0xf0] sm:$0xff]
          %v3510 = vld [vmem:[%s3478 + $0xf8] sm:$0xff]
          %s3511 = scalar_lea.vmem %s20, 2
          %v3512 = vld [vmem:[%s3511] sm:$0x3]
          %v3513 = vpack.c.bf16 %v3476, %v3476
          %v3514 = vpack.c.bf16 %v3477, %v3477
          %v3516 = vlaneseq
          %v3517 = vshrl.u32 %v3516, 7
          %v3518 = vsub.s32 0, %v3517
          %v3519 = vrot.slane %v3512, %v3518
          %v3520 = vlaneseq
          %v3521 = vshrl.u32 %v3520, 7
          %v3522 = vsub.s32 1, %v3521
          %v3523 = vrot.slane %v3512, %v3522
          %3526 = vmatprep.subr.bf16.mxu0 %v3480
          %3527 = vmatpush1.bf16.msra.mxu0 %v3479
          %3528 = vmatprep.subr.bf16.mxu0 %v3482
          %3529 = vmatpush1.bf16.msra.mxu0 %v3481
          %3530 = vmatprep.subr.bf16.mxu0 %v3484
          %3531 = vmatpush1.bf16.msra.mxu0 %v3483
          %3532 = vmatprep.subr.bf16.mxu0 %v3486
          %3533 = vmatpush1.bf16.msra.mxu0 %v3485
          %3534 = vmatprep.subr.bf16.mxu0 %v3488
          %3535 = vmatpush1.bf16.msra.mxu0 %v3487
          %3536 = vmatprep.subr.bf16.mxu0 %v3490
          %3537 = vmatpush1.bf16.msra.mxu0 %v3489
          %3538 = vmatprep.subr.bf16.mxu0 %v3492
          %3539 = vmatpush1.bf16.msra.mxu0 %v3491
          %3540 = vmatprep.subr.bf16.mxu0 %v3494
          %3541 = vmatpush1.bf16.msra.mxu0 %v3493
          %3542 = vmatprep.subr.bf16.mxu0 %v3496
          %3543 = vmatpush1.bf16.msra.mxu0 %v3495
          %3544 = vmatprep.subr.bf16.mxu0 %v3498
          %3545 = vmatpush1.bf16.msra.mxu0 %v3497
          %3546 = vmatprep.subr.bf16.mxu0 %v3500
          %3547 = vmatpush1.bf16.msra.mxu0 %v3499
          %3548 = vmatprep.subr.bf16.mxu0 %v3502
          %3549 = vmatpush1.bf16.msra.mxu0 %v3501
          %3550 = vmatprep.subr.bf16.mxu0 %v3504
          %3551 = vmatpush1.bf16.msra.mxu0 %v3503
          %3552 = vmatprep.subr.bf16.mxu0 %v3506
          %3553 = vmatpush1.bf16.msra.mxu0 %v3505
          %3554 = vmatprep.subr.bf16.mxu0 %v3508
          %3555 = vmatpush1.bf16.msra.mxu0 %v3507
          %3556 = vmatprep.subr.bf16.mxu0 %v3510
          %3557 = vmatpush1.bf16.msra.mxu0 %v3509
          %3558 = vmatprep.mubr.bf16.mxu0 %v3514
          %3559 = vmatmul.mubr.bf16.gmra.mrb[0].mxu0 %v3513
          %v3560 = vpop.f32.mrb[0].mxu0
          %v3561 = vadd.f32 %v3519, %v3560
          %v3562 = vpop.f32.mrb[0].mxu0
          %v3563 = vadd.f32 %v3523, %v3562
          %v3564 = vpop.f32.mrb[0].mxu0
          %v3565 = vpop.f32.mrb[0].mxu0
          %3566 = vdwg.mxu0
          %vm3567 = vcmp.gt.f32.partialorder %v3561, 0.0
          %vm3568 = vcmp.gt.f32.partialorder %v3563, 0.0
          %v3569 = vmul.f32 %v3561, 0.01
          %v3570 = vmul.f32 %v3563, 0.01
          %v3571 = vsel %vm3567, %v3561, %v3569
          %v3572 = vsel %vm3568, %v3563, %v3570
          %s3573 = scalar_lea.vmem [#allocation5], 256
          %v3574 = vld [vmem:[%s3573] sm:$0xff]
          %v3575 = vld [vmem:[%s3573 + $0x8] sm:$0xff]
          %v3576 = vld [vmem:[%s3573 + $0x10] sm:$0xff]
          %v3577 = vld [vmem:[%s3573 + $0x18] sm:$0xff]
          %v3578 = vld [vmem:[%s3573 + $0x20] sm:$0xff]
          %v3579 = vld [vmem:[%s3573 + $0x28] sm:$0xff]
          %v3580 = vld [vmem:[%s3573 + $0x30] sm:$0xff]
          %v3581 = vld [vmem:[%s3573 + $0x38] sm:$0xff]
          %v3582 = vld [vmem:[%s3573 + $0x40] sm:$0xff]
          %v3583 = vld [vmem:[%s3573 + $0x48] sm:$0xff]
          %v3584 = vld [vmem:[%s3573 + $0x50] sm:$0xff]
          %v3585 = vld [vmem:[%s3573 + $0x58] sm:$0xff]
          %v3586 = vld [vmem:[%s3573 + $0x60] sm:$0xff]
          %v3587 = vld [vmem:[%s3573 + $0x68] sm:$0xff]
          %v3588 = vld [vmem:[%s3573 + $0x70] sm:$0xff]
          %v3589 = vld [vmem:[%s3573 + $0x78] sm:$0xff]
          %v3590 = vld [vmem:[%s3573 + $0x80] sm:$0xff]
          %v3591 = vld [vmem:[%s3573 + $0x88] sm:$0xff]
          %v3592 = vld [vmem:[%s3573 + $0x90] sm:$0xff]
          %v3593 = vld [vmem:[%s3573 + $0x98] sm:$0xff]
          %v3594 = vld [vmem:[%s3573 + $0xa0] sm:$0xff]
          %v3595 = vld [vmem:[%s3573 + $0xa8] sm:$0xff]
          %v3596 = vld [vmem:[%s3573 + $0xb0] sm:$0xff]
          %v3597 = vld [vmem:[%s3573 + $0xb8] sm:$0xff]
          %v3598 = vld [vmem:[%s3573 + $0xc0] sm:$0xff]
          %v3599 = vld [vmem:[%s3573 + $0xc8] sm:$0xff]
          %v3600 = vld [vmem:[%s3573 + $0xd0] sm:$0xff]
          %v3601 = vld [vmem:[%s3573 + $0xd8] sm:$0xff]
          %v3602 = vld [vmem:[%s3573 + $0xe0] sm:$0xff]
          %v3603 = vld [vmem:[%s3573 + $0xe8] sm:$0xff]
          %v3604 = vld [vmem:[%s3573 + $0xf0] sm:$0xff]
          %v3605 = vld [vmem:[%s3573 + $0xf8] sm:$0xff]
          %s3606 = scalar_lea.vmem %s21, 2
          %v3607 = vld [vmem:[%s3606] sm:$0x3]
          %v3608 = vpack.c.bf16 %v3571, %v3571
          %v3609 = vpack.c.bf16 %v3572, %v3572
          %v3611 = vlaneseq
          %v3612 = vshrl.u32 %v3611, 7
          %v3613 = vsub.s32 0, %v3612
          %v3614 = vrot.slane %v3607, %v3613
          %v3615 = vlaneseq
          %v3616 = vshrl.u32 %v3615, 7
          %v3617 = vsub.s32 1, %v3616
          %v3618 = vrot.slane %v3607, %v3617
          %3621 = vmatprep.subr.bf16.mxu0 %v3575
          %3622 = vmatpush1.bf16.msra.mxu0 %v3574
          %3623 = vmatprep.subr.bf16.mxu0 %v3577
          %3624 = vmatpush1.bf16.msra.mxu0 %v3576
          %3625 = vmatprep.subr.bf16.mxu0 %v3579
          %3626 = vmatpush1.bf16.msra.mxu0 %v3578
          %3627 = vmatprep.subr.bf16.mxu0 %v3581
          %3628 = vmatpush1.bf16.msra.mxu0 %v3580
          %3629 = vmatprep.subr.bf16.mxu0 %v3583
          %3630 = vmatpush1.bf16.msra.mxu0 %v3582
          %3631 = vmatprep.subr.bf16.mxu0 %v3585
          %3632 = vmatpush1.bf16.msra.mxu0 %v3584
          %3633 = vmatprep.subr.bf16.mxu0 %v3587
          %3634 = vmatpush1.bf16.msra.mxu0 %v3586
          %3635 = vmatprep.subr.bf16.mxu0 %v3589
          %3636 = vmatpush1.bf16.msra.mxu0 %v3588
          %3637 = vmatprep.subr.bf16.mxu0 %v3591
          %3638 = vmatpush1.bf16.msra.mxu0 %v3590
          %3639 = vmatprep.subr.bf16.mxu0 %v3593
          %3640 = vmatpush1.bf16.msra.mxu0 %v3592
          %3641 = vmatprep.subr.bf16.mxu0 %v3595
          %3642 = vmatpush1.bf16.msra.mxu0 %v3594
          %3643 = vmatprep.subr.bf16.mxu0 %v3597
          %3644 = vmatpush1.bf16.msra.mxu0 %v3596
          %3645 = vmatprep.subr.bf16.mxu0 %v3599
          %3646 = vmatpush1.bf16.msra.mxu0 %v3598
          %3647 = vmatprep.subr.bf16.mxu0 %v3601
          %3648 = vmatpush1.bf16.msra.mxu0 %v3600
          %3649 = vmatprep.subr.bf16.mxu0 %v3603
          %3650 = vmatpush1.bf16.msra.mxu0 %v3602
          %3651 = vmatprep.subr.bf16.mxu0 %v3605
          %3652 = vmatpush1.bf16.msra.mxu0 %v3604
          %3653 = vmatprep.mubr.bf16.mxu0 %v3609
          %3654 = vmatmul.mubr.bf16.gmra.mrb[0].mxu0 %v3608
          %v3655 = vpop.f32.mrb[0].mxu0
          %v3656 = vadd.f32 %v3614, %v3655
          %v3657 = vpop.f32.mrb[0].mxu0
          %v3658 = vadd.f32 %v3618, %v3657
          %v3659 = vpop.f32.mrb[0].mxu0
          %v3660 = vpop.f32.mrb[0].mxu0
          %3661 = vdwg.mxu0
          %v3662 = vsel %vm3376, %v3656, -inf
          %v3663 = vsel %vm3376, %v3658, -inf
          %v3664 = vmax.f32 %v3662, %v3663
          %3665 = vmax.xlane.f32.xlu0 %v3664
          %v3666 = vpop.xlane.xlu0 %3665
          %v3667 = vsub.f32 %v3656, %v3666
          %v3668 = vsub.f32 %v3658, %v3666
          %v3669 = vmul.f32 %v3667, 1.442695
          %v3670 = vpow.pop %v3669
          %v3671 = vmul.f32 %v3668, 1.442695
          %v3672 = vpow.pop %v3671
          %v3673 = vsel %vm3376, %v3670, 0.0
          %v3674 = vsel %vm3376, %v3672, 0.0
          %v3675 = vadd.f32 %v3673, %v3674
          %3676 = vadd.xlane.f32.xlu0 %v3675
          %v3677 = vpop.xlane.xlu0 %3676
          %v3678 = vrcp.pop %v3677
          %v3679 = vmul.f32 %v3670, %v3678
          %v3680 = vmul.f32 %v3672, %v3678
          %v3683 = vcombine.low %v3679, %v3680
          %v3685 = vunpack.c.l.s4 1983009808
          %v3686 = vunpack.c.0.s8 %v3685
          %v3687 = vlaneseq
          %v3688 = vshrl.u32 %v3687, 7
          %v3689 = vsub.s32 %v3686, %v3688
          %v3690 = vrot.slane %v3683, %v3689
          %3692 = vst [vmem:[#allocation9] sm:$0xf] %v3690
        $region104: #{vit_forward.1} parent=95 // pred_fallthru
          _
        // Predicated region
        $region105: #{vit_forward.1} parent=95 // pred_check
          %p3693 = pneg %p509
        $region106: #{vit_forward.1} parent=95 // pred_check_branch
          %3695 = sbr.rel (%p3693) target = $region108
        $region107: #{vit_forward.1} parent=95 // pred_region
          %s3697 = ssub.s32 64, 64
          %3698 = vsyncadd [#allocation8], %s3697
          %s3700 = sshll.u32 [#allocation7], 4
          %s3701 = int_to_ptr.vmem [resolvable:$true] %s3700
          %3703 = dma.vmem_to_hbm [thread:$0]  %s3701, 64, %s22, [#allocation8]
        $region108: #{vit_forward.1} parent=95 // pred_fallthru
          _
        // Predicated region
        $region109: #{vit_forward.1} parent=95 // pred_check
          %p3704 = pneg %p530
        $region110: #{vit_forward.1} parent=95 // pred_check_branch
          %3706 = sbr.rel (%p3704) target = $region112
        $region111: #{vit_forward.1} parent=95 // pred_region
          %s3708 = ssub.s32 64, 64
          %3709 = vsyncadd [#allocation10], %s3708
          %s3711 = sshll.u32 [#allocation9], 4
          %s3712 = int_to_ptr.vmem [resolvable:$true] %s3711
          %3714 = dma.vmem_to_hbm [thread:$0]  %s3712, 64, %s23, [#allocation10]
        $region112: #{vit_forward.1} parent=95 // pred_fallthru
          _
        // Predicated region
        $region113: #{vit_forward.1} parent=95 // pred_check
          %p3715 = pneg %p509
        $region114: #{vit_forward.1} parent=95 // pred_check_branch
          %3717 = sbr.rel (%p3715) target = $region116
        $region115: #{vit_forward.1} parent=95 // pred_region
          %3718 = dma.done [#allocation8], 64
        $region116: #{vit_forward.1} parent=95 // pred_fallthru
          _
        // Predicated region
        $region117: #{vit_forward.1} parent=95 // pred_check
          %p3719 = pneg %p530
        $region118: #{vit_forward.1} parent=95 // pred_check_branch
          %3721 = sbr.rel (%p3719) target = $region120
        $region119: #{vit_forward.1} parent=95 // pred_region
          %3722 = dma.done [#allocation10], 64
        $region120: #{vit_forward.1} parent=95 // pred_fallthru
          _
      $region96: #{vit_forward.1} parent=5 // pred_fallthru
        _
      %p3723 = scmp.le.s32.totalorder 2, %s32
      // Predicated region
      $region121: #{vit_forward.1} parent=5 // pred_check
        %p3724 = pneg %p3723
      $region122: #{vit_forward.1} parent=5 // pred_check_branch
        %3726 = sbr.rel (%p3724) target = $region124
      $region123: #{vit_forward.1} parent=5 // pred_region
        %s3727 = ssub.s32 %s32, 2
      $region124: #{vit_forward.1} parent=5 // pred_fallthru
        _
    $region6: #{vit_forward.1} parent=1 // loop_footer
      %s36 = sadd.s32 1, %s32
    $region7: #{vit_forward.1} parent=1 // loop_footer_branch
      %31 = sbr.rel target = $region3
    $region8: #{vit_forward.1} parent=1 // loop_exit
      _
    %3728 = vsyncpa [#allocation8], 1
    %s3729 = scalar_lea.sflag [#allocation8], 1
    %3730 = vsyncpa %s3729, 1
    %3731 = vsyncpa [#allocation10], 1
  %3732 = vsyncmov [#allocation6]
  %s3733 = vpop.sfrf %3732
  %p3734 = scmp.eq.s32.totalorder %s3733, 0
  %p3735 = pneg %p3734
  %3737 = shalt.err (%p3735)
  %s3738 = scalar_lea.sflag [#allocation6], 1
  %3739 = vsyncmov %s3738
  %s3740 = vpop.sfrf %3739
  %p3741 = scmp.eq.s32.totalorder %s3740, 0
  %p3742 = pneg %p3741
  %3744 = shalt.err (%p3742)
  %s3745 = scalar_lea.sflag [#allocation6], 2
  %3746 = vsyncmov %s3745
  %s3747 = vpop.sfrf %3746
  %p3748 = scmp.eq.s32.totalorder %s3747, 0
  %p3749 = pneg %p3748
  %3751 = shalt.err (%p3749)

</llo_original>
